<compile_context>
chip_gen: v7x
topology: tpu7x:2x2x1
jax: 0.10.0
libtpu: 0.0.40
codegen_flags: <defaults>
</compile_context>

<pallas_src>
import math
from functools import partial

import jax
import jax.numpy as jnp
from jax.experimental import pallas as pl
from jax.experimental.pallas import tpu as pltpu

F32 = jnp.float32
BF16 = jnp.bfloat16
VMEM_SPEC = pl.BlockSpec(memory_space=pltpu.MemorySpace.VMEM)


# ----------------------------------------------------------------------------
# Kernels
# ----------------------------------------------------------------------------
def _pw_relu_bn_kernel(x_ref, w_ref, s_ref, t_ref, o_ref):
    # 1x1 Conv1d (bias=False) -> ReLU -> folded BatchNorm affine.
    x = x_ref[0].astype(BF16)                                  # [TT, Cin]
    y = jnp.dot(x, w_ref[...], preferred_element_type=F32)     # [TT, Cout]
    y = jnp.maximum(y, 0.0)
    o_ref[0] = y * s_ref[...] + t_ref[...]


def _pw_relu_bn_mean_kernel(x_ref, w_ref, s_ref, t_ref, y_ref, m_ref):
    # Same as above but also emits the time-mean (fused SE squeeze).
    x = x_ref[0].astype(BF16)                                  # [T, Cin]
    y = jnp.dot(x, w_ref[...], preferred_element_type=F32)
    y = jnp.maximum(y, 0.0)
    y = y * s_ref[...] + t_ref[...]
    y_ref[0] = y
    m_ref[0] = jnp.mean(y, axis=0, keepdims=True)              # [1, Cout]


def _pw_gate_relu_bn_kernel(h_ref, g_ref, w_ref, s_ref, t_ref, o_ref):
    # skip_layer(h * gate): 1x1 conv -> ReLU -> BN, SE gate fused in.
    hg = (h_ref[0] * g_ref[0]).astype(BF16)                    # [TT, Cin]
    y = jnp.dot(hg, w_ref[...], preferred_element_type=F32)
    y = jnp.maximum(y, 0.0)
    o_ref[0] = y * s_ref[...] + t_ref[...]


def _pw_gate_relu_bn_res_kernel(h_ref, g_ref, x_ref, w_ref, s_ref, t_ref, o_ref):
    # residual_layer(h * gate) fused with "(... + x) * sqrt(0.5)".
    hg = (h_ref[0] * g_ref[0]).astype(BF16)
    y = jnp.dot(hg, w_ref[...], preferred_element_type=F32)
    y = jnp.maximum(y, 0.0)
    y = y * s_ref[...] + t_ref[...]
    o_ref[0] = (y + x_ref[0]) * math.sqrt(0.5)


def _res2_stack_kernel(h_ref, w_ref, s_ref, t_ref, o_ref, pad_scr,
                       *, K, dil, T, width, nums):
    # Full Res2Conv1dReluBn stack for one batch element:
    #   split / branch adds / dilated convs / ReLU+BN / concat, all in VMEM.
    C = h_ref.shape[2]
    pad_scr[...] = jnp.zeros_like(pad_scr)                     # halo stays 0
    sp = None
    for i in range(nums):                                      # static unroll
        spx_i = h_ref[0, :, i * width:(i + 1) * width]         # [T, width]
        sp = spx_i if i == 0 else sp + spx_i
        pad_scr[dil:dil + T, :] = sp                           # zero-pad in VMEM
        taps = [pad_scr[k * dil:k * dil + T, :] for k in range(K)]
        xk = jnp.concatenate(taps, axis=-1).astype(BF16)       # [T, K*width]
        y = jnp.dot(xk, w_ref[i], preferred_element_type=F32)  # one contraction
        y = jnp.maximum(y, 0.0)
        sp = y * s_ref[i] + t_ref[i]                           # post-BN feeds next
        o_ref[0, :, i * width:(i + 1) * width] = sp
    if nums * width < C:                                       # passthrough chunk
        o_ref[0, :, nums * width:] = h_ref[0, :, nums * width:]


def _se_mlp_kernel(m_ref, w1_ref, b1_ref, w2_ref, b2_ref, g_ref):
    # SqueezeExcitation MLP on the pooled [B, C] features.
    m = m_ref[...].astype(BF16)
    h = jnp.dot(m, w1_ref[...], preferred_element_type=F32) + b1_ref[...]
    h = jnp.maximum(h, 0.0).astype(BF16)
    z = jnp.dot(h, w2_ref[...], preferred_element_type=F32) + b2_ref[...]
    g_ref[...] = 1.0 / (1.0 + jnp.exp(-z))


# ----------------------------------------------------------------------------
# pallas_call wrappers
# ----------------------------------------------------------------------------
def _time_tile(T):
    for tt in (512, 256, 128):
        if T % tt == 0 and T > tt:
            return tt
    return T


def pointwise_relu_bn(x, w_bf16, scale, shift):
    B, T, Cin = x.shape
    Cout = w_bf16.shape[1]
    TT = _time_tile(T)
    return pl.pallas_call(
        _pw_relu_bn_kernel,
        out_shape=jax.ShapeDtypeStruct((B, T, Cout), F32),
        grid=(B, T // TT),
        in_specs=[
            pl.BlockSpec((1, TT, Cin), lambda b, t: (b, t, 0)),
            pl.BlockSpec((Cin, Cout), lambda b, t: (0, 0)),
            pl.BlockSpec((1, Cout), lambda b, t: (0, 0)),
            pl.BlockSpec((1, Cout), lambda b, t: (0, 0)),
        ],
        out_specs=pl.BlockSpec((1, TT, Cout), lambda b, t: (b, t, 0)),
        compiler_params=pltpu.CompilerParams(
            dimension_semantics=("parallel", "parallel")),
    )(x, w_bf16, scale.reshape(1, Cout), shift.reshape(1, Cout))


def pointwise_relu_bn_mean(x, w_bf16, scale, shift):
    B, T, Cin = x.shape
    Cout = w_bf16.shape[1]
    return pl.pallas_call(
        _pw_relu_bn_mean_kernel,
        out_shape=(jax.ShapeDtypeStruct((B, T, Cout), F32),
                   jax.ShapeDtypeStruct((B, 1, Cout), F32)),
        grid=(B,),
        in_specs=[
            pl.BlockSpec((1, T, Cin), lambda b: (b, 0, 0)),
            pl.BlockSpec((Cin, Cout), lambda b: (0, 0)),
            pl.BlockSpec((1, Cout), lambda b: (0, 0)),
            pl.BlockSpec((1, Cout), lambda b: (0, 0)),
        ],
        out_specs=(pl.BlockSpec((1, T, Cout), lambda b: (b, 0, 0)),
                   pl.BlockSpec((1, 1, Cout), lambda b: (b, 0, 0))),
        compiler_params=pltpu.CompilerParams(
            dimension_semantics=("parallel",),
            vmem_limit_bytes=48 * 1024 * 1024),
    )(x, w_bf16, scale.reshape(1, Cout), shift.reshape(1, Cout))


def res2_stack(h, w_stack, s_stack, t_stack, *, K, dil, width, nums):
    B, T, C = h.shape
    return pl.pallas_call(
        partial(_res2_stack_kernel, K=K, dil=dil, T=T, width=width, nums=nums),
        out_shape=jax.ShapeDtypeStruct((B, T, C), F32),
        grid=(B,),
        in_specs=[
            pl.BlockSpec((1, T, C), lambda b: (b, 0, 0)),
            pl.BlockSpec((nums, K * width, width), lambda b: (0, 0, 0)),
            pl.BlockSpec((nums, 1, width), lambda b: (0, 0, 0)),
            pl.BlockSpec((nums, 1, width), lambda b: (0, 0, 0)),
        ],
        out_specs=pl.BlockSpec((1, T, C), lambda b: (b, 0, 0)),
        scratch_shapes=[pltpu.VMEM((T + 2 * dil, width), F32)],
        compiler_params=pltpu.CompilerParams(
            dimension_semantics=("parallel",),
            vmem_limit_bytes=48 * 1024 * 1024),
    )(h, w_stack, s_stack, t_stack)


def se_mlp(m, w1_bf16, b1, w2_bf16, b2):
    B, C = m.shape
    hid = w1_bf16.shape[1]
    return pl.pallas_call(
        _se_mlp_kernel,
        out_shape=jax.ShapeDtypeStruct((B, C), F32),
        in_specs=[VMEM_SPEC] * 5,
        out_specs=VMEM_SPEC,
    )(m, w1_bf16, b1.reshape(1, hid), w2_bf16, b2.reshape(1, C))


def pointwise_gate_relu_bn(h, g, w_bf16, scale, shift):
    B, T, Cin = h.shape
    Cout = w_bf16.shape[1]
    TT = _time_tile(T)
    return pl.pallas_call(
        _pw_gate_relu_bn_kernel,
        out_shape=jax.ShapeDtypeStruct((B, T, Cout), F32),
        grid=(B, T // TT),
        in_specs=[
            pl.BlockSpec((1, TT, Cin), lambda b, t: (b, t, 0)),
            pl.BlockSpec((1, 1, Cin), lambda b, t: (b, 0, 0)),
            pl.BlockSpec((Cin, Cout), lambda b, t: (0, 0)),
            pl.BlockSpec((1, Cout), lambda b, t: (0, 0)),
            pl.BlockSpec((1, Cout), lambda b, t: (0, 0)),
        ],
        out_specs=pl.BlockSpec((1, TT, Cout), lambda b, t: (b, t, 0)),
        compiler_params=pltpu.CompilerParams(
            dimension_semantics=("parallel", "parallel")),
    )(h, g, w_bf16, scale.reshape(1, Cout), shift.reshape(1, Cout))


def pointwise_gate_relu_bn_residual(h, g, x, w_bf16, scale, shift):
    B, T, Cin = h.shape
    Cout = w_bf16.shape[1]
    TT = _time_tile(T)
    return pl.pallas_call(
        _pw_gate_relu_bn_res_kernel,
        out_shape=jax.ShapeDtypeStruct((B, T, Cout), F32),
        grid=(B, T // TT),
        in_specs=[
            pl.BlockSpec((1, TT, Cin), lambda b, t: (b, t, 0)),
            pl.BlockSpec((1, 1, Cin), lambda b, t: (b, 0, 0)),
            pl.BlockSpec((1, TT, Cout), lambda b, t: (b, t, 0)),
            pl.BlockSpec((Cin, Cout), lambda b, t: (0, 0)),
            pl.BlockSpec((1, Cout), lambda b, t: (0, 0)),
            pl.BlockSpec((1, Cout), lambda b, t: (0, 0)),
        ],
        out_specs=pl.BlockSpec((1, TT, Cout), lambda b, t: (b, t, 0)),
        compiler_params=pltpu.CompilerParams(
            dimension_semantics=("parallel", "parallel")),
    )(h, g, x, w_bf16, scale.reshape(1, Cout), shift.reshape(1, Cout))


# ----------------------------------------------------------------------------
# Deterministic parameters (eval-mode BN folded to per-channel scale/shift)
# ----------------------------------------------------------------------------
class KeyGen:
    def __init__(self, seed):
        self._key = jax.random.PRNGKey(seed)

    def __call__(self):
        self._key, sub = jax.random.split(self._key)
        return sub


def make_bn(kg, c, eps=1e-5):
    gamma = 1.0 + 0.1 * jax.random.normal(kg(), (c,), F32)
    beta = 0.05 * jax.random.normal(kg(), (c,), F32)
    rmean = 0.1 * jax.random.normal(kg(), (c,), F32)
    rvar = 1.0 + 0.1 * jnp.abs(jax.random.normal(kg(), (c,), F32))
    scale = gamma * jax.lax.rsqrt(rvar + eps)
    shift = beta - rmean * scale
    return scale, shift


def make_params(kg, C, K, scale_groups, se_s=2):
    width = C // scale_groups
    nums = scale_groups if scale_groups == 1 else scale_groups - 1

    def u(shape, bound):
        return jax.random.uniform(kg(), shape, F32, -bound, bound)

    p = {}
    p["c1_w"] = u((C, C), 1.0 / math.sqrt(C)).astype(BF16)
    p["c1_bn"] = make_bn(kg, C)

    p["res2_w"] = u((nums, K * width, width),
                    1.0 / math.sqrt(K * width)).astype(BF16)
    rs, rt = [], []
    for _ in range(nums):
        s, t = make_bn(kg, width)
        rs.append(s)
        rt.append(t)
    p["res2_s"] = jnp.stack(rs).reshape(nums, 1, width)
    p["res2_t"] = jnp.stack(rt).reshape(nums, 1, width)

    p["c2_w"] = u((C, C), 1.0 / math.sqrt(C)).astype(BF16)
    p["c2_bn"] = make_bn(kg, C)

    hid = C // se_s
    b1 = 1.0 / math.sqrt(C)
    b2 = 1.0 / math.sqrt(hid)
    p["se_w1"] = u((C, hid), b1).astype(BF16)
    p["se_b1"] = u((hid,), b1)
    p["se_w2"] = u((hid, C), b2).astype(BF16)
    p["se_b2"] = u((C,), b2)

    p["res_w"] = u((C, C), 1.0 / math.sqrt(C)).astype(BF16)
    p["res_bn"] = make_bn(kg, C)
    p["skip_w"] = u((C, C), 1.0 / math.sqrt(C)).astype(BF16)
    p["skip_bn"] = make_bn(kg, C)
    return p


# ----------------------------------------------------------------------------
# SE_Res2Block forward (NCT in, NCT out) — matches the PyTorch module in eval.
# ----------------------------------------------------------------------------
def se_res2block_forward(x_nct, p, *, kernel_size, dilation, padding, scale):
    # TODO(synk): stride != 1 and non-"same" padding are not implemented (the
    # residual add requires the conv to preserve the sequence length anyway).
    assert padding == dilation * (kernel_size - 1) // 2
    B, C, T = x_nct.shape
    width = C // scale
    nums = scale if scale == 1 else scale - 1

    x = jnp.transpose(x_nct, (0, 2, 1))                         # [B, T, C]

    s1, t1 = p["c1_bn"]
    h = pointwise_relu_bn(x, p["c1_w"], s1, t1)                 # Conv1dReluBn k=1

    h = res2_stack(h, p["res2_w"], p["res2_s"], p["res2_t"],    # Res2Conv1dReluBn
                   K=kernel_size, dil=dilation, width=width, nums=nums)

    s2, t2 = p["c2_bn"]
    h, m = pointwise_relu_bn_mean(h, p["c2_w"], s2, t2)         # Conv1dReluBn + mean_t

    g = se_mlp(m.reshape(B, C), p["se_w1"], p["se_b1"],         # SE gate [B, C]
               p["se_w2"], p["se_b2"])
    g = g.reshape(B, 1, C)

    sr, tr = p["res_bn"]
    res = pointwise_gate_relu_bn_residual(h, g, x, p["res_w"], sr, tr)
    ss, ts = p["skip_bn"]
    skip = pointwise_gate_relu_bn(h, g, p["skip_w"], ss, ts)

    return jnp.transpose(res, (0, 2, 1)), jnp.transpose(skip, (0, 2, 1))


# ----------------------------------------------------------------------------
# Pure-JAX reference (same folded-BN / bf16 weights) for a correctness check
# ----------------------------------------------------------------------------
def _ref_forward(x_nct, p, *, kernel_size, dilation, padding, scale):
    B, C, T = x_nct.shape
    width = C // scale
    nums = scale if scale == 1 else scale - 1
    K, dil = kernel_size, dilation
    x = jnp.transpose(x_nct, (0, 2, 1)).astype(F32)

    def pw(z, w, bn):
        s, t = bn
        y = jnp.maximum(jnp.einsum("btc,cd->btd", z, w.astype(F32)), 0.0)
        return y * s + t

    h = pw(x, p["c1_w"], p["c1_bn"])
    outs, sp = [], None
    for i in range(nums):
        spx_i = h[:, :, i * width:(i + 1) * width]
        sp = spx_i if i == 0 else sp + spx_i
        spp = jnp.pad(sp, ((0, 0), (padding, padding), (0, 0)))
        w = p["res2_w"][i].astype(F32)
        acc = 0.0
        for k in range(K):
            acc = acc + jnp.einsum("btc,cd->btd",
                                   spp[:, k * dil:k * dil + T, :],
                                   w[k * width:(k + 1) * width])
        y = jnp.maximum(acc, 0.0)
        sp = y * p["res2_s"][i] + p["res2_t"][i]
        outs.append(sp)
    if scale != 1:
        outs.append(h[:, :, nums * width:])
    h = jnp.concatenate(outs, axis=-1)
    h = pw(h, p["c2_w"], p["c2_bn"])
    m = jnp.mean(h, axis=1)
    g = jnp.maximum(m @ p["se_w1"].astype(F32) + p["se_b1"], 0.0)
    g = jax.nn.sigmoid(g @ p["se_w2"].astype(F32) + p["se_b2"])
    hse = h * g[:, None, :]
    res = (pw(hse, p["res_w"], p["res_bn"]) + x) * math.sqrt(0.5)
    skip = pw(hse, p["skip_w"], p["skip_bn"])
    return jnp.transpose(res, (0, 2, 1)), jnp.transpose(skip, (0, 2, 1))


# ----------------------------------------------------------------------------
if __name__ == "__main__":
    B, C, T = 2, 64, 16                 # small demo shapes
    KSIZE, STRIDE, PAD, DIL, SCALE = 3, 1, 2, 2, 4

    kg = KeyGen(0)
    params = make_params(kg, C, KSIZE, SCALE)
    x = jax.random.normal(jax.random.PRNGKey(0), (B, C, T), F32)

    fwd = jax.jit(partial(se_res2block_forward, kernel_size=KSIZE,
                          dilation=DIL, padding=PAD, scale=SCALE))
    res, skip = fwd(x, params)
    res, skip = jax.block_until_ready((res, skip))

    assert res.shape == (B, C, T) and skip.shape == (B, C, T)
    assert bool(jnp.all(jnp.isfinite(res))) and bool(jnp.all(jnp.isfinite(skip)))

    res_ref, skip_ref = _ref_forward(x, params, kernel_size=KSIZE,
                                     dilation=DIL, padding=PAD, scale=SCALE)
    assert bool(jnp.allclose(res, res_ref, atol=1e-1, rtol=1e-1))
    assert bool(jnp.allclose(skip, skip_ref, atol=1e-1, rtol=1e-1))

    print("KERNEL_OK")
</pallas_src>

<mosaic_0001>
module attributes {stable_mosaic.version = 11 : i64} {
  func.func @_pw_relu_bn_mean_kernel(%arg0: i32, %arg1: memref<1x16x64xf32, #tpu.memory_space<vmem>>, %arg2: memref<64x64xbf16, #tpu.memory_space<vmem>>, %arg3: memref<1x64xf32, #tpu.memory_space<vmem>>, %arg4: memref<1x64xf32, #tpu.memory_space<vmem>>, %arg5: memref<1x16x64xf32, #tpu.memory_space<vmem>>, %arg6: memref<1x1x64xf32, #tpu.memory_space<vmem>>) attributes {dimension_semantics = [#tpu.dimension_semantics<parallel>], iteration_bounds = array<i64: 2>, scalar_prefetch = 0 : i64, scratch_operands = 0 : i64, tpu.core_type = #tpu.core_type<tc>, window_params = [{transform_indices = @transform_0, window_bounds = array<i64: 1, 16, 64>}, {pipeline_mode = #tpu.pipeline_mode<synchronous>, transform_indices = @transform_1, window_bounds = array<i64: 64, 64>}, {pipeline_mode = #tpu.pipeline_mode<synchronous>, transform_indices = @transform_2, window_bounds = array<i64: 1, 64>}, {pipeline_mode = #tpu.pipeline_mode<synchronous>, transform_indices = @transform_3, window_bounds = array<i64: 1, 64>}, {transform_indices = @transform_4, window_bounds = array<i64: 1, 16, 64>}, {transform_indices = @transform_5, window_bounds = array<i64: 1, 1, 64>}]} {
    %c0 = arith.constant 0 : index
    %c0_0 = arith.constant 0 : index
    %c0_1 = arith.constant 0 : index
    %0 = vector.load %arg1[%c0, %c0_0, %c0_1] : memref<1x16x64xf32, #tpu.memory_space<vmem>>, vector<1x16x64xf32>
    %1 = vector.shape_cast %0 : vector<1x16x64xf32> to vector<16x64xf32>
    %2 = arith.truncf %1 : vector<16x64xf32> to vector<16x64xbf16>
    %c0_2 = arith.constant 0 : index
    %c0_3 = arith.constant 0 : index
    %3 = vector.load %arg2[%c0_2, %c0_3] : memref<64x64xbf16, #tpu.memory_space<vmem>>, vector<64x64xbf16>
    %cst = arith.constant dense<0.000000e+00> : vector<16x64xf32>
    %4 = tpu.matmul %2, %3, %cst {dimension_numbers = #tpu.dot_dimension_numbers<[1], [0], [0], [1], [0, 0, 1, 1], [], []>} : vector<16x64xbf16>, vector<64x64xbf16>, vector<16x64xf32> -> vector<16x64xf32>
    %cst_4 = arith.constant 0.000000e+00 : f32
    %5 = vector.broadcast %cst_4 : f32 to vector<16x64xf32>
    %6 = arith.maximumf %4, %5 : vector<16x64xf32>
    %c0_5 = arith.constant 0 : index
    %c0_6 = arith.constant 0 : index
    %7 = vector.load %arg3[%c0_5, %c0_6] : memref<1x64xf32, #tpu.memory_space<vmem>>, vector<1x64xf32>
    %8 = vector.broadcast %7 : vector<1x64xf32> to vector<16x64xf32>
    %9 = arith.mulf %6, %8 : vector<16x64xf32>
    %c0_7 = arith.constant 0 : index
    %c0_8 = arith.constant 0 : index
    %10 = vector.load %arg4[%c0_7, %c0_8] : memref<1x64xf32, #tpu.memory_space<vmem>>, vector<1x64xf32>
    %11 = vector.broadcast %10 : vector<1x64xf32> to vector<16x64xf32>
    %12 = arith.addf %9, %11 : vector<16x64xf32>
    %c0_9 = arith.constant 0 : index
    %c0_10 = arith.constant 0 : index
    %c0_11 = arith.constant 0 : index
    %13 = vector.load %arg5[%c0_9, %c0_10, %c0_11] : memref<1x16x64xf32, #tpu.memory_space<vmem>>, vector<1x16x64xf32>
    %14 = vector.shape_cast %13 : vector<1x16x64xf32> to vector<16x64xf32>
    %15 = vector.shape_cast %12 : vector<16x64xf32> to vector<1x16x64xf32>
    tpu.vector_store %arg5[%c0_9, %c0_10, %c0_11], %15 {strides = array<i32>} : memref<1x16x64xf32, #tpu.memory_space<vmem>>, vector<1x16x64xf32>,
    %cst_12 = arith.constant dense<0.000000e+00> : vector<64xf32>
    %16 = vector.multi_reduction <add>, %12, %cst_12 [0] : vector<16x64xf32> to vector<64xf32>
    %17 = vector.shape_cast %16 : vector<64xf32> to vector<1x64xf32>
    %cst_13 = arith.constant 1.600000e+01 : f32
    %18 = vector.broadcast %cst_13 : f32 to vector<1x64xf32>
    %19 = arith.divf %17, %18 : vector<1x64xf32>
    %c0_14 = arith.constant 0 : index
    %c0_15 = arith.constant 0 : index
    %c0_16 = arith.constant 0 : index
    %20 = vector.load %arg6[%c0_14, %c0_15, %c0_16] : memref<1x1x64xf32, #tpu.memory_space<vmem>>, vector<1x1x64xf32>
    %21 = vector.shape_cast %20 : vector<1x1x64xf32> to vector<1x64xf32>
    %22 = vector.shape_cast %19 : vector<1x64xf32> to vector<1x1x64xf32>
    tpu.vector_store %arg6[%c0_14, %c0_15, %c0_16], %22 {strides = array<i32>} : memref<1x1x64xf32, #tpu.memory_space<vmem>>, vector<1x1x64xf32>,
    return
  }
  func.func @transform_0(%arg0: i32) -> (i32, i32, i32) {
    %c0_i32 = arith.constant 0 : i32
    %c0_i32_0 = arith.constant 0 : i32
    %c0_i32_1 = arith.constant 0 : i32
    return %arg0, %c0_i32, %c0_i32_0 : i32, i32, i32
  }
  func.func @transform_1(%arg0: i32) -> (i32, i32) {
    %c0_i32 = arith.constant 0 : i32
    %c0_i32_0 = arith.constant 0 : i32
    %c0_i32_1 = arith.constant 0 : i32
    return %c0_i32, %c0_i32_0 : i32, i32
  }
  func.func @transform_2(%arg0: i32) -> (i32, i32) {
    %c0_i32 = arith.constant 0 : i32
    %c0_i32_0 = arith.constant 0 : i32
    %c0_i32_1 = arith.constant 0 : i32
    return %c0_i32, %c0_i32_0 : i32, i32
  }
  func.func @transform_3(%arg0: i32) -> (i32, i32) {
    %c0_i32 = arith.constant 0 : i32
    %c0_i32_0 = arith.constant 0 : i32
    %c0_i32_1 = arith.constant 0 : i32
    return %c0_i32, %c0_i32_0 : i32, i32
  }
  func.func @transform_4(%arg0: i32) -> (i32, i32, i32) {
    %c0_i32 = arith.constant 0 : i32
    %c0_i32_0 = arith.constant 0 : i32
    %c0_i32_1 = arith.constant 0 : i32
    return %arg0, %c0_i32, %c0_i32_0 : i32, i32, i32
  }
  func.func @transform_5(%arg0: i32) -> (i32, i32, i32) {
    %c0_i32 = arith.constant 0 : i32
    %c0_i32_0 = arith.constant 0 : i32
    %c0_i32_1 = arith.constant 0 : i32
    return %arg0, %c0_i32, %c0_i32_0 : i32, i32, i32
  }
}

module attributes {stable_mosaic.version = 11 : i64} {
  func.func @_pw_relu_bn_kernel(%arg0: i32, %arg1: i32, %arg2: memref<1x16x64xf32, #tpu.memory_space<vmem>>, %arg3: memref<64x64xbf16, #tpu.memory_space<vmem>>, %arg4: memref<1x64xf32, #tpu.memory_space<vmem>>, %arg5: memref<1x64xf32, #tpu.memory_space<vmem>>, %arg6: memref<1x16x64xf32, #tpu.memory_space<vmem>>) attributes {dimension_semantics = [#tpu.dimension_semantics<parallel>, #tpu.dimension_semantics<parallel>], iteration_bounds = array<i64: 2, 1>, scalar_prefetch = 0 : i64, scratch_operands = 0 : i64, tpu.core_type = #tpu.core_type<tc>, window_params = [{transform_indices = @transform_0, window_bounds = array<i64: 1, 16, 64>}, {pipeline_mode = #tpu.pipeline_mode<synchronous>, transform_indices = @transform_1, window_bounds = array<i64: 64, 64>}, {pipeline_mode = #tpu.pipeline_mode<synchronous>, transform_indices = @transform_2, window_bounds = array<i64: 1, 64>}, {pipeline_mode = #tpu.pipeline_mode<synchronous>, transform_indices = @transform_3, window_bounds = array<i64: 1, 64>}, {transform_indices = @transform_4, window_bounds = array<i64: 1, 16, 64>}]} {
    %c0 = arith.constant 0 : index
    %c0_0 = arith.constant 0 : index
    %c0_1 = arith.constant 0 : index
    %0 = vector.load %arg2[%c0, %c0_0, %c0_1] : memref<1x16x64xf32, #tpu.memory_space<vmem>>, vector<1x16x64xf32>
    %1 = vector.shape_cast %0 : vector<1x16x64xf32> to vector<16x64xf32>
    %2 = arith.truncf %1 : vector<16x64xf32> to vector<16x64xbf16>
    %c0_2 = arith.constant 0 : index
    %c0_3 = arith.constant 0 : index
    %3 = vector.load %arg3[%c0_2, %c0_3] : memref<64x64xbf16, #tpu.memory_space<vmem>>, vector<64x64xbf16>
    %cst = arith.constant dense<0.000000e+00> : vector<16x64xf32>
    %4 = tpu.matmul %2, %3, %cst {dimension_numbers = #tpu.dot_dimension_numbers<[1], [0], [0], [1], [0, 0, 1, 1], [], []>} : vector<16x64xbf16>, vector<64x64xbf16>, vector<16x64xf32> -> vector<16x64xf32>
    %cst_4 = arith.constant 0.000000e+00 : f32
    %5 = vector.broadcast %cst_4 : f32 to vector<16x64xf32>
    %6 = arith.maximumf %4, %5 : vector<16x64xf32>
    %c0_5 = arith.constant 0 : index
    %c0_6 = arith.constant 0 : index
    %7 = vector.load %arg4[%c0_5, %c0_6] : memref<1x64xf32, #tpu.memory_space<vmem>>, vector<1x64xf32>
    %8 = vector.broadcast %7 : vector<1x64xf32> to vector<16x64xf32>
    %9 = arith.mulf %6, %8 : vector<16x64xf32>
    %c0_7 = arith.constant 0 : index
    %c0_8 = arith.constant 0 : index
    %10 = vector.load %arg5[%c0_7, %c0_8] : memref<1x64xf32, #tpu.memory_space<vmem>>, vector<1x64xf32>
    %11 = vector.broadcast %10 : vector<1x64xf32> to vector<16x64xf32>
    %12 = arith.addf %9, %11 : vector<16x64xf32>
    %c0_9 = arith.constant 0 : index
    %c0_10 = arith.constant 0 : index
    %c0_11 = arith.constant 0 : index
    %13 = vector.load %arg6[%c0_9, %c0_10, %c0_11] : memref<1x16x64xf32, #tpu.memory_space<vmem>>, vector<1x16x64xf32>
    %14 = vector.shape_cast %13 : vector<1x16x64xf32> to vector<16x64xf32>
    %15 = vector.shape_cast %12 : vector<16x64xf32> to vector<1x16x64xf32>
    tpu.vector_store %arg6[%c0_9, %c0_10, %c0_11], %15 {strides = array<i32>} : memref<1x16x64xf32, #tpu.memory_space<vmem>>, vector<1x16x64xf32>,
    return
  }
  func.func @transform_0(%arg0: i32, %arg1: i32) -> (i32, i32, i32) {
    %c0_i32 = arith.constant 0 : i32
    %c0_i32_0 = arith.constant 0 : i32
    return %arg0, %arg1, %c0_i32 : i32, i32, i32
  }
  func.func @transform_1(%arg0: i32, %arg1: i32) -> (i32, i32) {
    %c0_i32 = arith.constant 0 : i32
    %c0_i32_0 = arith.constant 0 : i32
    %c0_i32_1 = arith.constant 0 : i32
    return %c0_i32, %c0_i32_0 : i32, i32
  }
  func.func @transform_2(%arg0: i32, %arg1: i32) -> (i32, i32) {
    %c0_i32 = arith.constant 0 : i32
    %c0_i32_0 = arith.constant 0 : i32
    %c0_i32_1 = arith.constant 0 : i32
    return %c0_i32, %c0_i32_0 : i32, i32
  }
  func.func @transform_3(%arg0: i32, %arg1: i32) -> (i32, i32) {
    %c0_i32 = arith.constant 0 : i32
    %c0_i32_0 = arith.constant 0 : i32
    %c0_i32_1 = arith.constant 0 : i32
    return %c0_i32, %c0_i32_0 : i32, i32
  }
  func.func @transform_4(%arg0: i32, %arg1: i32) -> (i32, i32, i32) {
    %c0_i32 = arith.constant 0 : i32
    %c0_i32_0 = arith.constant 0 : i32
    return %arg0, %arg1, %c0_i32 : i32, i32, i32
  }
}

module attributes {stable_mosaic.version = 11 : i64} {
  func.func @_res2_stack_kernel(%arg0: i32, %arg1: memref<1x16x64xf32, #tpu.memory_space<vmem>>, %arg2: memref<3x48x16xbf16, #tpu.memory_space<vmem>>, %arg3: memref<3x1x16xf32, #tpu.memory_space<vmem>>, %arg4: memref<3x1x16xf32, #tpu.memory_space<vmem>>, %arg5: memref<1x16x64xf32, #tpu.memory_space<vmem>>, %arg6: memref<20x16xf32, #tpu.memory_space<vmem>>) attributes {dimension_semantics = [#tpu.dimension_semantics<parallel>], iteration_bounds = array<i64: 2>, scalar_prefetch = 0 : i64, scratch_operands = 1 : i64, tpu.core_type = #tpu.core_type<tc>, window_params = [{transform_indices = @transform_0, window_bounds = array<i64: 1, 16, 64>}, {pipeline_mode = #tpu.pipeline_mode<synchronous>, transform_indices = @transform_1, window_bounds = array<i64: 3, 48, 16>}, {pipeline_mode = #tpu.pipeline_mode<synchronous>, transform_indices = @transform_2, window_bounds = array<i64: 3, 1, 16>}, {pipeline_mode = #tpu.pipeline_mode<synchronous>, transform_indices = @transform_3, window_bounds = array<i64: 3, 1, 16>}, {transform_indices = @transform_4, window_bounds = array<i64: 1, 16, 64>}]} {
    %cst = arith.constant 0.000000e+00 : f32
    %0 = vector.broadcast %cst : f32 to vector<20x16xf32>
    %c0 = arith.constant 0 : index
    %c0_0 = arith.constant 0 : index
    %1 = vector.load %arg6[%c0, %c0_0] : memref<20x16xf32, #tpu.memory_space<vmem>>, vector<20x16xf32>
    tpu.vector_store %arg6[%c0, %c0_0], %0 {strides = array<i32>} : memref<20x16xf32, #tpu.memory_space<vmem>>, vector<20x16xf32>,
    %c0_1 = arith.constant 0 : index
    %c0_2 = arith.constant 0 : index
    %c0_3 = arith.constant 0 : index
    %2 = vector.load %arg1[%c0_1, %c0_2, %c0_3] : memref<1x16x64xf32, #tpu.memory_space<vmem>>, vector<1x16x16xf32>
    %3 = vector.shape_cast %2 : vector<1x16x16xf32> to vector<16x16xf32>
    %c2 = arith.constant 2 : index
    %c0_4 = arith.constant 0 : index
    %4 = vector.load %arg6[%c2, %c0_4] : memref<20x16xf32, #tpu.memory_space<vmem>>, vector<16x16xf32>
    tpu.vector_store %arg6[%c2, %c0_4], %3 {strides = array<i32>} : memref<20x16xf32, #tpu.memory_space<vmem>>, vector<16x16xf32>,
    %c0_5 = arith.constant 0 : index
    %c0_6 = arith.constant 0 : index
    %5 = vector.load %arg6[%c0_5, %c0_6] : memref<20x16xf32, #tpu.memory_space<vmem>>, vector<16x16xf32>
    %c2_7 = arith.constant 2 : index
    %c0_8 = arith.constant 0 : index
    %6 = vector.load %arg6[%c2_7, %c0_8] : memref<20x16xf32, #tpu.memory_space<vmem>>, vector<16x16xf32>
    %c4 = arith.constant 4 : index
    %c0_9 = arith.constant 0 : index
    %7 = vector.load %arg6[%c4, %c0_9] : memref<20x16xf32, #tpu.memory_space<vmem>>, vector<16x16xf32>
    %8 = tpu.concatenate %5, %6, %7 in 1 : vector<16x16xf32>, vector<16x16xf32>, vector<16x16xf32> -> vector<16x48xf32>
    %9 = arith.truncf %8 : vector<16x48xf32> to vector<16x48xbf16>
    %c0_10 = arith.constant 0 : index
    %c0_11 = arith.constant 0 : index
    %c0_12 = arith.constant 0 : index
    %10 = vector.load %arg2[%c0_10, %c0_11, %c0_12] : memref<3x48x16xbf16, #tpu.memory_space<vmem>>, vector<1x48x16xbf16>
    %11 = vector.shape_cast %10 : vector<1x48x16xbf16> to vector<48x16xbf16>
    %cst_13 = arith.constant dense<0.000000e+00> : vector<16x16xf32>
    %12 = tpu.matmul %9, %11, %cst_13 {dimension_numbers = #tpu.dot_dimension_numbers<[1], [0], [0], [1], [0, 0, 1, 1], [], []>} : vector<16x48xbf16>, vector<48x16xbf16>, vector<16x16xf32> -> vector<16x16xf32>
    %cst_14 = arith.constant 0.000000e+00 : f32
    %13 = vector.broadcast %cst_14 : f32 to vector<16x16xf32>
    %14 = arith.maximumf %12, %13 : vector<16x16xf32>
    %c0_15 = arith.constant 0 : index
    %c0_16 = arith.constant 0 : index
    %c0_17 = arith.constant 0 : index
    %15 = vector.load %arg3[%c0_15, %c0_16, %c0_17] : memref<3x1x16xf32, #tpu.memory_space<vmem>>, vector<1x1x16xf32>
    %16 = vector.shape_cast %15 : vector<1x1x16xf32> to vector<1x16xf32>
    %17 = vector.broadcast %16 : vector<1x16xf32> to vector<16x16xf32>
    %18 = arith.mulf %14, %17 : vector<16x16xf32>
    %c0_18 = arith.constant 0 : index
    %c0_19 = arith.constant 0 : index
    %c0_20 = arith.constant 0 : index
    %19 = vector.load %arg4[%c0_18, %c0_19, %c0_20] : memref<3x1x16xf32, #tpu.memory_space<vmem>>, vector<1x1x16xf32>
    %20 = vector.shape_cast %19 : vector<1x1x16xf32> to vector<1x16xf32>
    %21 = vector.broadcast %20 : vector<1x16xf32> to vector<16x16xf32>
    %22 = arith.addf %18, %21 : vector<16x16xf32>
    %c0_21 = arith.constant 0 : index
    %c0_22 = arith.constant 0 : index
    %c0_23 = arith.constant 0 : index
    %23 = vector.load %arg5[%c0_21, %c0_22, %c0_23] : memref<1x16x64xf32, #tpu.memory_space<vmem>>, vector<1x16x16xf32>
    %24 = vector.shape_cast %23 : vector<1x16x16xf32> to vector<16x16xf32>
    %25 = vector.shape_cast %22 : vector<16x16xf32> to vector<1x16x16xf32>
    tpu.vector_store %arg5[%c0_21, %c0_22, %c0_23], %25 {strides = array<i32>} : memref<1x16x64xf32, #tpu.memory_space<vmem>>, vector<1x16x16xf32>,
    %c0_24 = arith.constant 0 : index
    %c0_25 = arith.constant 0 : index
    %c16 = arith.constant 16 : index
    %26 = vector.load %arg1[%c0_24, %c0_25, %c16] : memref<1x16x64xf32, #tpu.memory_space<vmem>>, vector<1x16x16xf32>
    %27 = vector.shape_cast %26 : vector<1x16x16xf32> to vector<16x16xf32>
    %28 = arith.addf %22, %27 : vector<16x16xf32>
    %c2_26 = arith.constant 2 : index
    %c0_27 = arith.constant 0 : index
    %29 = vector.load %arg6[%c2_26, %c0_27] : memref<20x16xf32, #tpu.memory_space<vmem>>, vector<16x16xf32>
    tpu.vector_store %arg6[%c2_26, %c0_27], %28 {strides = array<i32>} : memref<20x16xf32, #tpu.memory_space<vmem>>, vector<16x16xf32>,
    %c0_28 = arith.constant 0 : index
    %c0_29 = arith.constant 0 : index
    %30 = vector.load %arg6[%c0_28, %c0_29] : memref<20x16xf32, #tpu.memory_space<vmem>>, vector<16x16xf32>
    %c2_30 = arith.constant 2 : index
    %c0_31 = arith.constant 0 : index
    %31 = vector.load %arg6[%c2_30, %c0_31] : memref<20x16xf32, #tpu.memory_space<vmem>>, vector<16x16xf32>
    %c4_32 = arith.constant 4 : index
    %c0_33 = arith.constant 0 : index
    %32 = vector.load %arg6[%c4_32, %c0_33] : memref<20x16xf32, #tpu.memory_space<vmem>>, vector<16x16xf32>
    %33 = tpu.concatenate %30, %31, %32 in 1 : vector<16x16xf32>, vector<16x16xf32>, vector<16x16xf32> -> vector<16x48xf32>
    %34 = arith.truncf %33 : vector<16x48xf32> to vector<16x48xbf16>
    %c1 = arith.constant 1 : index
    %c0_34 = arith.constant 0 : index
    %c0_35 = arith.constant 0 : index
    %35 = vector.load %arg2[%c1, %c0_34, %c0_35] : memref<3x48x16xbf16, #tpu.memory_space<vmem>>, vector<1x48x16xbf16>
    %36 = vector.shape_cast %35 : vector<1x48x16xbf16> to vector<48x16xbf16>
    %cst_36 = arith.constant dense<0.000000e+00> : vector<16x16xf32>
    %37 = tpu.matmul %34, %36, %cst_36 {dimension_numbers = #tpu.dot_dimension_numbers<[1], [0], [0], [1], [0, 0, 1, 1], [], []>} : vector<16x48xbf16>, vector<48x16xbf16>, vector<16x16xf32> -> vector<16x16xf32>
    %cst_37 = arith.constant 0.000000e+00 : f32
    %38 = vector.broadcast %cst_37 : f32 to vector<16x16xf32>
    %39 = arith.maximumf %37, %38 : vector<16x16xf32>
    %c1_38 = arith.constant 1 : index
    %c0_39 = arith.constant 0 : index
    %c0_40 = arith.constant 0 : index
    %40 = vector.load %arg3[%c1_38, %c0_39, %c0_40] : memref<3x1x16xf32, #tpu.memory_space<vmem>>, vector<1x1x16xf32>
    %41 = vector.shape_cast %40 : vector<1x1x16xf32> to vector<1x16xf32>
    %42 = vector.broadcast %41 : vector<1x16xf32> to vector<16x16xf32>
    %43 = arith.mulf %39, %42 : vector<16x16xf32>
    %c1_41 = arith.constant 1 : index
    %c0_42 = arith.constant 0 : index
    %c0_43 = arith.constant 0 : index
    %44 = vector.load %arg4[%c1_41, %c0_42, %c0_43] : memref<3x1x16xf32, #tpu.memory_space<vmem>>, vector<1x1x16xf32>
    %45 = vector.shape_cast %44 : vector<1x1x16xf32> to vector<1x16xf32>
    %46 = vector.broadcast %45 : vector<1x16xf32> to vector<16x16xf32>
    %47 = arith.addf %43, %46 : vector<16x16xf32>
    %c0_44 = arith.constant 0 : index
    %c0_45 = arith.constant 0 : index
    %c16_46 = arith.constant 16 : index
    %48 = vector.load %arg5[%c0_44, %c0_45, %c16_46] : memref<1x16x64xf32, #tpu.memory_space<vmem>>, vector<1x16x16xf32>
    %49 = vector.shape_cast %48 : vector<1x16x16xf32> to vector<16x16xf32>
    %50 = vector.shape_cast %47 : vector<16x16xf32> to vector<1x16x16xf32>
    tpu.vector_store %arg5[%c0_44, %c0_45, %c16_46], %50 {strides = array<i32>} : memref<1x16x64xf32, #tpu.memory_space<vmem>>, vector<1x16x16xf32>,
    %c0_47 = arith.constant 0 : index
    %c0_48 = arith.constant 0 : index
    %c32 = arith.constant 32 : index
    %51 = vector.load %arg1[%c0_47, %c0_48, %c32] : memref<1x16x64xf32, #tpu.memory_space<vmem>>, vector<1x16x16xf32>
    %52 = vector.shape_cast %51 : vector<1x16x16xf32> to vector<16x16xf32>
    %53 = arith.addf %47, %52 : vector<16x16xf32>
    %c2_49 = arith.constant 2 : index
    %c0_50 = arith.constant 0 : index
    %54 = vector.load %arg6[%c2_49, %c0_50] : memref<20x16xf32, #tpu.memory_space<vmem>>, vector<16x16xf32>
    tpu.vector_store %arg6[%c2_49, %c0_50], %53 {strides = array<i32>} : memref<20x16xf32, #tpu.memory_space<vmem>>, vector<16x16xf32>,
    %c0_51 = arith.constant 0 : index
    %c0_52 = arith.constant 0 : index
    %55 = vector.load %arg6[%c0_51, %c0_52] : memref<20x16xf32, #tpu.memory_space<vmem>>, vector<16x16xf32>
    %c2_53 = arith.constant 2 : index
    %c0_54 = arith.constant 0 : index
    %56 = vector.load %arg6[%c2_53, %c0_54] : memref<20x16xf32, #tpu.memory_space<vmem>>, vector<16x16xf32>
    %c4_55 = arith.constant 4 : index
    %c0_56 = arith.constant 0 : index
    %57 = vector.load %arg6[%c4_55, %c0_56] : memref<20x16xf32, #tpu.memory_space<vmem>>, vector<16x16xf32>
    %58 = tpu.concatenate %55, %56, %57 in 1 : vector<16x16xf32>, vector<16x16xf32>, vector<16x16xf32> -> vector<16x48xf32>
    %59 = arith.truncf %58 : vector<16x48xf32> to vector<16x48xbf16>
    %c2_57 = arith.constant 2 : index
    %c0_58 = arith.constant 0 : index
    %c0_59 = arith.constant 0 : index
    %60 = vector.load %arg2[%c2_57, %c0_58, %c0_59] : memref<3x48x16xbf16, #tpu.memory_space<vmem>>, vector<1x48x16xbf16>
    %61 = vector.shape_cast %60 : vector<1x48x16xbf16> to vector<48x16xbf16>
    %cst_60 = arith.constant dense<0.000000e+00> : vector<16x16xf32>
    %62 = tpu.matmul %59, %61, %cst_60 {dimension_numbers = #tpu.dot_dimension_numbers<[1], [0], [0], [1], [0, 0, 1, 1], [], []>} : vector<16x48xbf16>, vector<48x16xbf16>, vector<16x16xf32> -> vector<16x16xf32>
    %cst_61 = arith.constant 0.000000e+00 : f32
    %63 = vector.broadcast %cst_61 : f32 to vector<16x16xf32>
    %64 = arith.maximumf %62, %63 : vector<16x16xf32>
    %c2_62 = arith.constant 2 : index
    %c0_63 = arith.constant 0 : index
    %c0_64 = arith.constant 0 : index
    %65 = vector.load %arg3[%c2_62, %c0_63, %c0_64] : memref<3x1x16xf32, #tpu.memory_space<vmem>>, vector<1x1x16xf32>
    %66 = vector.shape_cast %65 : vector<1x1x16xf32> to vector<1x16xf32>
    %67 = vector.broadcast %66 : vector<1x16xf32> to vector<16x16xf32>
    %68 = arith.mulf %64, %67 : vector<16x16xf32>
    %c2_65 = arith.constant 2 : index
    %c0_66 = arith.constant 0 : index
    %c0_67 = arith.constant 0 : index
    %69 = vector.load %arg4[%c2_65, %c0_66, %c0_67] : memref<3x1x16xf32, #tpu.memory_space<vmem>>, vector<1x1x16xf32>
    %70 = vector.shape_cast %69 : vector<1x1x16xf32> to vector<1x16xf32>
    %71 = vector.broadcast %70 : vector<1x16xf32> to vector<16x16xf32>
    %72 = arith.addf %68, %71 : vector<16x16xf32>
    %c0_68 = arith.constant 0 : index
    %c0_69 = arith.constant 0 : index
    %c32_70 = arith.constant 32 : index
    %73 = vector.load %arg5[%c0_68, %c0_69, %c32_70] : memref<1x16x64xf32, #tpu.memory_space<vmem>>, vector<1x16x16xf32>
    %74 = vector.shape_cast %73 : vector<1x16x16xf32> to vector<16x16xf32>
    %75 = vector.shape_cast %72 : vector<16x16xf32> to vector<1x16x16xf32>
    tpu.vector_store %arg5[%c0_68, %c0_69, %c32_70], %75 {strides = array<i32>} : memref<1x16x64xf32, #tpu.memory_space<vmem>>, vector<1x16x16xf32>,
    %c0_71 = arith.constant 0 : index
    %c0_72 = arith.constant 0 : index
    %c48 = arith.constant 48 : index
    %76 = vector.load %arg1[%c0_71, %c0_72, %c48] : memref<1x16x64xf32, #tpu.memory_space<vmem>>, vector<1x16x16xf32>
    %77 = vector.shape_cast %76 : vector<1x16x16xf32> to vector<16x16xf32>
    %c0_73 = arith.constant 0 : index
    %c0_74 = arith.constant 0 : index
    %c48_75 = arith.constant 48 : index
    %78 = vector.load %arg5[%c0_73, %c0_74, %c48_75] : memref<1x16x64xf32, #tpu.memory_space<vmem>>, vector<1x16x16xf32>
    %79 = vector.shape_cast %78 : vector<1x16x16xf32> to vector<16x16xf32>
    %80 = vector.shape_cast %77 : vector<16x16xf32> to vector<1x16x16xf32>
    tpu.vector_store %arg5[%c0_73, %c0_74, %c48_75], %80 {strides = array<i32>} : memref<1x16x64xf32, #tpu.memory_space<vmem>>, vector<1x16x16xf32>,
    return
  }
  func.func @transform_0(%arg0: i32) -> (i32, i32, i32) {
    %c0_i32 = arith.constant 0 : i32
    %c0_i32_0 = arith.constant 0 : i32
    %c0_i32_1 = arith.constant 0 : i32
    return %arg0, %c0_i32, %c0_i32_0 : i32, i32, i32
  }
  func.func @transform_1(%arg0: i32) -> (i32, i32, i32) {
    %c0_i32 = arith.constant 0 : i32
    %c0_i32_0 = arith.constant 0 : i32
    %c0_i32_1 = arith.constant 0 : i32
    %c0_i32_2 = arith.constant 0 : i32
    return %c0_i32, %c0_i32_0, %c0_i32_1 : i32, i32, i32
  }
  func.func @transform_2(%arg0: i32) -> (i32, i32, i32) {
    %c0_i32 = arith.constant 0 : i32
    %c0_i32_0 = arith.constant 0 : i32
    %c0_i32_1 = arith.constant 0 : i32
    %c0_i32_2 = arith.constant 0 : i32
    return %c0_i32, %c0_i32_0, %c0_i32_1 : i32, i32, i32
  }
  func.func @transform_3(%arg0: i32) -> (i32, i32, i32) {
    %c0_i32 = arith.constant 0 : i32
    %c0_i32_0 = arith.constant 0 : i32
    %c0_i32_1 = arith.constant 0 : i32
    %c0_i32_2 = arith.constant 0 : i32
    return %c0_i32, %c0_i32_0, %c0_i32_1 : i32, i32, i32
  }
  func.func @transform_4(%arg0: i32) -> (i32, i32, i32) {
    %c0_i32 = arith.constant 0 : i32
    %c0_i32_0 = arith.constant 0 : i32
    %c0_i32_1 = arith.constant 0 : i32
    return %arg0, %c0_i32, %c0_i32_0 : i32, i32, i32
  }
}

module attributes {stable_mosaic.version = 11 : i64} {
  func.func @_se_mlp_kernel(%arg0: memref<2x64xf32, #tpu.memory_space<vmem>>, %arg1: memref<64x32xbf16, #tpu.memory_space<vmem>>, %arg2: memref<1x32xf32, #tpu.memory_space<vmem>>, %arg3: memref<32x64xbf16, #tpu.memory_space<vmem>>, %arg4: memref<1x64xf32, #tpu.memory_space<vmem>>, %arg5: memref<2x64xf32, #tpu.memory_space<vmem>>) attributes {dimension_semantics = [], scalar_prefetch = 0 : i64, scratch_operands = 0 : i64, tpu.core_type = #tpu.core_type<tc>} {
    %c0 = arith.constant 0 : index
    %c0_0 = arith.constant 0 : index
    %0 = vector.load %arg0[%c0, %c0_0] : memref<2x64xf32, #tpu.memory_space<vmem>>, vector<2x64xf32>
    %1 = arith.truncf %0 : vector<2x64xf32> to vector<2x64xbf16>
    %c0_1 = arith.constant 0 : index
    %c0_2 = arith.constant 0 : index
    %2 = vector.load %arg1[%c0_1, %c0_2] : memref<64x32xbf16, #tpu.memory_space<vmem>>, vector<64x32xbf16>
    %cst = arith.constant dense<0.000000e+00> : vector<2x32xf32>
    %3 = tpu.matmul %1, %2, %cst {dimension_numbers = #tpu.dot_dimension_numbers<[1], [0], [0], [1], [0, 0, 1, 1], [], []>} : vector<2x64xbf16>, vector<64x32xbf16>, vector<2x32xf32> -> vector<2x32xf32>
    %c0_3 = arith.constant 0 : index
    %c0_4 = arith.constant 0 : index
    %4 = vector.load %arg2[%c0_3, %c0_4] : memref<1x32xf32, #tpu.memory_space<vmem>>, vector<1x32xf32>
    %5 = vector.broadcast %4 : vector<1x32xf32> to vector<2x32xf32>
    %6 = arith.addf %3, %5 : vector<2x32xf32>
    %cst_5 = arith.constant 0.000000e+00 : f32
    %7 = vector.broadcast %cst_5 : f32 to vector<2x32xf32>
    %8 = arith.maximumf %6, %7 : vector<2x32xf32>
    %9 = arith.truncf %8 : vector<2x32xf32> to vector<2x32xbf16>
    %c0_6 = arith.constant 0 : index
    %c0_7 = arith.constant 0 : index
    %10 = vector.load %arg3[%c0_6, %c0_7] : memref<32x64xbf16, #tpu.memory_space<vmem>>, vector<32x64xbf16>
    %cst_8 = arith.constant dense<0.000000e+00> : vector<2x64xf32>
    %11 = tpu.matmul %9, %10, %cst_8 {dimension_numbers = #tpu.dot_dimension_numbers<[1], [0], [0], [1], [0, 0, 1, 1], [], []>} : vector<2x32xbf16>, vector<32x64xbf16>, vector<2x64xf32> -> vector<2x64xf32>
    %c0_9 = arith.constant 0 : index
    %c0_10 = arith.constant 0 : index
    %12 = vector.load %arg4[%c0_9, %c0_10] : memref<1x64xf32, #tpu.memory_space<vmem>>, vector<1x64xf32>
    %13 = vector.broadcast %12 : vector<1x64xf32> to vector<2x64xf32>
    %14 = arith.addf %11, %13 : vector<2x64xf32>
    %cst_11 = arith.constant 0.000000e+00 : f32
    %15 = vector.broadcast %cst_11 : f32 to vector<2x64xf32>
    %16 = arith.subf %15, %14 : vector<2x64xf32>
    %17 = math.exp %16 : vector<2x64xf32>
    %cst_12 = arith.constant 1.000000e+00 : f32
    %18 = vector.broadcast %cst_12 : f32 to vector<2x64xf32>
    %19 = arith.addf %18, %17 : vector<2x64xf32>
    %cst_13 = arith.constant 1.000000e+00 : f32
    %20 = vector.broadcast %cst_13 : f32 to vector<2x64xf32>
    %21 = arith.divf %20, %19 : vector<2x64xf32>
    %c0_14 = arith.constant 0 : index
    %c0_15 = arith.constant 0 : index
    %22 = vector.load %arg5[%c0_14, %c0_15] : memref<2x64xf32, #tpu.memory_space<vmem>>, vector<2x64xf32>
    tpu.vector_store %arg5[%c0_14, %c0_15], %21 {strides = array<i32>} : memref<2x64xf32, #tpu.memory_space<vmem>>, vector<2x64xf32>,
    return
  }
}

module attributes {stable_mosaic.version = 11 : i64} {
  func.func @_pw_gate_relu_bn_kernel(%arg0: i32, %arg1: i32, %arg2: memref<1x16x64xf32, #tpu.memory_space<vmem>>, %arg3: memref<1x1x64xf32, #tpu.memory_space<vmem>>, %arg4: memref<64x64xbf16, #tpu.memory_space<vmem>>, %arg5: memref<1x64xf32, #tpu.memory_space<vmem>>, %arg6: memref<1x64xf32, #tpu.memory_space<vmem>>, %arg7: memref<1x16x64xf32, #tpu.memory_space<vmem>>) attributes {dimension_semantics = [#tpu.dimension_semantics<parallel>, #tpu.dimension_semantics<parallel>], iteration_bounds = array<i64: 2, 1>, scalar_prefetch = 0 : i64, scratch_operands = 0 : i64, tpu.core_type = #tpu.core_type<tc>, window_params = [{transform_indices = @transform_0, window_bounds = array<i64: 1, 16, 64>}, {transform_indices = @transform_1, window_bounds = array<i64: 1, 1, 64>}, {pipeline_mode = #tpu.pipeline_mode<synchronous>, transform_indices = @transform_2, window_bounds = array<i64: 64, 64>}, {pipeline_mode = #tpu.pipeline_mode<synchronous>, transform_indices = @transform_3, window_bounds = array<i64: 1, 64>}, {pipeline_mode = #tpu.pipeline_mode<synchronous>, transform_indices = @transform_4, window_bounds = array<i64: 1, 64>}, {transform_indices = @transform_5, window_bounds = array<i64: 1, 16, 64>}]} {
    %c0 = arith.constant 0 : index
    %c0_0 = arith.constant 0 : index
    %c0_1 = arith.constant 0 : index
    %0 = vector.load %arg2[%c0, %c0_0, %c0_1] : memref<1x16x64xf32, #tpu.memory_space<vmem>>, vector<1x16x64xf32>
    %1 = vector.shape_cast %0 : vector<1x16x64xf32> to vector<16x64xf32>
    %c0_2 = arith.constant 0 : index
    %c0_3 = arith.constant 0 : index
    %c0_4 = arith.constant 0 : index
    %2 = vector.load %arg3[%c0_2, %c0_3, %c0_4] : memref<1x1x64xf32, #tpu.memory_space<vmem>>, vector<1x1x64xf32>
    %3 = vector.shape_cast %2 : vector<1x1x64xf32> to vector<1x64xf32>
    %4 = vector.broadcast %3 : vector<1x64xf32> to vector<16x64xf32>
    %5 = arith.mulf %1, %4 : vector<16x64xf32>
    %6 = arith.truncf %5 : vector<16x64xf32> to vector<16x64xbf16>
    %c0_5 = arith.constant 0 : index
    %c0_6 = arith.constant 0 : index
    %7 = vector.load %arg4[%c0_5, %c0_6] : memref<64x64xbf16, #tpu.memory_space<vmem>>, vector<64x64xbf16>
    %cst = arith.constant dense<0.000000e+00> : vector<16x64xf32>
    %8 = tpu.matmul %6, %7, %cst {dimension_numbers = #tpu.dot_dimension_numbers<[1], [0], [0], [1], [0, 0, 1, 1], [], []>} : vector<16x64xbf16>, vector<64x64xbf16>, vector<16x64xf32> -> vector<16x64xf32>
    %cst_7 = arith.constant 0.000000e+00 : f32
    %9 = vector.broadcast %cst_7 : f32 to vector<16x64xf32>
    %10 = arith.maximumf %8, %9 : vector<16x64xf32>
    %c0_8 = arith.constant 0 : index
    %c0_9 = arith.constant 0 : index
    %11 = vector.load %arg5[%c0_8, %c0_9] : memref<1x64xf32, #tpu.memory_space<vmem>>, vector<1x64xf32>
    %12 = vector.broadcast %11 : vector<1x64xf32> to vector<16x64xf32>
    %13 = arith.mulf %10, %12 : vector<16x64xf32>
    %c0_10 = arith.constant 0 : index
    %c0_11 = arith.constant 0 : index
    %14 = vector.load %arg6[%c0_10, %c0_11] : memref<1x64xf32, #tpu.memory_space<vmem>>, vector<1x64xf32>
    %15 = vector.broadcast %14 : vector<1x64xf32> to vector<16x64xf32>
    %16 = arith.addf %13, %15 : vector<16x64xf32>
    %c0_12 = arith.constant 0 : index
    %c0_13 = arith.constant 0 : index
    %c0_14 = arith.constant 0 : index
    %17 = vector.load %arg7[%c0_12, %c0_13, %c0_14] : memref<1x16x64xf32, #tpu.memory_space<vmem>>, vector<1x16x64xf32>
    %18 = vector.shape_cast %17 : vector<1x16x64xf32> to vector<16x64xf32>
    %19 = vector.shape_cast %16 : vector<16x64xf32> to vector<1x16x64xf32>
    tpu.vector_store %arg7[%c0_12, %c0_13, %c0_14], %19 {strides = array<i32>} : memref<1x16x64xf32, #tpu.memory_space<vmem>>, vector<1x16x64xf32>,
    return
  }
  func.func @transform_0(%arg0: i32, %arg1: i32) -> (i32, i32, i32) {
    %c0_i32 = arith.constant 0 : i32
    %c0_i32_0 = arith.constant 0 : i32
    return %arg0, %arg1, %c0_i32 : i32, i32, i32
  }
  func.func @transform_1(%arg0: i32, %arg1: i32) -> (i32, i32, i32) {
    %c0_i32 = arith.constant 0 : i32
    %c0_i32_0 = arith.constant 0 : i32
    %c0_i32_1 = arith.constant 0 : i32
    return %arg0, %c0_i32, %c0_i32_0 : i32, i32, i32
  }
  func.func @transform_2(%arg0: i32, %arg1: i32) -> (i32, i32) {
    %c0_i32 = arith.constant 0 : i32
    %c0_i32_0 = arith.constant 0 : i32
    %c0_i32_1 = arith.constant 0 : i32
    return %c0_i32, %c0_i32_0 : i32, i32
  }
  func.func @transform_3(%arg0: i32, %arg1: i32) -> (i32, i32) {
    %c0_i32 = arith.constant 0 : i32
    %c0_i32_0 = arith.constant 0 : i32
    %c0_i32_1 = arith.constant 0 : i32
    return %c0_i32, %c0_i32_0 : i32, i32
  }
  func.func @transform_4(%arg0: i32, %arg1: i32) -> (i32, i32) {
    %c0_i32 = arith.constant 0 : i32
    %c0_i32_0 = arith.constant 0 : i32
    %c0_i32_1 = arith.constant 0 : i32
    return %c0_i32, %c0_i32_0 : i32, i32
  }
  func.func @transform_5(%arg0: i32, %arg1: i32) -> (i32, i32, i32) {
    %c0_i32 = arith.constant 0 : i32
    %c0_i32_0 = arith.constant 0 : i32
    return %arg0, %arg1, %c0_i32 : i32, i32, i32
  }
}

module attributes {stable_mosaic.version = 11 : i64} {
  func.func @_pw_gate_relu_bn_res_kernel(%arg0: i32, %arg1: i32, %arg2: memref<1x16x64xf32, #tpu.memory_space<vmem>>, %arg3: memref<1x1x64xf32, #tpu.memory_space<vmem>>, %arg4: memref<1x16x64xf32, #tpu.memory_space<vmem>>, %arg5: memref<64x64xbf16, #tpu.memory_space<vmem>>, %arg6: memref<1x64xf32, #tpu.memory_space<vmem>>, %arg7: memref<1x64xf32, #tpu.memory_space<vmem>>, %arg8: memref<1x16x64xf32, #tpu.memory_space<vmem>>) attributes {dimension_semantics = [#tpu.dimension_semantics<parallel>, #tpu.dimension_semantics<parallel>], iteration_bounds = array<i64: 2, 1>, scalar_prefetch = 0 : i64, scratch_operands = 0 : i64, tpu.core_type = #tpu.core_type<tc>, window_params = [{transform_indices = @transform_0, window_bounds = array<i64: 1, 16, 64>}, {transform_indices = @transform_1, window_bounds = array<i64: 1, 1, 64>}, {transform_indices = @transform_2, window_bounds = array<i64: 1, 16, 64>}, {pipeline_mode = #tpu.pipeline_mode<synchronous>, transform_indices = @transform_3, window_bounds = array<i64: 64, 64>}, {pipeline_mode = #tpu.pipeline_mode<synchronous>, transform_indices = @transform_4, window_bounds = array<i64: 1, 64>}, {pipeline_mode = #tpu.pipeline_mode<synchronous>, transform_indices = @transform_5, window_bounds = array<i64: 1, 64>}, {transform_indices = @transform_6, window_bounds = array<i64: 1, 16, 64>}]} {
    %c0 = arith.constant 0 : index
    %c0_0 = arith.constant 0 : index
    %c0_1 = arith.constant 0 : index
    %0 = vector.load %arg2[%c0, %c0_0, %c0_1] : memref<1x16x64xf32, #tpu.memory_space<vmem>>, vector<1x16x64xf32>
    %1 = vector.shape_cast %0 : vector<1x16x64xf32> to vector<16x64xf32>
    %c0_2 = arith.constant 0 : index
    %c0_3 = arith.constant 0 : index
    %c0_4 = arith.constant 0 : index
    %2 = vector.load %arg3[%c0_2, %c0_3, %c0_4] : memref<1x1x64xf32, #tpu.memory_space<vmem>>, vector<1x1x64xf32>
    %3 = vector.shape_cast %2 : vector<1x1x64xf32> to vector<1x64xf32>
    %4 = vector.broadcast %3 : vector<1x64xf32> to vector<16x64xf32>
    %5 = arith.mulf %1, %4 : vector<16x64xf32>
    %6 = arith.truncf %5 : vector<16x64xf32> to vector<16x64xbf16>
    %c0_5 = arith.constant 0 : index
    %c0_6 = arith.constant 0 : index
    %7 = vector.load %arg5[%c0_5, %c0_6] : memref<64x64xbf16, #tpu.memory_space<vmem>>, vector<64x64xbf16>
    %cst = arith.constant dense<0.000000e+00> : vector<16x64xf32>
    %8 = tpu.matmul %6, %7, %cst {dimension_numbers = #tpu.dot_dimension_numbers<[1], [0], [0], [1], [0, 0, 1, 1], [], []>} : vector<16x64xbf16>, vector<64x64xbf16>, vector<16x64xf32> -> vector<16x64xf32>
    %cst_7 = arith.constant 0.000000e+00 : f32
    %9 = vector.broadcast %cst_7 : f32 to vector<16x64xf32>
    %10 = arith.maximumf %8, %9 : vector<16x64xf32>
    %c0_8 = arith.constant 0 : index
    %c0_9 = arith.constant 0 : index
    %11 = vector.load %arg6[%c0_8, %c0_9] : memref<1x64xf32, #tpu.memory_space<vmem>>, vector<1x64xf32>
    %12 = vector.broadcast %11 : vector<1x64xf32> to vector<16x64xf32>
    %13 = arith.mulf %10, %12 : vector<16x64xf32>
    %c0_10 = arith.constant 0 : index
    %c0_11 = arith.constant 0 : index
    %14 = vector.load %arg7[%c0_10, %c0_11] : memref<1x64xf32, #tpu.memory_space<vmem>>, vector<1x64xf32>
    %15 = vector.broadcast %14 : vector<1x64xf32> to vector<16x64xf32>
    %16 = arith.addf %13, %15 : vector<16x64xf32>
    %c0_12 = arith.constant 0 : index
    %c0_13 = arith.constant 0 : index
    %c0_14 = arith.constant 0 : index
    %17 = vector.load %arg4[%c0_12, %c0_13, %c0_14] : memref<1x16x64xf32, #tpu.memory_space<vmem>>, vector<1x16x64xf32>
    %18 = vector.shape_cast %17 : vector<1x16x64xf32> to vector<16x64xf32>
    %19 = arith.addf %16, %18 : vector<16x64xf32>
    %cst_15 = arith.constant 0.707106769 : f32
    %20 = vector.broadcast %cst_15 : f32 to vector<16x64xf32>
    %21 = arith.mulf %19, %20 : vector<16x64xf32>
    %c0_16 = arith.constant 0 : index
    %c0_17 = arith.constant 0 : index
    %c0_18 = arith.constant 0 : index
    %22 = vector.load %arg8[%c0_16, %c0_17, %c0_18] : memref<1x16x64xf32, #tpu.memory_space<vmem>>, vector<1x16x64xf32>
    %23 = vector.shape_cast %22 : vector<1x16x64xf32> to vector<16x64xf32>
    %24 = vector.shape_cast %21 : vector<16x64xf32> to vector<1x16x64xf32>
    tpu.vector_store %arg8[%c0_16, %c0_17, %c0_18], %24 {strides = array<i32>} : memref<1x16x64xf32, #tpu.memory_space<vmem>>, vector<1x16x64xf32>,
    return
  }
  func.func @transform_0(%arg0: i32, %arg1: i32) -> (i32, i32, i32) {
    %c0_i32 = arith.constant 0 : i32
    %c0_i32_0 = arith.constant 0 : i32
    return %arg0, %arg1, %c0_i32 : i32, i32, i32
  }
  func.func @transform_1(%arg0: i32, %arg1: i32) -> (i32, i32, i32) {
    %c0_i32 = arith.constant 0 : i32
    %c0_i32_0 = arith.constant 0 : i32
    %c0_i32_1 = arith.constant 0 : i32
    return %arg0, %c0_i32, %c0_i32_0 : i32, i32, i32
  }
  func.func @transform_2(%arg0: i32, %arg1: i32) -> (i32, i32, i32) {
    %c0_i32 = arith.constant 0 : i32
    %c0_i32_0 = arith.constant 0 : i32
    return %arg0, %arg1, %c0_i32 : i32, i32, i32
  }
  func.func @transform_3(%arg0: i32, %arg1: i32) -> (i32, i32) {
    %c0_i32 = arith.constant 0 : i32
    %c0_i32_0 = arith.constant 0 : i32
    %c0_i32_1 = arith.constant 0 : i32
    return %c0_i32, %c0_i32_0 : i32, i32
  }
  func.func @transform_4(%arg0: i32, %arg1: i32) -> (i32, i32) {
    %c0_i32 = arith.constant 0 : i32
    %c0_i32_0 = arith.constant 0 : i32
    %c0_i32_1 = arith.constant 0 : i32
    return %c0_i32, %c0_i32_0 : i32, i32
  }
  func.func @transform_5(%arg0: i32, %arg1: i32) -> (i32, i32) {
    %c0_i32 = arith.constant 0 : i32
    %c0_i32_0 = arith.constant 0 : i32
    %c0_i32_1 = arith.constant 0 : i32
    return %c0_i32, %c0_i32_0 : i32, i32
  }
  func.func @transform_6(%arg0: i32, %arg1: i32) -> (i32, i32, i32) {
    %c0_i32 = arith.constant 0 : i32
    %c0_i32_0 = arith.constant 0 : i32
    return %arg0, %arg1, %c0_i32 : i32, i32, i32
  }
}

</mosaic_0001>

<llo_original>
// kernel: se_res2block_forward.8
$region0: #{se_res2block_forward.8}
  #allocation0 [shape = 'u32[]', space=smem, size = 0x4, offset = 0x4, fixed_abs, tag = 'smem constant byte address 0x4 - core index']
  #allocation1 [shape = 'u32[144,128]{1,0:T(1,128)}', space=vmem, size = 0x12000, scoped, tag = 'internal scratch']
  %s0 = inlined_call_operand.vmem [shape: f32[2,16,64], index: 0, kind: input, shape index: {}]
  %s1 = inlined_call_operand.vmem [shape: bf16[64,64], index: 1, kind: input, shape index: {}]
  %s2 = inlined_call_operand.vmem [shape: f32[1,64], index: 2, kind: input, shape index: {}]
  %s3 = inlined_call_operand.vmem [shape: f32[1,64], index: 3, kind: input, shape index: {}]
  %s4 = inlined_call_operand.vmem [shape: f32[2,16,64], index: 4, kind: output, shape index: {0}]
  %s5 = inlined_call_operand.vmem [shape: f32[2,1,64], index: 5, kind: output, shape index: {1}]
  %6 = xla_tuple %s4, %s5
  %s7 = sld [smem:[#allocation0]]
  $region57: #{se_res2block_forward.8} parent=0
    _
  %s9 = ssub.s32 1, %s7
  %s10 = scalar_select 0, %s9, %s7
  loop: start=0, step=1, limit=4
  $region2: #{se_res2block_forward.8} parent=0 // loop_pre_header
    _
  $region3: #{se_res2block_forward.8} parent=0 // loop_header
    %s12 = sphi 0, %s16
    %p13 = scmp.ge.s32.totalorder %s12, 4
    %s22 = sphi 0, %s24
    %s25 = sphi 0, %s22
    %s26 = sphi 0, %s25
    %s42 = sphi 0, %s26
    %s46 = sphi 0, %s46
    %s48 = sphi 0, %s46
    %s49 = sphi 0, %s48
    %s63 = sphi 0, %s49
    %s67 = sphi 0, %s67
    %s69 = sphi 0, %s67
    %s70 = sphi 0, %s69
    %s84 = sphi 0, %s70
    %s88 = sphi 0, %s88
    %s90 = sphi 0, %s88
    %s91 = sphi 0, %s90
    %s105 = sphi 0, %s91
    %s111 = sphi 0, %s113
    %s114 = sphi 0, %s111
    %s115 = sphi 0, %s114
    %s131 = sphi 0, %s115
    %s137 = sphi 0, %s139
    %s140 = sphi 0, %s137
    %s141 = sphi 0, %s140
    %s157 = sphi 0, %s141
  $region4: #{se_res2block_forward.8} parent=0 // loop_header_branch
    %15 = sbr.rel (%p13) target = $region8
  $region5: #{se_res2block_forward.8} parent=0 // loop_body
    %s17 = ssub.s32 %s12, 1
    %s18 = ssub.s32 %s12, 2
    %s19 = sadd.s32 %s12, 1
    %s20 = ssub.s32 %s12, %s19
    %p21 = scmp.eq.s32.totalorder %s20, 0
    %s23 = sadd.s32 %s22, 1
    %s24 = scalar_select %p21, %s22, %s23
    %p27 = pneg %p21
    %p28 = scmp.eq.s32.totalorder %s12, 1
    %p29 = por %p27, %p28
    %p30 = scmp.ne.s32.totalorder %s22, %s25
    %p31 = scmp.eq.s32.totalorder %s12, 0
    %p32 = por %p30, %p31
    %p33 = scmp.ne.s32.totalorder %s22, %s25
    %p34 = scmp.eq.s32.totalorder %s17, 1
    %p35 = por %p33, %p34
    %p36 = scmp.ne.s32.totalorder %s25, %s26
    %p37 = scmp.eq.s32.totalorder %s17, 0
    %p38 = por %p36, %p37
    %p39 = scmp.ne.s32.totalorder %s25, %s26
    %p40 = scmp.eq.s32.totalorder %s18, 1
    %p41 = por %p39, %p40
    %p43 = scmp.ne.s32.totalorder %s26, %s42
    %p44 = scmp.eq.s32.totalorder %s18, 0
    %p45 = por %p43, %p44
    %s47 = sadd.s32 %s46, 1
    %p50 = scmp.eq.s32.totalorder %s12, 1
    %p51 = scmp.ne.s32.totalorder %s46, %s48
    %p52 = scmp.eq.s32.totalorder %s12, 0
    %p53 = por %p51, %p52
    %p54 = scmp.ne.s32.totalorder %s46, %s48
    %p55 = scmp.eq.s32.totalorder %s17, 1
    %p56 = por %p54, %p55
    %p57 = scmp.ne.s32.totalorder %s48, %s49
    %p58 = scmp.eq.s32.totalorder %s17, 0
    %p59 = por %p57, %p58
    %p60 = scmp.ne.s32.totalorder %s48, %s49
    %p61 = scmp.eq.s32.totalorder %s18, 1
    %p62 = por %p60, %p61
    %p64 = scmp.ne.s32.totalorder %s49, %s63
    %p65 = scmp.eq.s32.totalorder %s18, 0
    %p66 = por %p64, %p65
    %s68 = sadd.s32 %s67, 1
    %p71 = scmp.eq.s32.totalorder %s12, 1
    %p72 = scmp.ne.s32.totalorder %s67, %s69
    %p73 = scmp.eq.s32.totalorder %s12, 0
    %p74 = por %p72, %p73
    %p75 = scmp.ne.s32.totalorder %s67, %s69
    %p76 = scmp.eq.s32.totalorder %s17, 1
    %p77 = por %p75, %p76
    %p78 = scmp.ne.s32.totalorder %s69, %s70
    %p79 = scmp.eq.s32.totalorder %s17, 0
    %p80 = por %p78, %p79
    %p81 = scmp.ne.s32.totalorder %s69, %s70
    %p82 = scmp.eq.s32.totalorder %s18, 1
    %p83 = por %p81, %p82
    %p85 = scmp.ne.s32.totalorder %s70, %s84
    %p86 = scmp.eq.s32.totalorder %s18, 0
    %p87 = por %p85, %p86
    %s89 = sadd.s32 %s88, 1
    %p92 = scmp.eq.s32.totalorder %s12, 1
    %p93 = scmp.ne.s32.totalorder %s88, %s90
    %p94 = scmp.eq.s32.totalorder %s12, 0
    %p95 = por %p93, %p94
    %p96 = scmp.ne.s32.totalorder %s88, %s90
    %p97 = scmp.eq.s32.totalorder %s17, 1
    %p98 = por %p96, %p97
    %p99 = scmp.ne.s32.totalorder %s90, %s91
    %p100 = scmp.eq.s32.totalorder %s17, 0
    %p101 = por %p99, %p100
    %p102 = scmp.ne.s32.totalorder %s90, %s91
    %p103 = scmp.eq.s32.totalorder %s18, 1
    %p104 = por %p102, %p103
    %p106 = scmp.ne.s32.totalorder %s91, %s105
    %p107 = scmp.eq.s32.totalorder %s18, 0
    %p108 = por %p106, %p107
    %s109 = ssub.s32 %s12, %s19
    %p110 = scmp.eq.s32.totalorder %s109, 0
    %s112 = sadd.s32 %s111, 1
    %s113 = scalar_select %p110, %s111, %s112
    %p116 = pneg %p110
    %p117 = scmp.eq.s32.totalorder %s12, 1
    %p118 = por %p116, %p117
    %p119 = scmp.ne.s32.totalorder %s111, %s114
    %p120 = scmp.eq.s32.totalorder %s12, 0
    %p121 = por %p119, %p120
    %p122 = scmp.ne.s32.totalorder %s111, %s114
    %p123 = scmp.eq.s32.totalorder %s17, 1
    %p124 = por %p122, %p123
    %p125 = scmp.ne.s32.totalorder %s114, %s115
    %p126 = scmp.eq.s32.totalorder %s17, 0
    %p127 = por %p125, %p126
    %p128 = scmp.ne.s32.totalorder %s114, %s115
    %p129 = scmp.eq.s32.totalorder %s18, 1
    %p130 = por %p128, %p129
    %p132 = scmp.ne.s32.totalorder %s115, %s131
    %p133 = scmp.eq.s32.totalorder %s18, 0
    %p134 = por %p132, %p133
    %s135 = ssub.s32 %s12, %s19
    %p136 = scmp.eq.s32.totalorder %s135, 0
    %s138 = sadd.s32 %s137, 1
    %s139 = scalar_select %p136, %s137, %s138
    %p142 = pneg %p136
    %p143 = scmp.eq.s32.totalorder %s12, 1
    %p144 = por %p142, %p143
    %p145 = scmp.ne.s32.totalorder %s137, %s140
    %p146 = scmp.eq.s32.totalorder %s12, 0
    %p147 = por %p145, %p146
    %p148 = scmp.ne.s32.totalorder %s137, %s140
    %p149 = scmp.eq.s32.totalorder %s17, 1
    %p150 = por %p148, %p149
    %p151 = scmp.ne.s32.totalorder %s140, %s141
    %p152 = scmp.eq.s32.totalorder %s17, 0
    %p153 = por %p151, %p152
    %p154 = scmp.ne.s32.totalorder %s140, %s141
    %p155 = scmp.eq.s32.totalorder %s18, 1
    %p156 = por %p154, %p155
    %p158 = scmp.ne.s32.totalorder %s141, %s157
    %p159 = scmp.eq.s32.totalorder %s18, 0
    %p160 = por %p158, %p159
    %p161 = scmp.le.s32.totalorder 1, %s12
    %p162 = scmp.lt.s32.totalorder %s12, 3
    %p163 = pnand %p161, %p162
    %p164 = pneg %p163
    // Predicated region
    $region9: #{se_res2block_forward.8} parent=5 // pred_check
      _
    $region10: #{se_res2block_forward.8} parent=5 // pred_check_branch
      %166 = sbr.rel (%p163) target = $region12
    $region11: #{se_res2block_forward.8} parent=5 // pred_region
      %s167 = ssub.s32 %s12, 1
      // Predicated region
      $region13: #{se_res2block_forward.8} parent=11 // pred_check
        %p168 = pneg %p59
      $region14: #{se_res2block_forward.8} parent=11 // pred_check_branch
        %170 = sbr.rel (%p168) target = $region16
      $region15: #{se_res2block_forward.8} parent=11 // pred_region
        _
      $region16: #{se_res2block_forward.8} parent=11 // pred_fallthru
        _
      // Predicated region
      $region17: #{se_res2block_forward.8} parent=11 // pred_check
        %p171 = pneg %p80
      $region18: #{se_res2block_forward.8} parent=11 // pred_check_branch
        %173 = sbr.rel (%p171) target = $region20
      $region19: #{se_res2block_forward.8} parent=11 // pred_region
        _
      $region20: #{se_res2block_forward.8} parent=11 // pred_fallthru
        _
      // Predicated region
      $region21: #{se_res2block_forward.8} parent=11 // pred_check
        %p174 = pneg %p101
      $region22: #{se_res2block_forward.8} parent=11 // pred_check_branch
        %176 = sbr.rel (%p174) target = $region24
      $region23: #{se_res2block_forward.8} parent=11 // pred_region
        _
      $region24: #{se_res2block_forward.8} parent=11 // pred_fallthru
        _
    $region12: #{se_res2block_forward.8} parent=5 // pred_fallthru
      _
    %p177 = scmp.lt.s32.totalorder %s12, 2
    // Predicated region
    $region25: #{se_res2block_forward.8} parent=5 // pred_check
      %p178 = pneg %p177
    $region26: #{se_res2block_forward.8} parent=5 // pred_check_branch
      %180 = sbr.rel (%p178) target = $region28
    $region27: #{se_res2block_forward.8} parent=5 // pred_region
      // Predicated region
      $region29: #{se_res2block_forward.8} parent=27 // pred_check
        %p181 = pneg %p32
      $region30: #{se_res2block_forward.8} parent=27 // pred_check_branch
        %183 = sbr.rel (%p181) target = $region32
      $region31: #{se_res2block_forward.8} parent=27 // pred_region
        %p184 = scmp.lt.s32.totalorder %s12, 1
        %s185 = scalar_select %p184, %s12, 1
        %s186 = smul.addr %s185, 2
        %s187 = smul.addr %s186, 8
        %s188 = scalar_lea.vmem %s0, %s187
      $region32: #{se_res2block_forward.8} parent=27 // pred_fallthru
        _
    $region28: #{se_res2block_forward.8} parent=5 // pred_fallthru
      _
    %p189 = scmp.le.s32.totalorder 1, %s12
    %p190 = scmp.lt.s32.totalorder %s12, 3
    %p191 = pnand %p189, %p190
    %p192 = pneg %p191
    // Predicated region
    $region33: #{se_res2block_forward.8} parent=5 // pred_check
      _
    $region34: #{se_res2block_forward.8} parent=5 // pred_check_branch
      %194 = sbr.rel (%p191) target = $region36
    $region35: #{se_res2block_forward.8} parent=5 // pred_region
      %s195 = ssub.s32 %s12, 1
      %p196 = scmp.lt.s32.totalorder %s17, 1
      %s197 = scalar_select %p196, %s17, 1
      %s198 = smul.addr %s197, 2
      %s199 = smul.addr %s198, 8
      %s200 = scalar_lea.vmem %s0, %s199
      %p201 = pneg %p38
      %p202 = pneg %p35
      %p203 = pneg %p59
      %p204 = pneg %p56
      %p205 = pneg %p80
      %p206 = pneg %p77
      %p207 = pneg %p101
      %p208 = pneg %p98
      %p209 = pneg %p127
      %p210 = pneg %p124
      %p211 = scmp.lt.s32.totalorder %s17, 1
      %s212 = scalar_select %p211, %s17, 1
      %s213 = smul.addr %s212, 2
      %s214 = smul.addr %s213, 8
      %s215 = scalar_lea.vmem %s4, %s214
      %p216 = pneg %p153
      %p217 = pneg %p150
      %p218 = scmp.lt.s32.totalorder %s17, 1
      %s219 = scalar_select %p218, %s17, 1
      %s220 = scalar_lea.vmem %s5, %s219
      %p221 = scmp.lt.s32.totalorder %s17, 1
      %s222 = scalar_select %p221, %s17, 1
      %s223 = smul.addr %s222, 2
      %s224 = smul.addr %s223, 8
      %s225 = scalar_lea.vmem %s0, %s224
      %p226 = scmp.lt.s32.totalorder %s17, 1
      %s227 = scalar_select %p226, %s17, 1
      %s228 = smul.addr %s227, 2
      %s229 = smul.addr %s228, 8
      %s230 = scalar_lea.vmem %s4, %s229
      %p231 = scmp.lt.s32.totalorder %s17, 1
      %s232 = scalar_select %p231, %s17, 1
      %s233 = scalar_lea.vmem %s5, %s232
      %v235 = vld [vmem:[%s225] sm:$0xff]
      %v236 = vld [vmem:[%s225 + $0x8] sm:$0xff]
      %v237 = vpack.c.bf16 %v236, %v235
      %v238 = vld [vmem:[%s1] sm:$0xf]
      %v239 = vld [vmem:[%s1 + $0x4] sm:$0xf]
      %v240 = vld [vmem:[%s1 + $0x8] sm:$0xf]
      %v241 = vld [vmem:[%s1 + $0xc] sm:$0xf]
      %v242 = vld [vmem:[%s1 + $0x10] sm:$0xf]
      %v243 = vld [vmem:[%s1 + $0x14] sm:$0xf]
      %v244 = vld [vmem:[%s1 + $0x18] sm:$0xf]
      %v245 = vld [vmem:[%s1 + $0x1c] sm:$0xf]
      %v254 = vunpack.c.l.b16 %v238
      %v255 = vunpack.c.l.b16 %v239
      %v256 = vunpack.c.l.b16 %v240
      %v257 = vunpack.c.l.b16 %v241
      %v258 = vunpack.c.l.b16 %v242
      %v259 = vunpack.c.l.b16 %v243
      %v260 = vunpack.c.l.b16 %v244
      %v261 = vunpack.c.l.b16 %v245
      %v262 = vpack.c.b16 %v255, %v254
      %v263 = vpack.c.b16 %v257, %v256
      %v264 = vpack.c.b16 %v259, %v258
      %v265 = vpack.c.b16 %v261, %v260
      %vm270 = vcmask 523264
      %v272 = vsel %vm270, %v237, 0
      %274 = vmatprep.subr.bf16.mxu0 0
      %275 = vmatpush1.bf16.msra.mxu0 %v262
      %276 = vmatprep.subr.bf16.mxu0 0
      %277 = vmatpush1.bf16.msra.mxu0 %v263
      %278 = vmatprep.subr.bf16.mxu0 0
      %279 = vmatpush1.bf16.msra.mxu0 %v264
      %280 = vmatprep.subr.bf16.mxu0 0
      %281 = vmatpush1.bf16.msra.mxu0 %v265
      %282 = vmatprep.subr.bf16.mxu0 0
      %283 = vmatpush1.bf16.msra.mxu0 0
      %284 = vmatprep.subr.bf16.mxu0 0
      %285 = vmatpush1.bf16.msra.mxu0 0
      %286 = vmatprep.subr.bf16.mxu0 0
      %287 = vmatpush1.bf16.msra.mxu0 0
      %288 = vmatprep.subr.bf16.mxu0 0
      %289 = vmatpush1.bf16.msra.mxu0 0
      %290 = vmatprep.subr.bf16.mxu0 0
      %291 = vmatpush1.bf16.msra.mxu0 0
      %292 = vmatprep.subr.bf16.mxu0 0
      %293 = vmatpush1.bf16.msra.mxu0 0
      %294 = vmatprep.subr.bf16.mxu0 0
      %295 = vmatpush1.bf16.msra.mxu0 0
      %296 = vmatprep.subr.bf16.mxu0 0
      %297 = vmatpush1.bf16.msra.mxu0 0
      %298 = vmatprep.subr.bf16.mxu0 0
      %299 = vmatpush1.bf16.msra.mxu0 0
      %300 = vmatprep.subr.bf16.mxu0 0
      %301 = vmatpush1.bf16.msra.mxu0 0
      %302 = vmatprep.subr.bf16.mxu0 0
      %303 = vmatpush1.bf16.msra.mxu0 0
      %304 = vmatprep.subr.bf16.mxu0 0
      %305 = vmatpush1.bf16.msra.mxu0 0
      %306 = vmatprep.mubr.bf16.mxu0 0
      %307 = vmatmul.mubr.bf16.gmra.mrb[0].mxu0 %v272
      %v308 = vpop.f32.mrb[0].mxu0
      %v309 = vadd.f32 0.0, %v308
      %v310 = vpop.f32.mrb[0].mxu0
      %v311 = vpop.f32.mrb[0].mxu0
      %v312 = vadd.f32 0.0, %v311
      %v313 = vpop.f32.mrb[0].mxu0
      %314 = vdwg.mxu0
      %v315 = vmax.f32 %v309, 0.0
      %v316 = vmax.f32 %v312, 0.0
      %v317 = vld [vmem:[%s2] sm:$0x1]
      %v319 = vlaneseq
      %v320 = vshrl.u32 %v319, 7
      %v321 = vsub.s32 0, %v320
      %v322 = vrot.slane %v317, %v321
      %v324 = vmul.f32 %v315, %v322
      %v325 = vmul.f32 %v316, %v322
      %v326 = vld [vmem:[%s3] sm:$0x1]
      %v328 = vlaneseq
      %v329 = vshrl.u32 %v328, 7
      %v330 = vsub.s32 0, %v329
      %v331 = vrot.slane %v326, %v330
      %v333 = vadd.f32 %v324, %v331
      %v334 = vadd.f32 %v325, %v331
      %335 = vst.msk [vmem:[%s230] sm:$0xff] %vm270, %v333
      %336 = vst.msk [vmem:[%s230 + $0x8] sm:$0xff] %vm270, %v334
      %v337 = vsel %vm270, %v333, 0.0
      %v338 = vsel %vm270, %v334, 0.0
      %v339 = vadd.f32 %v337, %v338
      %v340 = vrot.slane %v339, 4
      %v341 = vadd.f32 %v339, %v340
      %v342 = vrot.slane %v341, 2
      %v343 = vadd.f32 %v341, %v342
      %v344 = vrot.slane %v343, 1
      %v345 = vadd.f32 %v343, %v344
      %v346 = vrcp.pop 16.0
      %v347 = vmul.f32 %v345, %v346
      %vm348 = vcmask 516096
      %349 = vst.msk [vmem:[%s233] sm:$0x1] %vm348, %v347
      %p350 = scmp.lt.s32.totalorder %s17, 1
      %s351 = scalar_select %p350, %s17, 1
      %s352 = smul.addr %s351, 2
      %s353 = smul.addr %s352, 8
      %s354 = scalar_lea.vmem %s4, %s353
      %p355 = scmp.lt.s32.totalorder %s17, 1
      %s356 = scalar_select %p355, %s17, 1
      %s357 = scalar_lea.vmem %s5, %s356
      // Predicated region
      $region37: #{se_res2block_forward.8} parent=35 // pred_check
        %p358 = pneg %p124
      $region38: #{se_res2block_forward.8} parent=35 // pred_check_branch
        %360 = sbr.rel (%p358) target = $region40
      $region39: #{se_res2block_forward.8} parent=35 // pred_region
        _
      $region40: #{se_res2block_forward.8} parent=35 // pred_fallthru
        _
      // Predicated region
      $region41: #{se_res2block_forward.8} parent=35 // pred_check
        %p361 = pneg %p150
      $region42: #{se_res2block_forward.8} parent=35 // pred_check_branch
        %363 = sbr.rel (%p361) target = $region44
      $region43: #{se_res2block_forward.8} parent=35 // pred_region
        _
      $region44: #{se_res2block_forward.8} parent=35 // pred_fallthru
        _
    $region36: #{se_res2block_forward.8} parent=5 // pred_fallthru
      _
    %p364 = scmp.le.s32.totalorder 2, %s12
    // Predicated region
    $region45: #{se_res2block_forward.8} parent=5 // pred_check
      %p365 = pneg %p364
    $region46: #{se_res2block_forward.8} parent=5 // pred_check_branch
      %367 = sbr.rel (%p365) target = $region48
    $region47: #{se_res2block_forward.8} parent=5 // pred_region
      %s368 = ssub.s32 %s12, 2
      // Predicated region
      $region49: #{se_res2block_forward.8} parent=47 // pred_check
        %p369 = pneg %p130
      $region50: #{se_res2block_forward.8} parent=47 // pred_check_branch
        %371 = sbr.rel (%p369) target = $region52
      $region51: #{se_res2block_forward.8} parent=47 // pred_region
        %p372 = scmp.lt.s32.totalorder %s18, 1
        %s373 = scalar_select %p372, %s18, 1
        %s374 = smul.addr %s373, 2
        %s375 = smul.addr %s374, 8
        %s376 = scalar_lea.vmem %s4, %s375
      $region52: #{se_res2block_forward.8} parent=47 // pred_fallthru
        _
      // Predicated region
      $region53: #{se_res2block_forward.8} parent=47 // pred_check
        %p377 = pneg %p156
      $region54: #{se_res2block_forward.8} parent=47 // pred_check_branch
        %379 = sbr.rel (%p377) target = $region56
      $region55: #{se_res2block_forward.8} parent=47 // pred_region
        %p380 = scmp.lt.s32.totalorder %s18, 1
        %s381 = scalar_select %p380, %s18, 1
        %s382 = scalar_lea.vmem %s5, %s381
      $region56: #{se_res2block_forward.8} parent=47 // pred_fallthru
        _
    $region48: #{se_res2block_forward.8} parent=5 // pred_fallthru
      _
  $region6: #{se_res2block_forward.8} parent=0 // loop_footer
    %s16 = sadd.s32 1, %s12
  $region7: #{se_res2block_forward.8} parent=0 // loop_footer_branch
    %11 = sbr.rel target = $region3
  $region8: #{se_res2block_forward.8} parent=0 // loop_exit
    _

// kernel: se_res2block_forward.6
$region0: #{se_res2block_forward.6}
  #allocation0 [shape = 'u32[]', space=smem, size = 0x4, offset = 0x4, fixed_abs, tag = 'smem constant byte address 0x4 - core index']
  #allocation1 [shape = 'u32[144,128]{1,0:T(1,128)}', space=vmem, size = 0x12000, scoped, tag = 'internal scratch']
  %s0 = inlined_call_operand.vmem [shape: f32[2,16,64], index: 0, kind: input, shape index: {}]
  %s1 = inlined_call_operand.vmem [shape: bf16[64,64], index: 1, kind: input, shape index: {}]
  %s2 = inlined_call_operand.vmem [shape: f32[1,64], index: 2, kind: input, shape index: {}]
  %s3 = inlined_call_operand.vmem [shape: f32[1,64], index: 3, kind: input, shape index: {}]
  %s4 = inlined_call_operand.vmem [shape: f32[2,16,64], index: 4, kind: output, shape index: {}]
  %s5 = sld [smem:[#allocation0]]
  $region49: #{se_res2block_forward.6} parent=0
    _
  %s7 = ssub.s32 1, %s5
  %s8 = scalar_select 0, %s7, %s5
  loop: start=0, step=1, limit=4
  $region2: #{se_res2block_forward.6} parent=0 // loop_pre_header
    _
  $region3: #{se_res2block_forward.6} parent=0 // loop_header
    %s10 = sphi 0, %s14
    %p11 = scmp.ge.s32.totalorder %s10, 4
    %s17 = sphi 0, %s29
    %s18 = sphi 0, %s25
    %s19 = sphi 0, %s17
    %s20 = sphi 0, %s18
    %s21 = sphi 0, %s19
    %s22 = sphi 0, %s20
    %s34 = sphi 0, %s36
    %s37 = sphi 0, %s34
    %s38 = sphi 0, %s37
    %s54 = sphi 0, %s38
    %s58 = sphi 0, %s58
    %s60 = sphi 0, %s58
    %s61 = sphi 0, %s60
    %s75 = sphi 0, %s61
    %s79 = sphi 0, %s79
    %s81 = sphi 0, %s79
    %s82 = sphi 0, %s81
    %s96 = sphi 0, %s82
    %s100 = sphi 0, %s100
    %s102 = sphi 0, %s100
    %s103 = sphi 0, %s102
    %s117 = sphi 0, %s103
    %s125 = sphi 0, %s127
    %s128 = sphi 0, %s125
    %s129 = sphi 0, %s128
    %s145 = sphi 0, %s129
  $region4: #{se_res2block_forward.6} parent=0 // loop_header_branch
    %13 = sbr.rel (%p11) target = $region8
  $region5: #{se_res2block_forward.6} parent=0 // loop_body
    %s15 = ssub.s32 %s10, 1
    %s16 = ssub.s32 %s10, 2
    %s23 = sadd.s32 1, %s18
    %p24 = scmp.ge.s32.totalorder %s23, 1
    %s25 = scalar_select %p24, 0, %s23
    %s26 = sadd.s32 1, %s17
    %s27 = scalar_select %p24, %s26, %s17
    %p28 = scmp.ge.s32.totalorder %s27, 2
    %s29 = scalar_select %p28, 0, %s27
    %s30 = ssub.s32 %s17, %s29
    %s31 = ssub.s32 %s18, %s25
    %s32 = sor.u32 %s30, %s31
    %p33 = scmp.eq.s32.totalorder %s32, 0
    %s35 = sadd.s32 %s34, 1
    %s36 = scalar_select %p33, %s34, %s35
    %p39 = pneg %p33
    %p40 = scmp.eq.s32.totalorder %s10, 1
    %p41 = por %p39, %p40
    %p42 = scmp.ne.s32.totalorder %s34, %s37
    %p43 = scmp.eq.s32.totalorder %s10, 0
    %p44 = por %p42, %p43
    %p45 = scmp.ne.s32.totalorder %s34, %s37
    %p46 = scmp.eq.s32.totalorder %s15, 1
    %p47 = por %p45, %p46
    %p48 = scmp.ne.s32.totalorder %s37, %s38
    %p49 = scmp.eq.s32.totalorder %s15, 0
    %p50 = por %p48, %p49
    %p51 = scmp.ne.s32.totalorder %s37, %s38
    %p52 = scmp.eq.s32.totalorder %s16, 1
    %p53 = por %p51, %p52
    %p55 = scmp.ne.s32.totalorder %s38, %s54
    %p56 = scmp.eq.s32.totalorder %s16, 0
    %p57 = por %p55, %p56
    %s59 = sadd.s32 %s58, 1
    %p62 = scmp.eq.s32.totalorder %s10, 1
    %p63 = scmp.ne.s32.totalorder %s58, %s60
    %p64 = scmp.eq.s32.totalorder %s10, 0
    %p65 = por %p63, %p64
    %p66 = scmp.ne.s32.totalorder %s58, %s60
    %p67 = scmp.eq.s32.totalorder %s15, 1
    %p68 = por %p66, %p67
    %p69 = scmp.ne.s32.totalorder %s60, %s61
    %p70 = scmp.eq.s32.totalorder %s15, 0
    %p71 = por %p69, %p70
    %p72 = scmp.ne.s32.totalorder %s60, %s61
    %p73 = scmp.eq.s32.totalorder %s16, 1
    %p74 = por %p72, %p73
    %p76 = scmp.ne.s32.totalorder %s61, %s75
    %p77 = scmp.eq.s32.totalorder %s16, 0
    %p78 = por %p76, %p77
    %s80 = sadd.s32 %s79, 1
    %p83 = scmp.eq.s32.totalorder %s10, 1
    %p84 = scmp.ne.s32.totalorder %s79, %s81
    %p85 = scmp.eq.s32.totalorder %s10, 0
    %p86 = por %p84, %p85
    %p87 = scmp.ne.s32.totalorder %s79, %s81
    %p88 = scmp.eq.s32.totalorder %s15, 1
    %p89 = por %p87, %p88
    %p90 = scmp.ne.s32.totalorder %s81, %s82
    %p91 = scmp.eq.s32.totalorder %s15, 0
    %p92 = por %p90, %p91
    %p93 = scmp.ne.s32.totalorder %s81, %s82
    %p94 = scmp.eq.s32.totalorder %s16, 1
    %p95 = por %p93, %p94
    %p97 = scmp.ne.s32.totalorder %s82, %s96
    %p98 = scmp.eq.s32.totalorder %s16, 0
    %p99 = por %p97, %p98
    %s101 = sadd.s32 %s100, 1
    %p104 = scmp.eq.s32.totalorder %s10, 1
    %p105 = scmp.ne.s32.totalorder %s100, %s102
    %p106 = scmp.eq.s32.totalorder %s10, 0
    %p107 = por %p105, %p106
    %p108 = scmp.ne.s32.totalorder %s100, %s102
    %p109 = scmp.eq.s32.totalorder %s15, 1
    %p110 = por %p108, %p109
    %p111 = scmp.ne.s32.totalorder %s102, %s103
    %p112 = scmp.eq.s32.totalorder %s15, 0
    %p113 = por %p111, %p112
    %p114 = scmp.ne.s32.totalorder %s102, %s103
    %p115 = scmp.eq.s32.totalorder %s16, 1
    %p116 = por %p114, %p115
    %p118 = scmp.ne.s32.totalorder %s103, %s117
    %p119 = scmp.eq.s32.totalorder %s16, 0
    %p120 = por %p118, %p119
    %s121 = ssub.s32 %s17, %s29
    %s122 = ssub.s32 %s18, %s25
    %s123 = sor.u32 %s121, %s122
    %p124 = scmp.eq.s32.totalorder %s123, 0
    %s126 = sadd.s32 %s125, 1
    %s127 = scalar_select %p124, %s125, %s126
    %p130 = pneg %p124
    %p131 = scmp.eq.s32.totalorder %s10, 1
    %p132 = por %p130, %p131
    %p133 = scmp.ne.s32.totalorder %s125, %s128
    %p134 = scmp.eq.s32.totalorder %s10, 0
    %p135 = por %p133, %p134
    %p136 = scmp.ne.s32.totalorder %s125, %s128
    %p137 = scmp.eq.s32.totalorder %s15, 1
    %p138 = por %p136, %p137
    %p139 = scmp.ne.s32.totalorder %s128, %s129
    %p140 = scmp.eq.s32.totalorder %s15, 0
    %p141 = por %p139, %p140
    %p142 = scmp.ne.s32.totalorder %s128, %s129
    %p143 = scmp.eq.s32.totalorder %s16, 1
    %p144 = por %p142, %p143
    %p146 = scmp.ne.s32.totalorder %s129, %s145
    %p147 = scmp.eq.s32.totalorder %s16, 0
    %p148 = por %p146, %p147
    %p149 = scmp.le.s32.totalorder 1, %s10
    %p150 = scmp.lt.s32.totalorder %s10, 3
    %p151 = pnand %p149, %p150
    %p152 = pneg %p151
    // Predicated region
    $region9: #{se_res2block_forward.6} parent=5 // pred_check
      _
    $region10: #{se_res2block_forward.6} parent=5 // pred_check_branch
      %154 = sbr.rel (%p151) target = $region12
    $region11: #{se_res2block_forward.6} parent=5 // pred_region
      %s155 = ssub.s32 %s10, 1
      // Predicated region
      $region13: #{se_res2block_forward.6} parent=11 // pred_check
        %p156 = pneg %p71
      $region14: #{se_res2block_forward.6} parent=11 // pred_check_branch
        %158 = sbr.rel (%p156) target = $region16
      $region15: #{se_res2block_forward.6} parent=11 // pred_region
        _
      $region16: #{se_res2block_forward.6} parent=11 // pred_fallthru
        _
      // Predicated region
      $region17: #{se_res2block_forward.6} parent=11 // pred_check
        %p159 = pneg %p92
      $region18: #{se_res2block_forward.6} parent=11 // pred_check_branch
        %161 = sbr.rel (%p159) target = $region20
      $region19: #{se_res2block_forward.6} parent=11 // pred_region
        _
      $region20: #{se_res2block_forward.6} parent=11 // pred_fallthru
        _
      // Predicated region
      $region21: #{se_res2block_forward.6} parent=11 // pred_check
        %p162 = pneg %p113
      $region22: #{se_res2block_forward.6} parent=11 // pred_check_branch
        %164 = sbr.rel (%p162) target = $region24
      $region23: #{se_res2block_forward.6} parent=11 // pred_region
        _
      $region24: #{se_res2block_forward.6} parent=11 // pred_fallthru
        _
    $region12: #{se_res2block_forward.6} parent=5 // pred_fallthru
      _
    %p165 = scmp.lt.s32.totalorder %s10, 2
    // Predicated region
    $region25: #{se_res2block_forward.6} parent=5 // pred_check
      %p166 = pneg %p165
    $region26: #{se_res2block_forward.6} parent=5 // pred_check_branch
      %168 = sbr.rel (%p166) target = $region28
    $region27: #{se_res2block_forward.6} parent=5 // pred_region
      // Predicated region
      $region29: #{se_res2block_forward.6} parent=27 // pred_check
        %p169 = pneg %p44
      $region30: #{se_res2block_forward.6} parent=27 // pred_check_branch
        %171 = sbr.rel (%p169) target = $region32
      $region31: #{se_res2block_forward.6} parent=27 // pred_region
        %s172 = smul.u32 2, %s18
        %p173 = scmp.lt.s32.totalorder %s17, 1
        %s174 = scalar_select %p173, %s17, 1
        %p175 = scmp.lt.s32.totalorder %s172, 1
        %s176 = scalar_select %p175, %s172, 1
        %s177 = smul.addr %s174, 2
        %s178 = sadd.s32 %s176, %s177
        %s179 = smul.addr %s178, 8
        %s180 = scalar_lea.vmem %s0, %s179
        %s181 = smul.u32 2, %s18
      $region32: #{se_res2block_forward.6} parent=27 // pred_fallthru
        _
    $region28: #{se_res2block_forward.6} parent=5 // pred_fallthru
      _
    %p182 = scmp.le.s32.totalorder 1, %s10
    %p183 = scmp.lt.s32.totalorder %s10, 3
    %p184 = pnand %p182, %p183
    %p185 = pneg %p184
    // Predicated region
    $region33: #{se_res2block_forward.6} parent=5 // pred_check
      _
    $region34: #{se_res2block_forward.6} parent=5 // pred_check_branch
      %187 = sbr.rel (%p184) target = $region36
    $region35: #{se_res2block_forward.6} parent=5 // pred_region
      %s188 = ssub.s32 %s10, 1
      %s189 = smul.u32 2, %s20
      %p190 = scmp.lt.s32.totalorder %s19, 1
      %s191 = scalar_select %p190, %s19, 1
      %p192 = scmp.lt.s32.totalorder %s189, 1
      %s193 = scalar_select %p192, %s189, 1
      %s194 = smul.addr %s191, 2
      %s195 = sadd.s32 %s193, %s194
      %s196 = smul.addr %s195, 8
      %s197 = scalar_lea.vmem %s0, %s196
      %p198 = pneg %p50
      %p199 = pneg %p47
      %p200 = pneg %p71
      %p201 = pneg %p68
      %p202 = pneg %p92
      %p203 = pneg %p89
      %p204 = pneg %p113
      %p205 = pneg %p110
      %p206 = pneg %p141
      %p207 = pneg %p138
      %s208 = smul.u32 2, %s20
      %p209 = scmp.lt.s32.totalorder %s19, 1
      %s210 = scalar_select %p209, %s19, 1
      %p211 = scmp.lt.s32.totalorder %s208, 1
      %s212 = scalar_select %p211, %s208, 1
      %s213 = smul.addr %s210, 2
      %s214 = sadd.s32 %s212, %s213
      %s215 = smul.addr %s214, 8
      %s216 = scalar_lea.vmem %s4, %s215
      %s217 = smul.u32 2, %s20
      %p218 = scmp.lt.s32.totalorder %s19, 1
      %s219 = scalar_select %p218, %s19, 1
      %p220 = scmp.lt.s32.totalorder %s217, 1
      %s221 = scalar_select %p220, %s217, 1
      %s222 = smul.addr %s219, 2
      %s223 = sadd.s32 %s221, %s222
      %s224 = smul.addr %s223, 8
      %s225 = scalar_lea.vmem %s0, %s224
      %s226 = smul.u32 2, %s20
      %s227 = smul.u32 2, %s20
      %p228 = scmp.lt.s32.totalorder %s19, 1
      %s229 = scalar_select %p228, %s19, 1
      %p230 = scmp.lt.s32.totalorder %s227, 1
      %s231 = scalar_select %p230, %s227, 1
      %s232 = smul.addr %s229, 2
      %s233 = sadd.s32 %s231, %s232
      %s234 = smul.addr %s233, 8
      %s235 = scalar_lea.vmem %s4, %s234
      %s236 = smul.u32 2, %s20
      %v238 = vld [vmem:[%s225] sm:$0xff]
      %v239 = vld [vmem:[%s225 + $0x8] sm:$0xff]
      %v240 = vpack.c.bf16 %v239, %v238
      %v241 = vld [vmem:[%s1] sm:$0xf]
      %v242 = vld [vmem:[%s1 + $0x4] sm:$0xf]
      %v243 = vld [vmem:[%s1 + $0x8] sm:$0xf]
      %v244 = vld [vmem:[%s1 + $0xc] sm:$0xf]
      %v245 = vld [vmem:[%s1 + $0x10] sm:$0xf]
      %v246 = vld [vmem:[%s1 + $0x14] sm:$0xf]
      %v247 = vld [vmem:[%s1 + $0x18] sm:$0xf]
      %v248 = vld [vmem:[%s1 + $0x1c] sm:$0xf]
      %v257 = vunpack.c.l.b16 %v241
      %v258 = vunpack.c.l.b16 %v242
      %v259 = vunpack.c.l.b16 %v243
      %v260 = vunpack.c.l.b16 %v244
      %v261 = vunpack.c.l.b16 %v245
      %v262 = vunpack.c.l.b16 %v246
      %v263 = vunpack.c.l.b16 %v247
      %v264 = vunpack.c.l.b16 %v248
      %v265 = vpack.c.b16 %v258, %v257
      %v266 = vpack.c.b16 %v260, %v259
      %v267 = vpack.c.b16 %v262, %v261
      %v268 = vpack.c.b16 %v264, %v263
      %vm273 = vcmask 523264
      %v275 = vsel %vm273, %v240, 0
      %277 = vmatprep.subr.bf16.mxu0 0
      %278 = vmatpush1.bf16.msra.mxu0 %v265
      %279 = vmatprep.subr.bf16.mxu0 0
      %280 = vmatpush1.bf16.msra.mxu0 %v266
      %281 = vmatprep.subr.bf16.mxu0 0
      %282 = vmatpush1.bf16.msra.mxu0 %v267
      %283 = vmatprep.subr.bf16.mxu0 0
      %284 = vmatpush1.bf16.msra.mxu0 %v268
      %285 = vmatprep.subr.bf16.mxu0 0
      %286 = vmatpush1.bf16.msra.mxu0 0
      %287 = vmatprep.subr.bf16.mxu0 0
      %288 = vmatpush1.bf16.msra.mxu0 0
      %289 = vmatprep.subr.bf16.mxu0 0
      %290 = vmatpush1.bf16.msra.mxu0 0
      %291 = vmatprep.subr.bf16.mxu0 0
      %292 = vmatpush1.bf16.msra.mxu0 0
      %293 = vmatprep.subr.bf16.mxu0 0
      %294 = vmatpush1.bf16.msra.mxu0 0
      %295 = vmatprep.subr.bf16.mxu0 0
      %296 = vmatpush1.bf16.msra.mxu0 0
      %297 = vmatprep.subr.bf16.mxu0 0
      %298 = vmatpush1.bf16.msra.mxu0 0
      %299 = vmatprep.subr.bf16.mxu0 0
      %300 = vmatpush1.bf16.msra.mxu0 0
      %301 = vmatprep.subr.bf16.mxu0 0
      %302 = vmatpush1.bf16.msra.mxu0 0
      %303 = vmatprep.subr.bf16.mxu0 0
      %304 = vmatpush1.bf16.msra.mxu0 0
      %305 = vmatprep.subr.bf16.mxu0 0
      %306 = vmatpush1.bf16.msra.mxu0 0
      %307 = vmatprep.subr.bf16.mxu0 0
      %308 = vmatpush1.bf16.msra.mxu0 0
      %309 = vmatprep.mubr.bf16.mxu0 0
      %310 = vmatmul.mubr.bf16.gmra.mrb[0].mxu0 %v275
      %v311 = vpop.f32.mrb[0].mxu0
      %v312 = vadd.f32 0.0, %v311
      %v313 = vpop.f32.mrb[0].mxu0
      %v314 = vpop.f32.mrb[0].mxu0
      %v315 = vadd.f32 0.0, %v314
      %v316 = vpop.f32.mrb[0].mxu0
      %317 = vdwg.mxu0
      %v318 = vmax.f32 %v312, 0.0
      %v319 = vmax.f32 %v315, 0.0
      %v320 = vld [vmem:[%s2] sm:$0x1]
      %v322 = vlaneseq
      %v323 = vshrl.u32 %v322, 7
      %v324 = vsub.s32 0, %v323
      %v325 = vrot.slane %v320, %v324
      %v327 = vmul.f32 %v318, %v325
      %v328 = vmul.f32 %v319, %v325
      %v329 = vld [vmem:[%s3] sm:$0x1]
      %v331 = vlaneseq
      %v332 = vshrl.u32 %v331, 7
      %v333 = vsub.s32 0, %v332
      %v334 = vrot.slane %v329, %v333
      %v336 = vadd.f32 %v327, %v334
      %v337 = vadd.f32 %v328, %v334
      %338 = vst.msk [vmem:[%s235] sm:$0xff] %vm273, %v336
      %339 = vst.msk [vmem:[%s235 + $0x8] sm:$0xff] %vm273, %v337
      %s340 = smul.u32 2, %s20
      %p341 = scmp.lt.s32.totalorder %s19, 1
      %s342 = scalar_select %p341, %s19, 1
      %p343 = scmp.lt.s32.totalorder %s340, 1
      %s344 = scalar_select %p343, %s340, 1
      %s345 = smul.addr %s342, 2
      %s346 = sadd.s32 %s344, %s345
      %s347 = smul.addr %s346, 8
      %s348 = scalar_lea.vmem %s4, %s347
      // Predicated region
      $region37: #{se_res2block_forward.6} parent=35 // pred_check
        %p349 = pneg %p138
      $region38: #{se_res2block_forward.6} parent=35 // pred_check_branch
        %351 = sbr.rel (%p349) target = $region40
      $region39: #{se_res2block_forward.6} parent=35 // pred_region
        %s352 = smul.u32 2, %s20
      $region40: #{se_res2block_forward.6} parent=35 // pred_fallthru
        _
    $region36: #{se_res2block_forward.6} parent=5 // pred_fallthru
      _
    %p353 = scmp.le.s32.totalorder 2, %s10
    // Predicated region
    $region41: #{se_res2block_forward.6} parent=5 // pred_check
      %p354 = pneg %p353
    $region42: #{se_res2block_forward.6} parent=5 // pred_check_branch
      %356 = sbr.rel (%p354) target = $region44
    $region43: #{se_res2block_forward.6} parent=5 // pred_region
      %s357 = ssub.s32 %s10, 2
      // Predicated region
      $region45: #{se_res2block_forward.6} parent=43 // pred_check
        %p358 = pneg %p144
      $region46: #{se_res2block_forward.6} parent=43 // pred_check_branch
        %360 = sbr.rel (%p358) target = $region48
      $region47: #{se_res2block_forward.6} parent=43 // pred_region
        %s361 = smul.u32 2, %s22
        %p362 = scmp.lt.s32.totalorder %s21, 1
        %s363 = scalar_select %p362, %s21, 1
        %p364 = scmp.lt.s32.totalorder %s361, 1
        %s365 = scalar_select %p364, %s361, 1
        %s366 = smul.addr %s363, 2
        %s367 = sadd.s32 %s365, %s366
        %s368 = smul.addr %s367, 8
        %s369 = scalar_lea.vmem %s4, %s368
      $region48: #{se_res2block_forward.6} parent=43 // pred_fallthru
        _
    $region44: #{se_res2block_forward.6} parent=5 // pred_fallthru
      _
  $region6: #{se_res2block_forward.6} parent=0 // loop_footer
    %s14 = sadd.s32 1, %s10
  $region7: #{se_res2block_forward.6} parent=0 // loop_footer_branch
    %9 = sbr.rel target = $region3
  $region8: #{se_res2block_forward.6} parent=0 // loop_exit
    _

// kernel: se_res2block_forward.7
$region0: #{se_res2block_forward.7}
  #allocation0 [shape = 'u32[]', space=smem, size = 0x4, offset = 0x4, fixed_abs, tag = 'smem constant byte address 0x4 - core index']
  #allocation1 [shape = 'u32[144,128]{1,0:T(1,128)}', space=vmem, size = 0x12000, scoped, tag = 'internal scratch']
  #allocation2 [shape = 'f32[20,16]{1,0:T(8,128)}', space=vmem, size = 0x3000, scoped, tag = 'scratch operand']
  %s0 = inlined_call_operand.vmem [shape: f32[2,16,64], index: 0, kind: input, shape index: {}]
  %s1 = inlined_call_operand.vmem [shape: bf16[3,48,16], index: 1, kind: input, shape index: {}]
  %s2 = inlined_call_operand.vmem [shape: f32[3,1,16], index: 2, kind: input, shape index: {}]
  %s3 = inlined_call_operand.vmem [shape: f32[3,1,16], index: 3, kind: input, shape index: {}]
  %s4 = inlined_call_operand.vmem [shape: f32[2,16,64], index: 4, kind: output, shape index: {}]
  %s5 = sld [smem:[#allocation0]]
  $region49: #{se_res2block_forward.7} parent=0
    _
  %s7 = ssub.s32 1, %s5
  %s8 = scalar_select 0, %s7, %s5
  loop: start=0, step=1, limit=4
  $region2: #{se_res2block_forward.7} parent=0 // loop_pre_header
    _
  $region3: #{se_res2block_forward.7} parent=0 // loop_header
    %s10 = sphi 0, %s14
    %p11 = scmp.ge.s32.totalorder %s10, 4
    %s20 = sphi 0, %s22
    %s23 = sphi 0, %s20
    %s24 = sphi 0, %s23
    %s40 = sphi 0, %s24
    %s44 = sphi 0, %s44
    %s46 = sphi 0, %s44
    %s47 = sphi 0, %s46
    %s61 = sphi 0, %s47
    %s65 = sphi 0, %s65
    %s67 = sphi 0, %s65
    %s68 = sphi 0, %s67
    %s82 = sphi 0, %s68
    %s86 = sphi 0, %s86
    %s88 = sphi 0, %s86
    %s89 = sphi 0, %s88
    %s103 = sphi 0, %s89
    %s109 = sphi 0, %s111
    %s112 = sphi 0, %s109
    %s113 = sphi 0, %s112
    %s129 = sphi 0, %s113
  $region4: #{se_res2block_forward.7} parent=0 // loop_header_branch
    %13 = sbr.rel (%p11) target = $region8
  $region5: #{se_res2block_forward.7} parent=0 // loop_body
    %s15 = ssub.s32 %s10, 1
    %s16 = ssub.s32 %s10, 2
    %s17 = sadd.s32 %s10, 1
    %s18 = ssub.s32 %s10, %s17
    %p19 = scmp.eq.s32.totalorder %s18, 0
    %s21 = sadd.s32 %s20, 1
    %s22 = scalar_select %p19, %s20, %s21
    %p25 = pneg %p19
    %p26 = scmp.eq.s32.totalorder %s10, 1
    %p27 = por %p25, %p26
    %p28 = scmp.ne.s32.totalorder %s20, %s23
    %p29 = scmp.eq.s32.totalorder %s10, 0
    %p30 = por %p28, %p29
    %p31 = scmp.ne.s32.totalorder %s20, %s23
    %p32 = scmp.eq.s32.totalorder %s15, 1
    %p33 = por %p31, %p32
    %p34 = scmp.ne.s32.totalorder %s23, %s24
    %p35 = scmp.eq.s32.totalorder %s15, 0
    %p36 = por %p34, %p35
    %p37 = scmp.ne.s32.totalorder %s23, %s24
    %p38 = scmp.eq.s32.totalorder %s16, 1
    %p39 = por %p37, %p38
    %p41 = scmp.ne.s32.totalorder %s24, %s40
    %p42 = scmp.eq.s32.totalorder %s16, 0
    %p43 = por %p41, %p42
    %s45 = sadd.s32 %s44, 1
    %p48 = scmp.eq.s32.totalorder %s10, 1
    %p49 = scmp.ne.s32.totalorder %s44, %s46
    %p50 = scmp.eq.s32.totalorder %s10, 0
    %p51 = por %p49, %p50
    %p52 = scmp.ne.s32.totalorder %s44, %s46
    %p53 = scmp.eq.s32.totalorder %s15, 1
    %p54 = por %p52, %p53
    %p55 = scmp.ne.s32.totalorder %s46, %s47
    %p56 = scmp.eq.s32.totalorder %s15, 0
    %p57 = por %p55, %p56
    %p58 = scmp.ne.s32.totalorder %s46, %s47
    %p59 = scmp.eq.s32.totalorder %s16, 1
    %p60 = por %p58, %p59
    %p62 = scmp.ne.s32.totalorder %s47, %s61
    %p63 = scmp.eq.s32.totalorder %s16, 0
    %p64 = por %p62, %p63
    %s66 = sadd.s32 %s65, 1
    %p69 = scmp.eq.s32.totalorder %s10, 1
    %p70 = scmp.ne.s32.totalorder %s65, %s67
    %p71 = scmp.eq.s32.totalorder %s10, 0
    %p72 = por %p70, %p71
    %p73 = scmp.ne.s32.totalorder %s65, %s67
    %p74 = scmp.eq.s32.totalorder %s15, 1
    %p75 = por %p73, %p74
    %p76 = scmp.ne.s32.totalorder %s67, %s68
    %p77 = scmp.eq.s32.totalorder %s15, 0
    %p78 = por %p76, %p77
    %p79 = scmp.ne.s32.totalorder %s67, %s68
    %p80 = scmp.eq.s32.totalorder %s16, 1
    %p81 = por %p79, %p80
    %p83 = scmp.ne.s32.totalorder %s68, %s82
    %p84 = scmp.eq.s32.totalorder %s16, 0
    %p85 = por %p83, %p84
    %s87 = sadd.s32 %s86, 1
    %p90 = scmp.eq.s32.totalorder %s10, 1
    %p91 = scmp.ne.s32.totalorder %s86, %s88
    %p92 = scmp.eq.s32.totalorder %s10, 0
    %p93 = por %p91, %p92
    %p94 = scmp.ne.s32.totalorder %s86, %s88
    %p95 = scmp.eq.s32.totalorder %s15, 1
    %p96 = por %p94, %p95
    %p97 = scmp.ne.s32.totalorder %s88, %s89
    %p98 = scmp.eq.s32.totalorder %s15, 0
    %p99 = por %p97, %p98
    %p100 = scmp.ne.s32.totalorder %s88, %s89
    %p101 = scmp.eq.s32.totalorder %s16, 1
    %p102 = por %p100, %p101
    %p104 = scmp.ne.s32.totalorder %s89, %s103
    %p105 = scmp.eq.s32.totalorder %s16, 0
    %p106 = por %p104, %p105
    %s107 = ssub.s32 %s10, %s17
    %p108 = scmp.eq.s32.totalorder %s107, 0
    %s110 = sadd.s32 %s109, 1
    %s111 = scalar_select %p108, %s109, %s110
    %p114 = pneg %p108
    %p115 = scmp.eq.s32.totalorder %s10, 1
    %p116 = por %p114, %p115
    %p117 = scmp.ne.s32.totalorder %s109, %s112
    %p118 = scmp.eq.s32.totalorder %s10, 0
    %p119 = por %p117, %p118
    %p120 = scmp.ne.s32.totalorder %s109, %s112
    %p121 = scmp.eq.s32.totalorder %s15, 1
    %p122 = por %p120, %p121
    %p123 = scmp.ne.s32.totalorder %s112, %s113
    %p124 = scmp.eq.s32.totalorder %s15, 0
    %p125 = por %p123, %p124
    %p126 = scmp.ne.s32.totalorder %s112, %s113
    %p127 = scmp.eq.s32.totalorder %s16, 1
    %p128 = por %p126, %p127
    %p130 = scmp.ne.s32.totalorder %s113, %s129
    %p131 = scmp.eq.s32.totalorder %s16, 0
    %p132 = por %p130, %p131
    %p133 = scmp.le.s32.totalorder 1, %s10
    %p134 = scmp.lt.s32.totalorder %s10, 3
    %p135 = pnand %p133, %p134
    %p136 = pneg %p135
    // Predicated region
    $region9: #{se_res2block_forward.7} parent=5 // pred_check
      _
    $region10: #{se_res2block_forward.7} parent=5 // pred_check_branch
      %138 = sbr.rel (%p135) target = $region12
    $region11: #{se_res2block_forward.7} parent=5 // pred_region
      %s139 = ssub.s32 %s10, 1
      // Predicated region
      $region13: #{se_res2block_forward.7} parent=11 // pred_check
        %p140 = pneg %p57
      $region14: #{se_res2block_forward.7} parent=11 // pred_check_branch
        %142 = sbr.rel (%p140) target = $region16
      $region15: #{se_res2block_forward.7} parent=11 // pred_region
        _
      $region16: #{se_res2block_forward.7} parent=11 // pred_fallthru
        _
      // Predicated region
      $region17: #{se_res2block_forward.7} parent=11 // pred_check
        %p143 = pneg %p78
      $region18: #{se_res2block_forward.7} parent=11 // pred_check_branch
        %145 = sbr.rel (%p143) target = $region20
      $region19: #{se_res2block_forward.7} parent=11 // pred_region
        _
      $region20: #{se_res2block_forward.7} parent=11 // pred_fallthru
        _
      // Predicated region
      $region21: #{se_res2block_forward.7} parent=11 // pred_check
        %p146 = pneg %p99
      $region22: #{se_res2block_forward.7} parent=11 // pred_check_branch
        %148 = sbr.rel (%p146) target = $region24
      $region23: #{se_res2block_forward.7} parent=11 // pred_region
        _
      $region24: #{se_res2block_forward.7} parent=11 // pred_fallthru
        _
    $region12: #{se_res2block_forward.7} parent=5 // pred_fallthru
      _
    %p149 = scmp.lt.s32.totalorder %s10, 2
    // Predicated region
    $region25: #{se_res2block_forward.7} parent=5 // pred_check
      %p150 = pneg %p149
    $region26: #{se_res2block_forward.7} parent=5 // pred_check_branch
      %152 = sbr.rel (%p150) target = $region28
    $region27: #{se_res2block_forward.7} parent=5 // pred_region
      // Predicated region
      $region29: #{se_res2block_forward.7} parent=27 // pred_check
        %p153 = pneg %p30
      $region30: #{se_res2block_forward.7} parent=27 // pred_check_branch
        %155 = sbr.rel (%p153) target = $region32
      $region31: #{se_res2block_forward.7} parent=27 // pred_region
        %p156 = scmp.lt.s32.totalorder %s10, 1
        %s157 = scalar_select %p156, %s10, 1
        %s158 = smul.addr %s157, 2
        %s159 = smul.addr %s158, 8
        %s160 = scalar_lea.vmem %s0, %s159
      $region32: #{se_res2block_forward.7} parent=27 // pred_fallthru
        _
    $region28: #{se_res2block_forward.7} parent=5 // pred_fallthru
      _
    %p161 = scmp.le.s32.totalorder 1, %s10
    %p162 = scmp.lt.s32.totalorder %s10, 3
    %p163 = pnand %p161, %p162
    %p164 = pneg %p163
    // Predicated region
    $region33: #{se_res2block_forward.7} parent=5 // pred_check
      _
    $region34: #{se_res2block_forward.7} parent=5 // pred_check_branch
      %166 = sbr.rel (%p163) target = $region36
    $region35: #{se_res2block_forward.7} parent=5 // pred_region
      %s167 = ssub.s32 %s10, 1
      %p168 = scmp.lt.s32.totalorder %s15, 1
      %s169 = scalar_select %p168, %s15, 1
      %s170 = smul.addr %s169, 2
      %s171 = smul.addr %s170, 8
      %s172 = scalar_lea.vmem %s0, %s171
      %p173 = pneg %p36
      %p174 = pneg %p33
      %p175 = pneg %p57
      %p176 = pneg %p54
      %p177 = pneg %p78
      %p178 = pneg %p75
      %p179 = pneg %p99
      %p180 = pneg %p96
      %p181 = pneg %p125
      %p182 = pneg %p122
      %p183 = scmp.lt.s32.totalorder %s15, 1
      %s184 = scalar_select %p183, %s15, 1
      %s185 = smul.addr %s184, 2
      %s186 = smul.addr %s185, 8
      %s187 = scalar_lea.vmem %s4, %s186
      %p188 = scmp.lt.s32.totalorder %s15, 1
      %s189 = scalar_select %p188, %s15, 1
      %s190 = smul.addr %s189, 2
      %s191 = smul.addr %s190, 8
      %s192 = scalar_lea.vmem %s0, %s191
      %p193 = scmp.lt.s32.totalorder %s15, 1
      %s194 = scalar_select %p193, %s15, 1
      %s195 = smul.addr %s194, 2
      %s196 = smul.addr %s195, 8
      %s197 = scalar_lea.vmem %s4, %s196
      %vm199 = vcmask 130048
      %200 = vst.msk [vmem:[#allocation2] sm:$0xff] %vm199, 0.0
      %201 = vst.msk [vmem:[#allocation2 + $0x8] sm:$0xff] %vm199, 0.0
      %vm202 = vcmask 125952
      %203 = vst.msk [vmem:[#allocation2 + $0x10] sm:$0xf] %vm202, 0.0
      %v204 = vld [vmem:[%s192] sm:$0xff]
      %v205 = vld [vmem:[%s192 + $0x8] sm:$0xff]
      %206 = vst.msk [vmem:[#allocation2 + $0x2] sm:$0xff] %vm199, %v204
      %207 = vst.msk [vmem:[#allocation2 + $0xa] sm:$0xff] %vm199, %v205
      %v208 = vld [vmem:[#allocation2] sm:$0xff]
      %v209 = vld [vmem:[#allocation2 + $0x8] sm:$0xff]
      %v210 = vld [vmem:[#allocation2 + $0x2] sm:$0xff]
      %v211 = vld [vmem:[#allocation2 + $0xa] sm:$0xff]
      %v212 = vld [vmem:[#allocation2 + $0x4] sm:$0xff]
      %v213 = vld [vmem:[#allocation2 + $0xc] sm:$0xff]
      %216 = vrot.lane.b32.xlu0 %v210, 16
      %v217 = vpop.permute.xlu0 %216
      %218 = vrot.lane.b32.xlu0 %v211, 16
      %v219 = vpop.permute.xlu0 %218
      %224 = vrot.lane.b32.xlu0 %v212, 32
      %v225 = vpop.permute.xlu0 %224
      %226 = vrot.lane.b32.xlu0 %v213, 32
      %v227 = vpop.permute.xlu0 %226
      %v230 = vsel %vm199, %v208, %v217
      %v231 = vsel %vm199, %v209, %v219
      %vm232 = vcmask 261120
      %v233 = vsel %vm232, %v230, %v225
      %v234 = vsel %vm232, %v231, %v227
      %v235 = vpack.c.bf16 %v234, %v233
      %v236 = vld [vmem:[%s1] sm:$0xf]
      %v237 = vld [vmem:[%s1 + $0x4] sm:$0xf]
      %v238 = vld [vmem:[%s1 + $0x8] sm:$0xf]
      %v239 = vld [vmem:[%s1 + $0xc] sm:$0xf]
      %v240 = vld [vmem:[%s1 + $0x10] sm:$0xf]
      %v241 = vld [vmem:[%s1 + $0x14] sm:$0xf]
      %v248 = vunpack.c.l.b16 %v236
      %v249 = vunpack.c.l.b16 %v237
      %v250 = vunpack.c.l.b16 %v238
      %v251 = vunpack.c.l.b16 %v239
      %v252 = vunpack.c.l.b16 %v240
      %v253 = vunpack.c.l.b16 %v241
      %v254 = vpack.c.b16 %v249, %v248
      %v255 = vpack.c.b16 %v251, %v250
      %v256 = vpack.c.b16 %v253, %v252
      %vm260 = vcmask 392192
      %v262 = vsel %vm260, %v235, 0
      %264 = vmatprep.subr.bf16.mxu0 0
      %265 = vmatpush1.bf16.msra.mxu0 %v254
      %266 = vmatprep.subr.bf16.mxu0 0
      %267 = vmatpush1.bf16.msra.mxu0 %v255
      %268 = vmatprep.subr.bf16.mxu0 0
      %269 = vmatpush1.bf16.msra.mxu0 %v256
      %270 = vmatprep.subr.bf16.mxu0 0
      %271 = vmatpush1.bf16.msra.mxu0 0
      %272 = vmatprep.subr.bf16.mxu0 0
      %273 = vmatpush1.bf16.msra.mxu0 0
      %274 = vmatprep.subr.bf16.mxu0 0
      %275 = vmatpush1.bf16.msra.mxu0 0
      %276 = vmatprep.subr.bf16.mxu0 0
      %277 = vmatpush1.bf16.msra.mxu0 0
      %278 = vmatprep.subr.bf16.mxu0 0
      %279 = vmatpush1.bf16.msra.mxu0 0
      %280 = vmatprep.subr.bf16.mxu0 0
      %281 = vmatpush1.bf16.msra.mxu0 0
      %282 = vmatprep.subr.bf16.mxu0 0
      %283 = vmatpush1.bf16.msra.mxu0 0
      %284 = vmatprep.subr.bf16.mxu0 0
      %285 = vmatpush1.bf16.msra.mxu0 0
      %286 = vmatprep.subr.bf16.mxu0 0
      %287 = vmatpush1.bf16.msra.mxu0 0
      %288 = vmatprep.subr.bf16.mxu0 0
      %289 = vmatpush1.bf16.msra.mxu0 0
      %290 = vmatprep.subr.bf16.mxu0 0
      %291 = vmatpush1.bf16.msra.mxu0 0
      %292 = vmatprep.subr.bf16.mxu0 0
      %293 = vmatpush1.bf16.msra.mxu0 0
      %294 = vmatprep.subr.bf16.mxu0 0
      %295 = vmatpush1.bf16.msra.mxu0 0
      %296 = vmatprep.mubr.bf16.mxu0 0
      %297 = vmatmul.mubr.bf16.gmra.mrb[0].mxu0 %v262
      %v298 = vpop.f32.mrb[0].mxu0
      %v299 = vadd.f32 0.0, %v298
      %v300 = vpop.f32.mrb[0].mxu0
      %v301 = vpop.f32.mrb[0].mxu0
      %v302 = vadd.f32 0.0, %v301
      %v303 = vpop.f32.mrb[0].mxu0
      %304 = vdwg.mxu0
      %v305 = vmax.f32 %v299, 0.0
      %v306 = vmax.f32 %v302, 0.0
      %v307 = vld [vmem:[%s2] sm:$0x1]
      %v309 = vlaneseq
      %v310 = vshrl.u32 %v309, 7
      %v311 = vsub.s32 0, %v310
      %v312 = vrot.slane %v307, %v311
      %v314 = vmul.f32 %v305, %v312
      %v315 = vmul.f32 %v306, %v312
      %v316 = vld [vmem:[%s3] sm:$0x1]
      %v318 = vlaneseq
      %v319 = vshrl.u32 %v318, 7
      %v320 = vsub.s32 0, %v319
      %v321 = vrot.slane %v316, %v320
      %v323 = vadd.f32 %v314, %v321
      %v324 = vadd.f32 %v315, %v321
      %325 = vst.msk [vmem:[%s197] sm:$0xff] %vm199, %v323
      %326 = vst.msk [vmem:[%s197 + $0x8] sm:$0xff] %vm199, %v324
      %v327 = vld [vmem:[%s192] sm:$0xff]
      %v328 = vld [vmem:[%s192 + $0x8] sm:$0xff]
      %331 = vrot.lane.b32.xlu0 %v327, 112
      %v332 = vpop.permute.xlu0 %331
      %333 = vrot.lane.b32.xlu0 %v328, 112
      %v334 = vpop.permute.xlu0 %333
      %v337 = vadd.f32 %v323, %v332
      %v338 = vadd.f32 %v324, %v334
      %339 = vst.msk [vmem:[#allocation2 + $0x2] sm:$0xff] %vm199, %v337
      %340 = vst.msk [vmem:[#allocation2 + $0xa] sm:$0xff] %vm199, %v338
      %v341 = vld [vmem:[#allocation2] sm:$0xff]
      %v342 = vld [vmem:[#allocation2 + $0x8] sm:$0xff]
      %v343 = vld [vmem:[#allocation2 + $0x2] sm:$0xff]
      %v344 = vld [vmem:[#allocation2 + $0xa] sm:$0xff]
      %v345 = vld [vmem:[#allocation2 + $0x4] sm:$0xff]
      %v346 = vld [vmem:[#allocation2 + $0xc] sm:$0xff]
      %349 = vrot.lane.b32.xlu0 %v343, 16
      %v350 = vpop.permute.xlu0 %349
      %351 = vrot.lane.b32.xlu0 %v344, 16
      %v352 = vpop.permute.xlu0 %351
      %357 = vrot.lane.b32.xlu0 %v345, 32
      %v358 = vpop.permute.xlu0 %357
      %359 = vrot.lane.b32.xlu0 %v346, 32
      %v360 = vpop.permute.xlu0 %359
      %v363 = vsel %vm199, %v341, %v350
      %v364 = vsel %vm199, %v342, %v352
      %v365 = vsel %vm232, %v363, %v358
      %v366 = vsel %vm232, %v364, %v360
      %v367 = vpack.c.bf16 %v366, %v365
      %s368 = scalar_lea.vmem %s1, 24
      %v369 = vld [vmem:[%s368] sm:$0xf]
      %v370 = vld [vmem:[%s368 + $0x4] sm:$0xf]
      %v371 = vld [vmem:[%s368 + $0x8] sm:$0xf]
      %v372 = vld [vmem:[%s368 + $0xc] sm:$0xf]
      %v373 = vld [vmem:[%s368 + $0x10] sm:$0xf]
      %v374 = vld [vmem:[%s368 + $0x14] sm:$0xf]
      %v381 = vunpack.c.l.b16 %v369
      %v382 = vunpack.c.l.b16 %v370
      %v383 = vunpack.c.l.b16 %v371
      %v384 = vunpack.c.l.b16 %v372
      %v385 = vunpack.c.l.b16 %v373
      %v386 = vunpack.c.l.b16 %v374
      %v387 = vpack.c.b16 %v382, %v381
      %v388 = vpack.c.b16 %v384, %v383
      %v389 = vpack.c.b16 %v386, %v385
      %v394 = vsel %vm260, %v367, 0
      %396 = vmatprep.subr.bf16.mxu0 0
      %397 = vmatpush1.bf16.msra.mxu0 %v387
      %398 = vmatprep.subr.bf16.mxu0 0
      %399 = vmatpush1.bf16.msra.mxu0 %v388
      %400 = vmatprep.subr.bf16.mxu0 0
      %401 = vmatpush1.bf16.msra.mxu0 %v389
      %402 = vmatprep.subr.bf16.mxu0 0
      %403 = vmatpush1.bf16.msra.mxu0 0
      %404 = vmatprep.subr.bf16.mxu0 0
      %405 = vmatpush1.bf16.msra.mxu0 0
      %406 = vmatprep.subr.bf16.mxu0 0
      %407 = vmatpush1.bf16.msra.mxu0 0
      %408 = vmatprep.subr.bf16.mxu0 0
      %409 = vmatpush1.bf16.msra.mxu0 0
      %410 = vmatprep.subr.bf16.mxu0 0
      %411 = vmatpush1.bf16.msra.mxu0 0
      %412 = vmatprep.subr.bf16.mxu0 0
      %413 = vmatpush1.bf16.msra.mxu0 0
      %414 = vmatprep.subr.bf16.mxu0 0
      %415 = vmatpush1.bf16.msra.mxu0 0
      %416 = vmatprep.subr.bf16.mxu0 0
      %417 = vmatpush1.bf16.msra.mxu0 0
      %418 = vmatprep.subr.bf16.mxu0 0
      %419 = vmatpush1.bf16.msra.mxu0 0
      %420 = vmatprep.subr.bf16.mxu0 0
      %421 = vmatpush1.bf16.msra.mxu0 0
      %422 = vmatprep.subr.bf16.mxu0 0
      %423 = vmatpush1.bf16.msra.mxu0 0
      %424 = vmatprep.subr.bf16.mxu0 0
      %425 = vmatpush1.bf16.msra.mxu0 0
      %426 = vmatprep.subr.bf16.mxu0 0
      %427 = vmatpush1.bf16.msra.mxu0 0
      %428 = vmatprep.mubr.bf16.mxu0 0
      %429 = vmatmul.mubr.bf16.gmra.mrb[0].mxu0 %v394
      %v430 = vpop.f32.mrb[0].mxu0
      %v431 = vadd.f32 0.0, %v430
      %v432 = vpop.f32.mrb[0].mxu0
      %v433 = vpop.f32.mrb[0].mxu0
      %v434 = vadd.f32 0.0, %v433
      %v435 = vpop.f32.mrb[0].mxu0
      %436 = vdwg.mxu0
      %v437 = vmax.f32 %v431, 0.0
      %v438 = vmax.f32 %v434, 0.0
      %s439 = scalar_lea.vmem %s2, 1
      %v440 = vld [vmem:[%s439] sm:$0x1]
      %v442 = vlaneseq
      %v443 = vshrl.u32 %v442, 7
      %v444 = vsub.s32 0, %v443
      %v445 = vrot.slane %v440, %v444
      %v447 = vmul.f32 %v437, %v445
      %v448 = vmul.f32 %v438, %v445
      %s449 = scalar_lea.vmem %s3, 1
      %v450 = vld [vmem:[%s449] sm:$0x1]
      %v452 = vlaneseq
      %v453 = vshrl.u32 %v452, 7
      %v454 = vsub.s32 0, %v453
      %v455 = vrot.slane %v450, %v454
      %v457 = vadd.f32 %v447, %v455
      %v458 = vadd.f32 %v448, %v455
      %461 = vrot.lane.b32.xlu0 %v457, 16
      %v462 = vpop.permute.xlu0 %461
      %463 = vrot.lane.b32.xlu0 %v458, 16
      %v464 = vpop.permute.xlu0 %463
      %vm467 = vcmask 261248
      %468 = vst.msk [vmem:[%s197] sm:$0xff] %vm467, %v462
      %469 = vst.msk [vmem:[%s197 + $0x8] sm:$0xff] %vm467, %v464
      %v470 = vld [vmem:[%s192] sm:$0xff]
      %v471 = vld [vmem:[%s192 + $0x8] sm:$0xff]
      %474 = vrot.lane.b32.xlu0 %v470, 96
      %v475 = vpop.permute.xlu0 %474
      %476 = vrot.lane.b32.xlu0 %v471, 96
      %v477 = vpop.permute.xlu0 %476
      %v480 = vadd.f32 %v457, %v475
      %v481 = vadd.f32 %v458, %v477
      %482 = vst.msk [vmem:[#allocation2 + $0x2] sm:$0xff] %vm199, %v480
      %483 = vst.msk [vmem:[#allocation2 + $0xa] sm:$0xff] %vm199, %v481
      %v484 = vld [vmem:[#allocation2] sm:$0xff]
      %v485 = vld [vmem:[#allocation2 + $0x8] sm:$0xff]
      %v486 = vld [vmem:[#allocation2 + $0x2] sm:$0xff]
      %v487 = vld [vmem:[#allocation2 + $0xa] sm:$0xff]
      %v488 = vld [vmem:[#allocation2 + $0x4] sm:$0xff]
      %v489 = vld [vmem:[#allocation2 + $0xc] sm:$0xff]
      %492 = vrot.lane.b32.xlu0 %v486, 16
      %v493 = vpop.permute.xlu0 %492
      %494 = vrot.lane.b32.xlu0 %v487, 16
      %v495 = vpop.permute.xlu0 %494
      %500 = vrot.lane.b32.xlu0 %v488, 32
      %v501 = vpop.permute.xlu0 %500
      %502 = vrot.lane.b32.xlu0 %v489, 32
      %v503 = vpop.permute.xlu0 %502
      %v506 = vsel %vm199, %v484, %v493
      %v507 = vsel %vm199, %v485, %v495
      %v508 = vsel %vm232, %v506, %v501
      %v509 = vsel %vm232, %v507, %v503
      %v510 = vpack.c.bf16 %v509, %v508
      %s511 = scalar_lea.vmem %s1, 48
      %v512 = vld [vmem:[%s511] sm:$0xf]
      %v513 = vld [vmem:[%s511 + $0x4] sm:$0xf]
      %v514 = vld [vmem:[%s511 + $0x8] sm:$0xf]
      %v515 = vld [vmem:[%s511 + $0xc] sm:$0xf]
      %v516 = vld [vmem:[%s511 + $0x10] sm:$0xf]
      %v517 = vld [vmem:[%s511 + $0x14] sm:$0xf]
      %v524 = vunpack.c.l.b16 %v512
      %v525 = vunpack.c.l.b16 %v513
      %v526 = vunpack.c.l.b16 %v514
      %v527 = vunpack.c.l.b16 %v515
      %v528 = vunpack.c.l.b16 %v516
      %v529 = vunpack.c.l.b16 %v517
      %v530 = vpack.c.b16 %v525, %v524
      %v531 = vpack.c.b16 %v527, %v526
      %v532 = vpack.c.b16 %v529, %v528
      %v537 = vsel %vm260, %v510, 0
      %539 = vmatprep.subr.bf16.mxu0 0
      %540 = vmatpush1.bf16.msra.mxu0 %v530
      %541 = vmatprep.subr.bf16.mxu0 0
      %542 = vmatpush1.bf16.msra.mxu0 %v531
      %543 = vmatprep.subr.bf16.mxu0 0
      %544 = vmatpush1.bf16.msra.mxu0 %v532
      %545 = vmatprep.subr.bf16.mxu0 0
      %546 = vmatpush1.bf16.msra.mxu0 0
      %547 = vmatprep.subr.bf16.mxu0 0
      %548 = vmatpush1.bf16.msra.mxu0 0
      %549 = vmatprep.subr.bf16.mxu0 0
      %550 = vmatpush1.bf16.msra.mxu0 0
      %551 = vmatprep.subr.bf16.mxu0 0
      %552 = vmatpush1.bf16.msra.mxu0 0
      %553 = vmatprep.subr.bf16.mxu0 0
      %554 = vmatpush1.bf16.msra.mxu0 0
      %555 = vmatprep.subr.bf16.mxu0 0
      %556 = vmatpush1.bf16.msra.mxu0 0
      %557 = vmatprep.subr.bf16.mxu0 0
      %558 = vmatpush1.bf16.msra.mxu0 0
      %559 = vmatprep.subr.bf16.mxu0 0
      %560 = vmatpush1.bf16.msra.mxu0 0
      %561 = vmatprep.subr.bf16.mxu0 0
      %562 = vmatpush1.bf16.msra.mxu0 0
      %563 = vmatprep.subr.bf16.mxu0 0
      %564 = vmatpush1.bf16.msra.mxu0 0
      %565 = vmatprep.subr.bf16.mxu0 0
      %566 = vmatpush1.bf16.msra.mxu0 0
      %567 = vmatprep.subr.bf16.mxu0 0
      %568 = vmatpush1.bf16.msra.mxu0 0
      %569 = vmatprep.subr.bf16.mxu0 0
      %570 = vmatpush1.bf16.msra.mxu0 0
      %571 = vmatprep.mubr.bf16.mxu0 0
      %572 = vmatmul.mubr.bf16.gmra.mrb[0].mxu0 %v537
      %v573 = vpop.f32.mrb[0].mxu0
      %v574 = vadd.f32 0.0, %v573
      %v575 = vpop.f32.mrb[0].mxu0
      %v576 = vpop.f32.mrb[0].mxu0
      %v577 = vadd.f32 0.0, %v576
      %v578 = vpop.f32.mrb[0].mxu0
      %579 = vdwg.mxu0
      %v580 = vmax.f32 %v574, 0.0
      %v581 = vmax.f32 %v577, 0.0
      %s582 = scalar_lea.vmem %s2, 2
      %v583 = vld [vmem:[%s582] sm:$0x1]
      %v585 = vlaneseq
      %v586 = vshrl.u32 %v585, 7
      %v587 = vsub.s32 0, %v586
      %v588 = vrot.slane %v583, %v587
      %v590 = vmul.f32 %v580, %v588
      %v591 = vmul.f32 %v581, %v588
      %s592 = scalar_lea.vmem %s3, 2
      %v593 = vld [vmem:[%s592] sm:$0x1]
      %v595 = vlaneseq
      %v596 = vshrl.u32 %v595, 7
      %v597 = vsub.s32 0, %v596
      %v598 = vrot.slane %v593, %v597
      %v600 = vadd.f32 %v590, %v598
      %v601 = vadd.f32 %v591, %v598
      %604 = vrot.lane.b32.xlu0 %v600, 32
      %v605 = vpop.permute.xlu0 %604
      %606 = vrot.lane.b32.xlu0 %v601, 32
      %v607 = vpop.permute.xlu0 %606
      %vm610 = vcmask 392448
      %611 = vst.msk [vmem:[%s197] sm:$0xff] %vm610, %v605
      %612 = vst.msk [vmem:[%s197 + $0x8] sm:$0xff] %vm610, %v607
      %v613 = vld [vmem:[%s192] sm:$0xff]
      %v614 = vld [vmem:[%s192 + $0x8] sm:$0xff]
      %vm615 = vcmask 523648
      %616 = vst.msk [vmem:[%s197] sm:$0xff] %vm615, %v613
      %617 = vst.msk [vmem:[%s197 + $0x8] sm:$0xff] %vm615, %v614
      %p618 = scmp.lt.s32.totalorder %s15, 1
      %s619 = scalar_select %p618, %s15, 1
      %s620 = smul.addr %s619, 2
      %s621 = smul.addr %s620, 8
      %s622 = scalar_lea.vmem %s4, %s621
      // Predicated region
      $region37: #{se_res2block_forward.7} parent=35 // pred_check
        %p623 = pneg %p122
      $region38: #{se_res2block_forward.7} parent=35 // pred_check_branch
        %625 = sbr.rel (%p623) target = $region40
      $region39: #{se_res2block_forward.7} parent=35 // pred_region
        _
      $region40: #{se_res2block_forward.7} parent=35 // pred_fallthru
        _
    $region36: #{se_res2block_forward.7} parent=5 // pred_fallthru
      _
    %p626 = scmp.le.s32.totalorder 2, %s10
    // Predicated region
    $region41: #{se_res2block_forward.7} parent=5 // pred_check
      %p627 = pneg %p626
    $region42: #{se_res2block_forward.7} parent=5 // pred_check_branch
      %629 = sbr.rel (%p627) target = $region44
    $region43: #{se_res2block_forward.7} parent=5 // pred_region
      %s630 = ssub.s32 %s10, 2
      // Predicated region
      $region45: #{se_res2block_forward.7} parent=43 // pred_check
        %p631 = pneg %p128
      $region46: #{se_res2block_forward.7} parent=43 // pred_check_branch
        %633 = sbr.rel (%p631) target = $region48
      $region47: #{se_res2block_forward.7} parent=43 // pred_region
        %p634 = scmp.lt.s32.totalorder %s16, 1
        %s635 = scalar_select %p634, %s16, 1
        %s636 = smul.addr %s635, 2
        %s637 = smul.addr %s636, 8
        %s638 = scalar_lea.vmem %s4, %s637
      $region48: #{se_res2block_forward.7} parent=43 // pred_fallthru
        _
    $region44: #{se_res2block_forward.7} parent=5 // pred_fallthru
      _
  $region6: #{se_res2block_forward.7} parent=0 // loop_footer
    %s14 = sadd.s32 1, %s10
  $region7: #{se_res2block_forward.7} parent=0 // loop_footer_branch
    %9 = sbr.rel target = $region3
  $region8: #{se_res2block_forward.7} parent=0 // loop_exit
    _

// kernel: se_res2block_forward.9
$region0: #{se_res2block_forward.9}
  #allocation0 [shape = 'u32[]', space=smem, size = 0x4, offset = 0x4, fixed_abs, tag = 'smem constant byte address 0x4 - core index']
  #allocation1 [shape = 'u32[144,128]{1,0:T(1,128)}', space=vmem, size = 0x12000, scoped, tag = 'internal scratch']
  %s0 = inlined_call_operand.vmem [shape: f32[2,64], index: 0, kind: input, shape index: {}]
  %s1 = inlined_call_operand.vmem [shape: bf16[64,32], index: 1, kind: input, shape index: {}]
  %s2 = inlined_call_operand.vmem [shape: f32[1,32], index: 2, kind: input, shape index: {}]
  %s3 = inlined_call_operand.vmem [shape: bf16[32,64], index: 3, kind: input, shape index: {}]
  %s4 = inlined_call_operand.vmem [shape: f32[1,64], index: 4, kind: input, shape index: {}]
  %s5 = inlined_call_operand.vmem [shape: f32[2,64], index: 5, kind: output, shape index: {}]
  %s6 = sld [smem:[#allocation0]]
  $region30: #{se_res2block_forward.9} parent=0
    _
  %s8 = ssub.s32 1, %s6
  %s9 = scalar_select 0, %s8, %s6
  // Predicated region
  $region2: #{se_res2block_forward.9} parent=0 // pred_check
    _
  $region3: #{se_res2block_forward.9} parent=0 // pred_check_branch
    %11 = sbr.rel (0) target = $region5
  $region4: #{se_res2block_forward.9} parent=0 // pred_region
    _
  $region5: #{se_res2block_forward.9} parent=0 // pred_fallthru
    _
  // Predicated region
  $region6: #{se_res2block_forward.9} parent=0 // pred_check
    _
  $region7: #{se_res2block_forward.9} parent=0 // pred_check_branch
    %13 = sbr.rel (0) target = $region9
  $region8: #{se_res2block_forward.9} parent=0 // pred_region
    _
  $region9: #{se_res2block_forward.9} parent=0 // pred_fallthru
    _
  // Predicated region
  $region10: #{se_res2block_forward.9} parent=0 // pred_check
    _
  $region11: #{se_res2block_forward.9} parent=0 // pred_check_branch
    %15 = sbr.rel (0) target = $region13
  $region12: #{se_res2block_forward.9} parent=0 // pred_region
    _
  $region13: #{se_res2block_forward.9} parent=0 // pred_fallthru
    _
  // Predicated region
  $region14: #{se_res2block_forward.9} parent=0 // pred_check
    _
  $region15: #{se_res2block_forward.9} parent=0 // pred_check_branch
    %17 = sbr.rel (0) target = $region17
  $region16: #{se_res2block_forward.9} parent=0 // pred_region
    _
  $region17: #{se_res2block_forward.9} parent=0 // pred_fallthru
    _
  // Predicated region
  $region18: #{se_res2block_forward.9} parent=0 // pred_check
    _
  $region19: #{se_res2block_forward.9} parent=0 // pred_check_branch
    %19 = sbr.rel (0) target = $region21
  $region20: #{se_res2block_forward.9} parent=0 // pred_region
    _
  $region21: #{se_res2block_forward.9} parent=0 // pred_fallthru
    _
  %v21 = vld [vmem:[%s0] sm:$0x3]
  %v22 = vpack.c.bf16 %v21, %v21
  %v23 = vld [vmem:[%s1] sm:$0xf]
  %v24 = vld [vmem:[%s1 + $0x4] sm:$0xf]
  %v25 = vld [vmem:[%s1 + $0x8] sm:$0xf]
  %v26 = vld [vmem:[%s1 + $0xc] sm:$0xf]
  %v27 = vld [vmem:[%s1 + $0x10] sm:$0xf]
  %v28 = vld [vmem:[%s1 + $0x14] sm:$0xf]
  %v29 = vld [vmem:[%s1 + $0x18] sm:$0xf]
  %v30 = vld [vmem:[%s1 + $0x1c] sm:$0xf]
  %v31 = vld [vmem:[%s2] sm:$0x1]
  %v33 = vlaneseq
  %v34 = vshrl.u32 %v33, 7
  %v35 = vsub.s32 0, %v34
  %v36 = vrot.slane %v31, %v35
  %v46 = vunpack.c.l.b16 %v23
  %v47 = vunpack.c.l.b16 %v24
  %v48 = vunpack.c.l.b16 %v25
  %v49 = vunpack.c.l.b16 %v26
  %v50 = vunpack.c.l.b16 %v27
  %v51 = vunpack.c.l.b16 %v28
  %v52 = vunpack.c.l.b16 %v29
  %v53 = vunpack.c.l.b16 %v30
  %v54 = vpack.c.b16 %v47, %v46
  %v55 = vpack.c.b16 %v49, %v48
  %v56 = vpack.c.b16 %v51, %v50
  %v57 = vpack.c.b16 %v53, %v52
  %vm62 = vcmask 523264
  %v64 = vsel %vm62, %v22, 0
  %66 = vmatprep.subr.bf16.mxu0 0
  %67 = vmatpush1.bf16.msra.mxu0 %v54
  %68 = vmatprep.subr.bf16.mxu0 0
  %69 = vmatpush1.bf16.msra.mxu0 %v55
  %70 = vmatprep.subr.bf16.mxu0 0
  %71 = vmatpush1.bf16.msra.mxu0 %v56
  %72 = vmatprep.subr.bf16.mxu0 0
  %73 = vmatpush1.bf16.msra.mxu0 %v57
  %74 = vmatprep.subr.bf16.mxu0 0
  %75 = vmatpush1.bf16.msra.mxu0 0
  %76 = vmatprep.subr.bf16.mxu0 0
  %77 = vmatpush1.bf16.msra.mxu0 0
  %78 = vmatprep.subr.bf16.mxu0 0
  %79 = vmatpush1.bf16.msra.mxu0 0
  %80 = vmatprep.subr.bf16.mxu0 0
  %81 = vmatpush1.bf16.msra.mxu0 0
  %82 = vmatprep.subr.bf16.mxu0 0
  %83 = vmatpush1.bf16.msra.mxu0 0
  %84 = vmatprep.subr.bf16.mxu0 0
  %85 = vmatpush1.bf16.msra.mxu0 0
  %86 = vmatprep.subr.bf16.mxu0 0
  %87 = vmatpush1.bf16.msra.mxu0 0
  %88 = vmatprep.subr.bf16.mxu0 0
  %89 = vmatpush1.bf16.msra.mxu0 0
  %90 = vmatprep.subr.bf16.mxu0 0
  %91 = vmatpush1.bf16.msra.mxu0 0
  %92 = vmatprep.subr.bf16.mxu0 0
  %93 = vmatpush1.bf16.msra.mxu0 0
  %94 = vmatprep.subr.bf16.mxu0 0
  %95 = vmatpush1.bf16.msra.mxu0 0
  %96 = vmatprep.subr.bf16.mxu0 0
  %97 = vmatpush1.bf16.msra.mxu0 0
  %98 = vmatprep.mubr.bf16.mxu0 0
  %99 = vmatmul.mubr.bf16.gmra.mrb[0].mxu0 %v64
  %v100 = vpop.f32.mrb[0].mxu0
  %v101 = vadd.f32 %v36, %v100
  %v102 = vpop.f32.mrb[0].mxu0
  %v103 = vpop.f32.mrb[0].mxu0
  %v104 = vpop.f32.mrb[0].mxu0
  %105 = vdwg.mxu0
  %v106 = vmax.f32 %v101, 0.0
  %v107 = vpack.c.bf16 %v106, %v106
  %v108 = vld [vmem:[%s3] sm:$0xf]
  %v109 = vld [vmem:[%s3 + $0x4] sm:$0xf]
  %v110 = vld [vmem:[%s3 + $0x8] sm:$0xf]
  %v111 = vld [vmem:[%s3 + $0xc] sm:$0xf]
  %v112 = vld [vmem:[%s4] sm:$0x1]
  %v114 = vlaneseq
  %v115 = vshrl.u32 %v114, 7
  %v116 = vsub.s32 0, %v115
  %v117 = vrot.slane %v112, %v116
  %v123 = vunpack.c.l.b16 %v108
  %v124 = vunpack.c.l.b16 %v109
  %v125 = vunpack.c.l.b16 %v110
  %v126 = vunpack.c.l.b16 %v111
  %v127 = vpack.c.b16 %v124, %v123
  %v128 = vpack.c.b16 %v126, %v125
  %vm131 = vcmask 261120
  %v133 = vsel %vm131, %v107, 0
  %135 = vmatprep.subr.bf16.mxu0 0
  %136 = vmatpush1.bf16.msra.mxu0 %v127
  %137 = vmatprep.subr.bf16.mxu0 0
  %138 = vmatpush1.bf16.msra.mxu0 %v128
  %139 = vmatprep.subr.bf16.mxu0 0
  %140 = vmatpush1.bf16.msra.mxu0 0
  %141 = vmatprep.subr.bf16.mxu0 0
  %142 = vmatpush1.bf16.msra.mxu0 0
  %143 = vmatprep.subr.bf16.mxu0 0
  %144 = vmatpush1.bf16.msra.mxu0 0
  %145 = vmatprep.subr.bf16.mxu0 0
  %146 = vmatpush1.bf16.msra.mxu0 0
  %147 = vmatprep.subr.bf16.mxu0 0
  %148 = vmatpush1.bf16.msra.mxu0 0
  %149 = vmatprep.subr.bf16.mxu0 0
  %150 = vmatpush1.bf16.msra.mxu0 0
  %151 = vmatprep.subr.bf16.mxu0 0
  %152 = vmatpush1.bf16.msra.mxu0 0
  %153 = vmatprep.subr.bf16.mxu0 0
  %154 = vmatpush1.bf16.msra.mxu0 0
  %155 = vmatprep.subr.bf16.mxu0 0
  %156 = vmatpush1.bf16.msra.mxu0 0
  %157 = vmatprep.subr.bf16.mxu0 0
  %158 = vmatpush1.bf16.msra.mxu0 0
  %159 = vmatprep.subr.bf16.mxu0 0
  %160 = vmatpush1.bf16.msra.mxu0 0
  %161 = vmatprep.subr.bf16.mxu0 0
  %162 = vmatpush1.bf16.msra.mxu0 0
  %163 = vmatprep.subr.bf16.mxu0 0
  %164 = vmatpush1.bf16.msra.mxu0 0
  %165 = vmatprep.subr.bf16.mxu0 0
  %166 = vmatpush1.bf16.msra.mxu0 0
  %167 = vmatprep.mubr.bf16.mxu0 0
  %168 = vmatmul.mubr.bf16.gmra.mrb[0].mxu0 %v133
  %v169 = vpop.f32.mrb[0].mxu0
  %v170 = vadd.f32 %v117, %v169
  %v171 = vpop.f32.mrb[0].mxu0
  %v172 = vpop.f32.mrb[0].mxu0
  %v173 = vpop.f32.mrb[0].mxu0
  %174 = vdwg.mxu0
  %v175 = vsub.f32 0.0, %v170
  %v176 = vmul.f32 %v175, 1.442695
  %v177 = vpow.pop %v176
  %v178 = vadd.f32 %v177, 1.0
  %v179 = vrcp.pop %v178
  %v180 = vmul.f32 1.0, %v179
  %vm181 = vcmask 517120
  %182 = vst.msk [vmem:[%s5] sm:$0x3] %vm181, %v180
  // Predicated region
  $region22: #{se_res2block_forward.9} parent=0 // pred_check
    _
  $region23: #{se_res2block_forward.9} parent=0 // pred_check_branch
    %184 = sbr.rel (0) target = $region25
  $region24: #{se_res2block_forward.9} parent=0 // pred_region
    _
  $region25: #{se_res2block_forward.9} parent=0 // pred_fallthru
    _
  // Predicated region
  $region26: #{se_res2block_forward.9} parent=0 // pred_check
    _
  $region27: #{se_res2block_forward.9} parent=0 // pred_check_branch
    %186 = sbr.rel (0) target = $region29
  $region28: #{se_res2block_forward.9} parent=0 // pred_region
    _
  $region29: #{se_res2block_forward.9} parent=0 // pred_fallthru
    _

// kernel: se_res2block_forward.11
$region0: #{se_res2block_forward.11}
  #allocation0 [shape = 'u32[]', space=smem, size = 0x4, offset = 0x4, fixed_abs, tag = 'smem constant byte address 0x4 - core index']
  #allocation1 [shape = 'u32[144,128]{1,0:T(1,128)}', space=vmem, size = 0x12000, scoped, tag = 'internal scratch']
  %s0 = inlined_call_operand.vmem [shape: f32[2,16,64], index: 0, kind: input, shape index: {}]
  %s1 = inlined_call_operand.vmem [shape: f32[2,1,64], index: 1, kind: input, shape index: {}]
  %s2 = inlined_call_operand.vmem [shape: bf16[64,64], index: 2, kind: input, shape index: {}]
  %s3 = inlined_call_operand.vmem [shape: f32[1,64], index: 3, kind: input, shape index: {}]
  %s4 = inlined_call_operand.vmem [shape: f32[1,64], index: 4, kind: input, shape index: {}]
  %s5 = inlined_call_operand.hbm [shape: f32[2,16,64], index: 5, kind: output, shape index: {}]
  %s6 = sld [smem:[#allocation0]]
  $region53: #{se_res2block_forward.11} parent=0
    _
  %s8 = ssub.s32 1, %s6
  %s9 = scalar_select 0, %s8, %s6
  $region1: #{se_res2block_forward.11} parent=0
    #allocation2 [shape = 'u8[16384]{0}', space=vmem, size = 0x4000, scoped, tag = 'output window, operand 0']
    #allocation3 [shape = 's32[2]{0}', space=sflag, size = 0x8, scoped, tag = 'scoped memory for se_res2block_forward.11']
    %10 = vsyncpa [#allocation3], 0
    %s11 = scalar_lea.sflag [#allocation3], 1
    %12 = vsyncpa %s11, 0
    loop: start=0, step=1, limit=4
    $region2: #{se_res2block_forward.11} parent=1 // loop_pre_header
      _
    $region3: #{se_res2block_forward.11} parent=1 // loop_header
      %s14 = sphi 0, %s18
      %p15 = scmp.ge.s32.totalorder %s14, 4
      %s21 = sphi 0, %s33
      %s22 = sphi 0, %s29
      %s23 = sphi 0, %s21
      %s24 = sphi 0, %s22
      %s25 = sphi 0, %s23
      %s26 = sphi 0, %s24
      %s38 = sphi 0, %s40
      %s41 = sphi 0, %s38
      %s42 = sphi 0, %s41
      %s58 = sphi 0, %s42
      %s64 = sphi 0, %s66
      %s67 = sphi 0, %s64
      %s68 = sphi 0, %s67
      %s84 = sphi 0, %s68
      %s88 = sphi 0, %s88
      %s90 = sphi 0, %s88
      %s91 = sphi 0, %s90
      %s105 = sphi 0, %s91
      %s109 = sphi 0, %s109
      %s111 = sphi 0, %s109
      %s112 = sphi 0, %s111
      %s126 = sphi 0, %s112
      %s130 = sphi 0, %s130
      %s132 = sphi 0, %s130
      %s133 = sphi 0, %s132
      %s147 = sphi 0, %s133
      %s155 = sphi 0, %s157
      %s158 = sphi 0, %s155
      %s159 = sphi 0, %s158
      %s175 = sphi 0, %s159
    $region4: #{se_res2block_forward.11} parent=1 // loop_header_branch
      %17 = sbr.rel (%p15) target = $region8
    $region5: #{se_res2block_forward.11} parent=1 // loop_body
      %s19 = ssub.s32 %s14, 1
      %s20 = ssub.s32 %s14, 2
      %s27 = sadd.s32 1, %s22
      %p28 = scmp.ge.s32.totalorder %s27, 1
      %s29 = scalar_select %p28, 0, %s27
      %s30 = sadd.s32 1, %s21
      %s31 = scalar_select %p28, %s30, %s21
      %p32 = scmp.ge.s32.totalorder %s31, 2
      %s33 = scalar_select %p32, 0, %s31
      %s34 = ssub.s32 %s21, %s33
      %s35 = ssub.s32 %s22, %s29
      %s36 = sor.u32 %s34, %s35
      %p37 = scmp.eq.s32.totalorder %s36, 0
      %s39 = sadd.s32 %s38, 1
      %s40 = scalar_select %p37, %s38, %s39
      %p43 = pneg %p37
      %p44 = scmp.eq.s32.totalorder %s14, 1
      %p45 = por %p43, %p44
      %p46 = scmp.ne.s32.totalorder %s38, %s41
      %p47 = scmp.eq.s32.totalorder %s14, 0
      %p48 = por %p46, %p47
      %p49 = scmp.ne.s32.totalorder %s38, %s41
      %p50 = scmp.eq.s32.totalorder %s19, 1
      %p51 = por %p49, %p50
      %p52 = scmp.ne.s32.totalorder %s41, %s42
      %p53 = scmp.eq.s32.totalorder %s19, 0
      %p54 = por %p52, %p53
      %p55 = scmp.ne.s32.totalorder %s41, %s42
      %p56 = scmp.eq.s32.totalorder %s20, 1
      %p57 = por %p55, %p56
      %p59 = scmp.ne.s32.totalorder %s42, %s58
      %p60 = scmp.eq.s32.totalorder %s20, 0
      %p61 = por %p59, %p60
      %s62 = ssub.s32 %s21, %s33
      %p63 = scmp.eq.s32.totalorder %s62, 0
      %s65 = sadd.s32 %s64, 1
      %s66 = scalar_select %p63, %s64, %s65
      %p69 = pneg %p63
      %p70 = scmp.eq.s32.totalorder %s14, 1
      %p71 = por %p69, %p70
      %p72 = scmp.ne.s32.totalorder %s64, %s67
      %p73 = scmp.eq.s32.totalorder %s14, 0
      %p74 = por %p72, %p73
      %p75 = scmp.ne.s32.totalorder %s64, %s67
      %p76 = scmp.eq.s32.totalorder %s19, 1
      %p77 = por %p75, %p76
      %p78 = scmp.ne.s32.totalorder %s67, %s68
      %p79 = scmp.eq.s32.totalorder %s19, 0
      %p80 = por %p78, %p79
      %p81 = scmp.ne.s32.totalorder %s67, %s68
      %p82 = scmp.eq.s32.totalorder %s20, 1
      %p83 = por %p81, %p82
      %p85 = scmp.ne.s32.totalorder %s68, %s84
      %p86 = scmp.eq.s32.totalorder %s20, 0
      %p87 = por %p85, %p86
      %s89 = sadd.s32 %s88, 1
      %p92 = scmp.eq.s32.totalorder %s14, 1
      %p93 = scmp.ne.s32.totalorder %s88, %s90
      %p94 = scmp.eq.s32.totalorder %s14, 0
      %p95 = por %p93, %p94
      %p96 = scmp.ne.s32.totalorder %s88, %s90
      %p97 = scmp.eq.s32.totalorder %s19, 1
      %p98 = por %p96, %p97
      %p99 = scmp.ne.s32.totalorder %s90, %s91
      %p100 = scmp.eq.s32.totalorder %s19, 0
      %p101 = por %p99, %p100
      %p102 = scmp.ne.s32.totalorder %s90, %s91
      %p103 = scmp.eq.s32.totalorder %s20, 1
      %p104 = por %p102, %p103
      %p106 = scmp.ne.s32.totalorder %s91, %s105
      %p107 = scmp.eq.s32.totalorder %s20, 0
      %p108 = por %p106, %p107
      %s110 = sadd.s32 %s109, 1
      %p113 = scmp.eq.s32.totalorder %s14, 1
      %p114 = scmp.ne.s32.totalorder %s109, %s111
      %p115 = scmp.eq.s32.totalorder %s14, 0
      %p116 = por %p114, %p115
      %p117 = scmp.ne.s32.totalorder %s109, %s111
      %p118 = scmp.eq.s32.totalorder %s19, 1
      %p119 = por %p117, %p118
      %p120 = scmp.ne.s32.totalorder %s111, %s112
      %p121 = scmp.eq.s32.totalorder %s19, 0
      %p122 = por %p120, %p121
      %p123 = scmp.ne.s32.totalorder %s111, %s112
      %p124 = scmp.eq.s32.totalorder %s20, 1
      %p125 = por %p123, %p124
      %p127 = scmp.ne.s32.totalorder %s112, %s126
      %p128 = scmp.eq.s32.totalorder %s20, 0
      %p129 = por %p127, %p128
      %s131 = sadd.s32 %s130, 1
      %p134 = scmp.eq.s32.totalorder %s14, 1
      %p135 = scmp.ne.s32.totalorder %s130, %s132
      %p136 = scmp.eq.s32.totalorder %s14, 0
      %p137 = por %p135, %p136
      %p138 = scmp.ne.s32.totalorder %s130, %s132
      %p139 = scmp.eq.s32.totalorder %s19, 1
      %p140 = por %p138, %p139
      %p141 = scmp.ne.s32.totalorder %s132, %s133
      %p142 = scmp.eq.s32.totalorder %s19, 0
      %p143 = por %p141, %p142
      %p144 = scmp.ne.s32.totalorder %s132, %s133
      %p145 = scmp.eq.s32.totalorder %s20, 1
      %p146 = por %p144, %p145
      %p148 = scmp.ne.s32.totalorder %s133, %s147
      %p149 = scmp.eq.s32.totalorder %s20, 0
      %p150 = por %p148, %p149
      %s151 = ssub.s32 %s21, %s33
      %s152 = ssub.s32 %s22, %s29
      %s153 = sor.u32 %s151, %s152
      %p154 = scmp.eq.s32.totalorder %s153, 0
      %s156 = sadd.s32 %s155, 1
      %s157 = scalar_select %p154, %s155, %s156
      %p160 = pneg %p154
      %p161 = scmp.eq.s32.totalorder %s14, 1
      %p162 = por %p160, %p161
      %p163 = scmp.ne.s32.totalorder %s155, %s158
      %p164 = scmp.eq.s32.totalorder %s14, 0
      %p165 = por %p163, %p164
      %p166 = scmp.ne.s32.totalorder %s155, %s158
      %p167 = scmp.eq.s32.totalorder %s19, 1
      %p168 = por %p166, %p167
      %p169 = scmp.ne.s32.totalorder %s158, %s159
      %p170 = scmp.eq.s32.totalorder %s19, 0
      %p171 = por %p169, %p170
      %p172 = scmp.ne.s32.totalorder %s158, %s159
      %p173 = scmp.eq.s32.totalorder %s20, 1
      %p174 = por %p172, %p173
      %p176 = scmp.ne.s32.totalorder %s159, %s175
      %p177 = scmp.eq.s32.totalorder %s20, 0
      %p178 = por %p176, %p177
      %p179 = scmp.le.s32.totalorder 1, %s14
      %p180 = scmp.lt.s32.totalorder %s14, 3
      %p181 = pnand %p179, %p180
      %p182 = pneg %p181
      // Predicated region
      $region9: #{se_res2block_forward.11} parent=5 // pred_check
        _
      $region10: #{se_res2block_forward.11} parent=5 // pred_check_branch
        %184 = sbr.rel (%p181) target = $region12
      $region11: #{se_res2block_forward.11} parent=5 // pred_region
        %s185 = ssub.s32 %s14, 1
        // Predicated region
        $region13: #{se_res2block_forward.11} parent=11 // pred_check
          %p186 = pneg %p101
        $region14: #{se_res2block_forward.11} parent=11 // pred_check_branch
          %188 = sbr.rel (%p186) target = $region16
        $region15: #{se_res2block_forward.11} parent=11 // pred_region
          _
        $region16: #{se_res2block_forward.11} parent=11 // pred_fallthru
          _
        // Predicated region
        $region17: #{se_res2block_forward.11} parent=11 // pred_check
          %p189 = pneg %p122
        $region18: #{se_res2block_forward.11} parent=11 // pred_check_branch
          %191 = sbr.rel (%p189) target = $region20
        $region19: #{se_res2block_forward.11} parent=11 // pred_region
          _
        $region20: #{se_res2block_forward.11} parent=11 // pred_fallthru
          _
        // Predicated region
        $region21: #{se_res2block_forward.11} parent=11 // pred_check
          %p192 = pneg %p143
        $region22: #{se_res2block_forward.11} parent=11 // pred_check_branch
          %194 = sbr.rel (%p192) target = $region24
        $region23: #{se_res2block_forward.11} parent=11 // pred_region
          _
        $region24: #{se_res2block_forward.11} parent=11 // pred_fallthru
          _
      $region12: #{se_res2block_forward.11} parent=5 // pred_fallthru
        _
      %p195 = scmp.lt.s32.totalorder %s14, 2
      // Predicated region
      $region25: #{se_res2block_forward.11} parent=5 // pred_check
        %p196 = pneg %p195
      $region26: #{se_res2block_forward.11} parent=5 // pred_check_branch
        %198 = sbr.rel (%p196) target = $region28
      $region27: #{se_res2block_forward.11} parent=5 // pred_region
        // Predicated region
        $region29: #{se_res2block_forward.11} parent=27 // pred_check
          %p199 = pneg %p48
        $region30: #{se_res2block_forward.11} parent=27 // pred_check_branch
          %201 = sbr.rel (%p199) target = $region32
        $region31: #{se_res2block_forward.11} parent=27 // pred_region
          %s202 = smul.u32 2, %s22
          %p203 = scmp.lt.s32.totalorder %s21, 1
          %s204 = scalar_select %p203, %s21, 1
          %p205 = scmp.lt.s32.totalorder %s202, 1
          %s206 = scalar_select %p205, %s202, 1
          %s207 = smul.addr %s204, 2
          %s208 = sadd.s32 %s206, %s207
          %s209 = smul.addr %s208, 8
          %s210 = scalar_lea.vmem %s0, %s209
          %s211 = smul.u32 2, %s22
        $region32: #{se_res2block_forward.11} parent=27 // pred_fallthru
          _
        // Predicated region
        $region33: #{se_res2block_forward.11} parent=27 // pred_check
          %p212 = pneg %p74
        $region34: #{se_res2block_forward.11} parent=27 // pred_check_branch
          %214 = sbr.rel (%p212) target = $region36
        $region35: #{se_res2block_forward.11} parent=27 // pred_region
          %p215 = scmp.lt.s32.totalorder %s21, 1
          %s216 = scalar_select %p215, %s21, 1
          %s217 = scalar_lea.vmem %s1, %s216
        $region36: #{se_res2block_forward.11} parent=27 // pred_fallthru
          _
      $region28: #{se_res2block_forward.11} parent=5 // pred_fallthru
        _
      %p218 = scmp.le.s32.totalorder 1, %s14
      %p219 = scmp.lt.s32.totalorder %s14, 3
      %p220 = pnand %p218, %p219
      %p221 = pneg %p220
      // Predicated region
      $region37: #{se_res2block_forward.11} parent=5 // pred_check
        _
      $region38: #{se_res2block_forward.11} parent=5 // pred_check_branch
        %223 = sbr.rel (%p220) target = $region40
      $region39: #{se_res2block_forward.11} parent=5 // pred_region
        %s224 = ssub.s32 %s14, 1
        %s225 = smul.u32 2, %s24
        %p226 = scmp.lt.s32.totalorder %s23, 1
        %s227 = scalar_select %p226, %s23, 1
        %p228 = scmp.lt.s32.totalorder %s225, 1
        %s229 = scalar_select %p228, %s225, 1
        %s230 = smul.addr %s227, 2
        %s231 = sadd.s32 %s229, %s230
        %s232 = smul.addr %s231, 8
        %s233 = scalar_lea.vmem %s0, %s232
        %p234 = pneg %p54
        %p235 = pneg %p51
        %p236 = scmp.lt.s32.totalorder %s23, 1
        %s237 = scalar_select %p236, %s23, 1
        %s238 = scalar_lea.vmem %s1, %s237
        %p239 = pneg %p80
        %p240 = pneg %p77
        %p241 = pneg %p101
        %p242 = pneg %p98
        %p243 = pneg %p122
        %p244 = pneg %p119
        %p245 = pneg %p143
        %p246 = pneg %p140
        %p247 = pneg %p171
        %p248 = pneg %p168
        %s249 = sand.u32 %s158, 1
        %s250 = scalar_lea.sflag [#allocation3], %s249
        %s251 = sand.u32 %s158, 1
        %s252 = smul.addr %s251, 16
        %s253 = scalar_lea.vmem [#allocation2], %s252
        %s254 = smul.u32 2, %s24
        %p255 = scmp.lt.s32.totalorder %s23, 1
        %s256 = scalar_select %p255, %s23, 1
        %p257 = scmp.lt.s32.totalorder %s254, 1
        %s258 = scalar_select %p257, %s254, 1
        %s259 = smul.addr %s256, 2
        %s260 = sadd.s32 %s258, %s259
        %s261 = smul.addr %s260, 8
        %s262 = scalar_lea.vmem %s0, %s261
        %s263 = smul.u32 2, %s24
        %p264 = scmp.lt.s32.totalorder %s23, 1
        %s265 = scalar_select %p264, %s23, 1
        %s266 = scalar_lea.vmem %s1, %s265
        %s267 = smul.u32 2, %s24
        %v269 = vld [vmem:[%s262] sm:$0xff]
        %v270 = vld [vmem:[%s262 + $0x8] sm:$0xff]
        %v271 = vld [vmem:[%s266] sm:$0x1]
        %v273 = vlaneseq
        %v274 = vshrl.u32 %v273, 7
        %v275 = vsub.s32 0, %v274
        %v276 = vrot.slane %v271, %v275
        %v278 = vmul.f32 %v269, %v276
        %v279 = vmul.f32 %v270, %v276
        %v280 = vpack.c.bf16 %v279, %v278
        %v281 = vld [vmem:[%s2] sm:$0xf]
        %v282 = vld [vmem:[%s2 + $0x4] sm:$0xf]
        %v283 = vld [vmem:[%s2 + $0x8] sm:$0xf]
        %v284 = vld [vmem:[%s2 + $0xc] sm:$0xf]
        %v285 = vld [vmem:[%s2 + $0x10] sm:$0xf]
        %v286 = vld [vmem:[%s2 + $0x14] sm:$0xf]
        %v287 = vld [vmem:[%s2 + $0x18] sm:$0xf]
        %v288 = vld [vmem:[%s2 + $0x1c] sm:$0xf]
        %v297 = vunpack.c.l.b16 %v281
        %v298 = vunpack.c.l.b16 %v282
        %v299 = vunpack.c.l.b16 %v283
        %v300 = vunpack.c.l.b16 %v284
        %v301 = vunpack.c.l.b16 %v285
        %v302 = vunpack.c.l.b16 %v286
        %v303 = vunpack.c.l.b16 %v287
        %v304 = vunpack.c.l.b16 %v288
        %v305 = vpack.c.b16 %v298, %v297
        %v306 = vpack.c.b16 %v300, %v299
        %v307 = vpack.c.b16 %v302, %v301
        %v308 = vpack.c.b16 %v304, %v303
        %vm313 = vcmask 523264
        %v315 = vsel %vm313, %v280, 0
        %317 = vmatprep.subr.bf16.mxu0 0
        %318 = vmatpush1.bf16.msra.mxu0 %v305
        %319 = vmatprep.subr.bf16.mxu0 0
        %320 = vmatpush1.bf16.msra.mxu0 %v306
        %321 = vmatprep.subr.bf16.mxu0 0
        %322 = vmatpush1.bf16.msra.mxu0 %v307
        %323 = vmatprep.subr.bf16.mxu0 0
        %324 = vmatpush1.bf16.msra.mxu0 %v308
        %325 = vmatprep.subr.bf16.mxu0 0
        %326 = vmatpush1.bf16.msra.mxu0 0
        %327 = vmatprep.subr.bf16.mxu0 0
        %328 = vmatpush1.bf16.msra.mxu0 0
        %329 = vmatprep.subr.bf16.mxu0 0
        %330 = vmatpush1.bf16.msra.mxu0 0
        %331 = vmatprep.subr.bf16.mxu0 0
        %332 = vmatpush1.bf16.msra.mxu0 0
        %333 = vmatprep.subr.bf16.mxu0 0
        %334 = vmatpush1.bf16.msra.mxu0 0
        %335 = vmatprep.subr.bf16.mxu0 0
        %336 = vmatpush1.bf16.msra.mxu0 0
        %337 = vmatprep.subr.bf16.mxu0 0
        %338 = vmatpush1.bf16.msra.mxu0 0
        %339 = vmatprep.subr.bf16.mxu0 0
        %340 = vmatpush1.bf16.msra.mxu0 0
        %341 = vmatprep.subr.bf16.mxu0 0
        %342 = vmatpush1.bf16.msra.mxu0 0
        %343 = vmatprep.subr.bf16.mxu0 0
        %344 = vmatpush1.bf16.msra.mxu0 0
        %345 = vmatprep.subr.bf16.mxu0 0
        %346 = vmatpush1.bf16.msra.mxu0 0
        %347 = vmatprep.subr.bf16.mxu0 0
        %348 = vmatpush1.bf16.msra.mxu0 0
        %349 = vmatprep.mubr.bf16.mxu0 0
        %350 = vmatmul.mubr.bf16.gmra.mrb[0].mxu0 %v315
        %v351 = vpop.f32.mrb[0].mxu0
        %v352 = vadd.f32 0.0, %v351
        %v353 = vpop.f32.mrb[0].mxu0
        %v354 = vpop.f32.mrb[0].mxu0
        %v355 = vadd.f32 0.0, %v354
        %v356 = vpop.f32.mrb[0].mxu0
        %357 = vdwg.mxu0
        %v358 = vmax.f32 %v352, 0.0
        %v359 = vmax.f32 %v355, 0.0
        %v360 = vld [vmem:[%s3] sm:$0x1]
        %v362 = vlaneseq
        %v363 = vshrl.u32 %v362, 7
        %v364 = vsub.s32 0, %v363
        %v365 = vrot.slane %v360, %v364
        %v367 = vmul.f32 %v358, %v365
        %v368 = vmul.f32 %v359, %v365
        %v369 = vld [vmem:[%s4] sm:$0x1]
        %v371 = vlaneseq
        %v372 = vshrl.u32 %v371, 7
        %v373 = vsub.s32 0, %v372
        %v374 = vrot.slane %v369, %v373
        %v376 = vadd.f32 %v367, %v374
        %v377 = vadd.f32 %v368, %v374
        %378 = vst.msk [vmem:[%s253] sm:$0xff] %vm313, %v376
        %379 = vst.msk [vmem:[%s253 + $0x8] sm:$0xff] %vm313, %v377
        %s380 = sand.u32 %s158, 1
        %s381 = scalar_lea.sflag [#allocation3], %s380
        %s382 = sand.u32 %s158, 1
        %s383 = smul.addr %s382, 16
        %s384 = scalar_lea.vmem [#allocation2], %s383
        // Predicated region
        $region41: #{se_res2block_forward.11} parent=39 // pred_check
          %p385 = pneg %p168
        $region42: #{se_res2block_forward.11} parent=39 // pred_check_branch
          %387 = sbr.rel (%p385) target = $region44
        $region43: #{se_res2block_forward.11} parent=39 // pred_region
          %s388 = smul.u32 2, %s24
          %s390 = ssub.s32 256, 256
          %391 = vsyncadd %s381, %s390
          %s392 = smul.addr %s23, 2
          %s393 = sadd.s32 %s388, %s392
          %s394 = smul.addr %s393, 128
          %s395 = scalar_lea.hbm %s5, %s394
          %s396 = sshll.u32 %s384, 4
          %s397 = int_to_ptr.vmem [resolvable:$true] %s396
          %402 = dma.vmem_to_hbm [thread:$0]  %s397, 256, %s395, %s381, 128, 128, 8
        $region44: #{se_res2block_forward.11} parent=39 // pred_fallthru
          _
      $region40: #{se_res2block_forward.11} parent=5 // pred_fallthru
        _
      %p403 = scmp.le.s32.totalorder 2, %s14
      // Predicated region
      $region45: #{se_res2block_forward.11} parent=5 // pred_check
        %p404 = pneg %p403
      $region46: #{se_res2block_forward.11} parent=5 // pred_check_branch
        %406 = sbr.rel (%p404) target = $region48
      $region47: #{se_res2block_forward.11} parent=5 // pred_region
        %s407 = ssub.s32 %s14, 2
        // Predicated region
        $region49: #{se_res2block_forward.11} parent=47 // pred_check
          %p408 = pneg %p174
        $region50: #{se_res2block_forward.11} parent=47 // pred_check_branch
          %410 = sbr.rel (%p408) target = $region52
        $region51: #{se_res2block_forward.11} parent=47 // pred_region
          %s411 = sand.u32 %s159, 1
          %s412 = scalar_lea.sflag [#allocation3], %s411
          %s413 = sand.u32 %s159, 1
          %s414 = smul.addr %s413, 16
          %s415 = scalar_lea.vmem [#allocation2], %s414
          %416 = dma.done %s412, 256
        $region52: #{se_res2block_forward.11} parent=47 // pred_fallthru
          _
      $region48: #{se_res2block_forward.11} parent=5 // pred_fallthru
        _
    $region6: #{se_res2block_forward.11} parent=1 // loop_footer
      %s18 = sadd.s32 1, %s14
    $region7: #{se_res2block_forward.11} parent=1 // loop_footer_branch
      %13 = sbr.rel target = $region3
    $region8: #{se_res2block_forward.11} parent=1 // loop_exit
      _
    %417 = vsyncpa [#allocation3], 1
    %s418 = scalar_lea.sflag [#allocation3], 1
    %419 = vsyncpa %s418, 1

// kernel: se_res2block_forward.10
$region0: #{se_res2block_forward.10}
  #allocation0 [shape = 'u32[]', space=smem, size = 0x4, offset = 0x4, fixed_abs, tag = 'smem constant byte address 0x4 - core index']
  #allocation1 [shape = 'u32[144,128]{1,0:T(1,128)}', space=vmem, size = 0x12000, scoped, tag = 'internal scratch']
  %s0 = inlined_call_operand.vmem [shape: f32[2,16,64], index: 0, kind: input, shape index: {}]
  %s1 = inlined_call_operand.vmem [shape: f32[2,1,64], index: 1, kind: input, shape index: {}]
  %s2 = inlined_call_operand.vmem [shape: f32[2,16,64], index: 2, kind: input, shape index: {}]
  %s3 = inlined_call_operand.vmem [shape: bf16[64,64], index: 3, kind: input, shape index: {}]
  %s4 = inlined_call_operand.vmem [shape: f32[1,64], index: 4, kind: input, shape index: {}]
  %s5 = inlined_call_operand.vmem [shape: f32[1,64], index: 5, kind: input, shape index: {}]
  %s6 = inlined_call_operand.hbm [shape: f32[2,16,64], index: 6, kind: output, shape index: {}]
  %s7 = sld [smem:[#allocation0]]
  $region57: #{se_res2block_forward.10} parent=0
    _
  %s9 = ssub.s32 1, %s7
  %s10 = scalar_select 0, %s9, %s7
  $region1: #{se_res2block_forward.10} parent=0
    #allocation2 [shape = 'u8[16384]{0}', space=vmem, size = 0x4000, scoped, tag = 'output window, operand 0']
    #allocation3 [shape = 's32[2]{0}', space=sflag, size = 0x8, scoped, tag = 'scoped memory for se_res2block_forward.10']
    %11 = vsyncpa [#allocation3], 0
    %s12 = scalar_lea.sflag [#allocation3], 1
    %13 = vsyncpa %s12, 0
    loop: start=0, step=1, limit=4
    $region2: #{se_res2block_forward.10} parent=1 // loop_pre_header
      _
    $region3: #{se_res2block_forward.10} parent=1 // loop_header
      %s15 = sphi 0, %s19
      %p16 = scmp.ge.s32.totalorder %s15, 4
      %s22 = sphi 0, %s34
      %s23 = sphi 0, %s30
      %s24 = sphi 0, %s22
      %s25 = sphi 0, %s23
      %s26 = sphi 0, %s24
      %s27 = sphi 0, %s25
      %s39 = sphi 0, %s41
      %s42 = sphi 0, %s39
      %s43 = sphi 0, %s42
      %s59 = sphi 0, %s43
      %s65 = sphi 0, %s67
      %s68 = sphi 0, %s65
      %s69 = sphi 0, %s68
      %s85 = sphi 0, %s69
      %s93 = sphi 0, %s95
      %s96 = sphi 0, %s93
      %s97 = sphi 0, %s96
      %s113 = sphi 0, %s97
      %s117 = sphi 0, %s117
      %s119 = sphi 0, %s117
      %s120 = sphi 0, %s119
      %s134 = sphi 0, %s120
      %s138 = sphi 0, %s138
      %s140 = sphi 0, %s138
      %s141 = sphi 0, %s140
      %s155 = sphi 0, %s141
      %s159 = sphi 0, %s159
      %s161 = sphi 0, %s159
      %s162 = sphi 0, %s161
      %s176 = sphi 0, %s162
      %s184 = sphi 0, %s186
      %s187 = sphi 0, %s184
      %s188 = sphi 0, %s187
      %s204 = sphi 0, %s188
    $region4: #{se_res2block_forward.10} parent=1 // loop_header_branch
      %18 = sbr.rel (%p16) target = $region8
    $region5: #{se_res2block_forward.10} parent=1 // loop_body
      %s20 = ssub.s32 %s15, 1
      %s21 = ssub.s32 %s15, 2
      %s28 = sadd.s32 1, %s23
      %p29 = scmp.ge.s32.totalorder %s28, 1
      %s30 = scalar_select %p29, 0, %s28
      %s31 = sadd.s32 1, %s22
      %s32 = scalar_select %p29, %s31, %s22
      %p33 = scmp.ge.s32.totalorder %s32, 2
      %s34 = scalar_select %p33, 0, %s32
      %s35 = ssub.s32 %s22, %s34
      %s36 = ssub.s32 %s23, %s30
      %s37 = sor.u32 %s35, %s36
      %p38 = scmp.eq.s32.totalorder %s37, 0
      %s40 = sadd.s32 %s39, 1
      %s41 = scalar_select %p38, %s39, %s40
      %p44 = pneg %p38
      %p45 = scmp.eq.s32.totalorder %s15, 1
      %p46 = por %p44, %p45
      %p47 = scmp.ne.s32.totalorder %s39, %s42
      %p48 = scmp.eq.s32.totalorder %s15, 0
      %p49 = por %p47, %p48
      %p50 = scmp.ne.s32.totalorder %s39, %s42
      %p51 = scmp.eq.s32.totalorder %s20, 1
      %p52 = por %p50, %p51
      %p53 = scmp.ne.s32.totalorder %s42, %s43
      %p54 = scmp.eq.s32.totalorder %s20, 0
      %p55 = por %p53, %p54
      %p56 = scmp.ne.s32.totalorder %s42, %s43
      %p57 = scmp.eq.s32.totalorder %s21, 1
      %p58 = por %p56, %p57
      %p60 = scmp.ne.s32.totalorder %s43, %s59
      %p61 = scmp.eq.s32.totalorder %s21, 0
      %p62 = por %p60, %p61
      %s63 = ssub.s32 %s22, %s34
      %p64 = scmp.eq.s32.totalorder %s63, 0
      %s66 = sadd.s32 %s65, 1
      %s67 = scalar_select %p64, %s65, %s66
      %p70 = pneg %p64
      %p71 = scmp.eq.s32.totalorder %s15, 1
      %p72 = por %p70, %p71
      %p73 = scmp.ne.s32.totalorder %s65, %s68
      %p74 = scmp.eq.s32.totalorder %s15, 0
      %p75 = por %p73, %p74
      %p76 = scmp.ne.s32.totalorder %s65, %s68
      %p77 = scmp.eq.s32.totalorder %s20, 1
      %p78 = por %p76, %p77
      %p79 = scmp.ne.s32.totalorder %s68, %s69
      %p80 = scmp.eq.s32.totalorder %s20, 0
      %p81 = por %p79, %p80
      %p82 = scmp.ne.s32.totalorder %s68, %s69
      %p83 = scmp.eq.s32.totalorder %s21, 1
      %p84 = por %p82, %p83
      %p86 = scmp.ne.s32.totalorder %s69, %s85
      %p87 = scmp.eq.s32.totalorder %s21, 0
      %p88 = por %p86, %p87
      %s89 = ssub.s32 %s22, %s34
      %s90 = ssub.s32 %s23, %s30
      %s91 = sor.u32 %s89, %s90
      %p92 = scmp.eq.s32.totalorder %s91, 0
      %s94 = sadd.s32 %s93, 1
      %s95 = scalar_select %p92, %s93, %s94
      %p98 = pneg %p92
      %p99 = scmp.eq.s32.totalorder %s15, 1
      %p100 = por %p98, %p99
      %p101 = scmp.ne.s32.totalorder %s93, %s96
      %p102 = scmp.eq.s32.totalorder %s15, 0
      %p103 = por %p101, %p102
      %p104 = scmp.ne.s32.totalorder %s93, %s96
      %p105 = scmp.eq.s32.totalorder %s20, 1
      %p106 = por %p104, %p105
      %p107 = scmp.ne.s32.totalorder %s96, %s97
      %p108 = scmp.eq.s32.totalorder %s20, 0
      %p109 = por %p107, %p108
      %p110 = scmp.ne.s32.totalorder %s96, %s97
      %p111 = scmp.eq.s32.totalorder %s21, 1
      %p112 = por %p110, %p111
      %p114 = scmp.ne.s32.totalorder %s97, %s113
      %p115 = scmp.eq.s32.totalorder %s21, 0
      %p116 = por %p114, %p115
      %s118 = sadd.s32 %s117, 1
      %p121 = scmp.eq.s32.totalorder %s15, 1
      %p122 = scmp.ne.s32.totalorder %s117, %s119
      %p123 = scmp.eq.s32.totalorder %s15, 0
      %p124 = por %p122, %p123
      %p125 = scmp.ne.s32.totalorder %s117, %s119
      %p126 = scmp.eq.s32.totalorder %s20, 1
      %p127 = por %p125, %p126
      %p128 = scmp.ne.s32.totalorder %s119, %s120
      %p129 = scmp.eq.s32.totalorder %s20, 0
      %p130 = por %p128, %p129
      %p131 = scmp.ne.s32.totalorder %s119, %s120
      %p132 = scmp.eq.s32.totalorder %s21, 1
      %p133 = por %p131, %p132
      %p135 = scmp.ne.s32.totalorder %s120, %s134
      %p136 = scmp.eq.s32.totalorder %s21, 0
      %p137 = por %p135, %p136
      %s139 = sadd.s32 %s138, 1
      %p142 = scmp.eq.s32.totalorder %s15, 1
      %p143 = scmp.ne.s32.totalorder %s138, %s140
      %p144 = scmp.eq.s32.totalorder %s15, 0
      %p145 = por %p143, %p144
      %p146 = scmp.ne.s32.totalorder %s138, %s140
      %p147 = scmp.eq.s32.totalorder %s20, 1
      %p148 = por %p146, %p147
      %p149 = scmp.ne.s32.totalorder %s140, %s141
      %p150 = scmp.eq.s32.totalorder %s20, 0
      %p151 = por %p149, %p150
      %p152 = scmp.ne.s32.totalorder %s140, %s141
      %p153 = scmp.eq.s32.totalorder %s21, 1
      %p154 = por %p152, %p153
      %p156 = scmp.ne.s32.totalorder %s141, %s155
      %p157 = scmp.eq.s32.totalorder %s21, 0
      %p158 = por %p156, %p157
      %s160 = sadd.s32 %s159, 1
      %p163 = scmp.eq.s32.totalorder %s15, 1
      %p164 = scmp.ne.s32.totalorder %s159, %s161
      %p165 = scmp.eq.s32.totalorder %s15, 0
      %p166 = por %p164, %p165
      %p167 = scmp.ne.s32.totalorder %s159, %s161
      %p168 = scmp.eq.s32.totalorder %s20, 1
      %p169 = por %p167, %p168
      %p170 = scmp.ne.s32.totalorder %s161, %s162
      %p171 = scmp.eq.s32.totalorder %s20, 0
      %p172 = por %p170, %p171
      %p173 = scmp.ne.s32.totalorder %s161, %s162
      %p174 = scmp.eq.s32.totalorder %s21, 1
      %p175 = por %p173, %p174
      %p177 = scmp.ne.s32.totalorder %s162, %s176
      %p178 = scmp.eq.s32.totalorder %s21, 0
      %p179 = por %p177, %p178
      %s180 = ssub.s32 %s22, %s34
      %s181 = ssub.s32 %s23, %s30
      %s182 = sor.u32 %s180, %s181
      %p183 = scmp.eq.s32.totalorder %s182, 0
      %s185 = sadd.s32 %s184, 1
      %s186 = scalar_select %p183, %s184, %s185
      %p189 = pneg %p183
      %p190 = scmp.eq.s32.totalorder %s15, 1
      %p191 = por %p189, %p190
      %p192 = scmp.ne.s32.totalorder %s184, %s187
      %p193 = scmp.eq.s32.totalorder %s15, 0
      %p194 = por %p192, %p193
      %p195 = scmp.ne.s32.totalorder %s184, %s187
      %p196 = scmp.eq.s32.totalorder %s20, 1
      %p197 = por %p195, %p196
      %p198 = scmp.ne.s32.totalorder %s187, %s188
      %p199 = scmp.eq.s32.totalorder %s20, 0
      %p200 = por %p198, %p199
      %p201 = scmp.ne.s32.totalorder %s187, %s188
      %p202 = scmp.eq.s32.totalorder %s21, 1
      %p203 = por %p201, %p202
      %p205 = scmp.ne.s32.totalorder %s188, %s204
      %p206 = scmp.eq.s32.totalorder %s21, 0
      %p207 = por %p205, %p206
      %p208 = scmp.le.s32.totalorder 1, %s15
      %p209 = scmp.lt.s32.totalorder %s15, 3
      %p210 = pnand %p208, %p209
      %p211 = pneg %p210
      // Predicated region
      $region9: #{se_res2block_forward.10} parent=5 // pred_check
        _
      $region10: #{se_res2block_forward.10} parent=5 // pred_check_branch
        %213 = sbr.rel (%p210) target = $region12
      $region11: #{se_res2block_forward.10} parent=5 // pred_region
        %s214 = ssub.s32 %s15, 1
        // Predicated region
        $region13: #{se_res2block_forward.10} parent=11 // pred_check
          %p215 = pneg %p130
        $region14: #{se_res2block_forward.10} parent=11 // pred_check_branch
          %217 = sbr.rel (%p215) target = $region16
        $region15: #{se_res2block_forward.10} parent=11 // pred_region
          _
        $region16: #{se_res2block_forward.10} parent=11 // pred_fallthru
          _
        // Predicated region
        $region17: #{se_res2block_forward.10} parent=11 // pred_check
          %p218 = pneg %p151
        $region18: #{se_res2block_forward.10} parent=11 // pred_check_branch
          %220 = sbr.rel (%p218) target = $region20
        $region19: #{se_res2block_forward.10} parent=11 // pred_region
          _
        $region20: #{se_res2block_forward.10} parent=11 // pred_fallthru
          _
        // Predicated region
        $region21: #{se_res2block_forward.10} parent=11 // pred_check
          %p221 = pneg %p172
        $region22: #{se_res2block_forward.10} parent=11 // pred_check_branch
          %223 = sbr.rel (%p221) target = $region24
        $region23: #{se_res2block_forward.10} parent=11 // pred_region
          _
        $region24: #{se_res2block_forward.10} parent=11 // pred_fallthru
          _
      $region12: #{se_res2block_forward.10} parent=5 // pred_fallthru
        _
      %p224 = scmp.lt.s32.totalorder %s15, 2
      // Predicated region
      $region25: #{se_res2block_forward.10} parent=5 // pred_check
        %p225 = pneg %p224
      $region26: #{se_res2block_forward.10} parent=5 // pred_check_branch
        %227 = sbr.rel (%p225) target = $region28
      $region27: #{se_res2block_forward.10} parent=5 // pred_region
        // Predicated region
        $region29: #{se_res2block_forward.10} parent=27 // pred_check
          %p228 = pneg %p49
        $region30: #{se_res2block_forward.10} parent=27 // pred_check_branch
          %230 = sbr.rel (%p228) target = $region32
        $region31: #{se_res2block_forward.10} parent=27 // pred_region
          %s231 = smul.u32 2, %s23
          %p232 = scmp.lt.s32.totalorder %s22, 1
          %s233 = scalar_select %p232, %s22, 1
          %p234 = scmp.lt.s32.totalorder %s231, 1
          %s235 = scalar_select %p234, %s231, 1
          %s236 = smul.addr %s233, 2
          %s237 = sadd.s32 %s235, %s236
          %s238 = smul.addr %s237, 8
          %s239 = scalar_lea.vmem %s0, %s238
          %s240 = smul.u32 2, %s23
        $region32: #{se_res2block_forward.10} parent=27 // pred_fallthru
          _
        // Predicated region
        $region33: #{se_res2block_forward.10} parent=27 // pred_check
          %p241 = pneg %p75
        $region34: #{se_res2block_forward.10} parent=27 // pred_check_branch
          %243 = sbr.rel (%p241) target = $region36
        $region35: #{se_res2block_forward.10} parent=27 // pred_region
          %p244 = scmp.lt.s32.totalorder %s22, 1
          %s245 = scalar_select %p244, %s22, 1
          %s246 = scalar_lea.vmem %s1, %s245
        $region36: #{se_res2block_forward.10} parent=27 // pred_fallthru
          _
        // Predicated region
        $region37: #{se_res2block_forward.10} parent=27 // pred_check
          %p247 = pneg %p103
        $region38: #{se_res2block_forward.10} parent=27 // pred_check_branch
          %249 = sbr.rel (%p247) target = $region40
        $region39: #{se_res2block_forward.10} parent=27 // pred_region
          %s250 = smul.u32 2, %s23
          %p251 = scmp.lt.s32.totalorder %s22, 1
          %s252 = scalar_select %p251, %s22, 1
          %p253 = scmp.lt.s32.totalorder %s250, 1
          %s254 = scalar_select %p253, %s250, 1
          %s255 = smul.addr %s252, 2
          %s256 = sadd.s32 %s254, %s255
          %s257 = smul.addr %s256, 8
          %s258 = scalar_lea.vmem %s2, %s257
          %s259 = smul.u32 2, %s23
        $region40: #{se_res2block_forward.10} parent=27 // pred_fallthru
          _
      $region28: #{se_res2block_forward.10} parent=5 // pred_fallthru
        _
      %p260 = scmp.le.s32.totalorder 1, %s15
      %p261 = scmp.lt.s32.totalorder %s15, 3
      %p262 = pnand %p260, %p261
      %p263 = pneg %p262
      // Predicated region
      $region41: #{se_res2block_forward.10} parent=5 // pred_check
        _
      $region42: #{se_res2block_forward.10} parent=5 // pred_check_branch
        %265 = sbr.rel (%p262) target = $region44
      $region43: #{se_res2block_forward.10} parent=5 // pred_region
        %s266 = ssub.s32 %s15, 1
        %s267 = smul.u32 2, %s25
        %p268 = scmp.lt.s32.totalorder %s24, 1
        %s269 = scalar_select %p268, %s24, 1
        %p270 = scmp.lt.s32.totalorder %s267, 1
        %s271 = scalar_select %p270, %s267, 1
        %s272 = smul.addr %s269, 2
        %s273 = sadd.s32 %s271, %s272
        %s274 = smul.addr %s273, 8
        %s275 = scalar_lea.vmem %s0, %s274
        %p276 = pneg %p55
        %p277 = pneg %p52
        %p278 = scmp.lt.s32.totalorder %s24, 1
        %s279 = scalar_select %p278, %s24, 1
        %s280 = scalar_lea.vmem %s1, %s279
        %p281 = pneg %p81
        %p282 = pneg %p78
        %s283 = smul.u32 2, %s25
        %p284 = scmp.lt.s32.totalorder %s24, 1
        %s285 = scalar_select %p284, %s24, 1
        %p286 = scmp.lt.s32.totalorder %s283, 1
        %s287 = scalar_select %p286, %s283, 1
        %s288 = smul.addr %s285, 2
        %s289 = sadd.s32 %s287, %s288
        %s290 = smul.addr %s289, 8
        %s291 = scalar_lea.vmem %s2, %s290
        %p292 = pneg %p109
        %p293 = pneg %p106
        %p294 = pneg %p130
        %p295 = pneg %p127
        %p296 = pneg %p151
        %p297 = pneg %p148
        %p298 = pneg %p172
        %p299 = pneg %p169
        %p300 = pneg %p200
        %p301 = pneg %p197
        %s302 = sand.u32 %s187, 1
        %s303 = scalar_lea.sflag [#allocation3], %s302
        %s304 = sand.u32 %s187, 1
        %s305 = smul.addr %s304, 16
        %s306 = scalar_lea.vmem [#allocation2], %s305
        %s307 = smul.u32 2, %s25
        %p308 = scmp.lt.s32.totalorder %s24, 1
        %s309 = scalar_select %p308, %s24, 1
        %p310 = scmp.lt.s32.totalorder %s307, 1
        %s311 = scalar_select %p310, %s307, 1
        %s312 = smul.addr %s309, 2
        %s313 = sadd.s32 %s311, %s312
        %s314 = smul.addr %s313, 8
        %s315 = scalar_lea.vmem %s0, %s314
        %s316 = smul.u32 2, %s25
        %p317 = scmp.lt.s32.totalorder %s24, 1
        %s318 = scalar_select %p317, %s24, 1
        %s319 = scalar_lea.vmem %s1, %s318
        %s320 = smul.u32 2, %s25
        %p321 = scmp.lt.s32.totalorder %s24, 1
        %s322 = scalar_select %p321, %s24, 1
        %p323 = scmp.lt.s32.totalorder %s320, 1
        %s324 = scalar_select %p323, %s320, 1
        %s325 = smul.addr %s322, 2
        %s326 = sadd.s32 %s324, %s325
        %s327 = smul.addr %s326, 8
        %s328 = scalar_lea.vmem %s2, %s327
        %s329 = smul.u32 2, %s25
        %s330 = smul.u32 2, %s25
        %v332 = vld [vmem:[%s315] sm:$0xff]
        %v333 = vld [vmem:[%s315 + $0x8] sm:$0xff]
        %v334 = vld [vmem:[%s319] sm:$0x1]
        %v336 = vlaneseq
        %v337 = vshrl.u32 %v336, 7
        %v338 = vsub.s32 0, %v337
        %v339 = vrot.slane %v334, %v338
        %v341 = vmul.f32 %v332, %v339
        %v342 = vmul.f32 %v333, %v339
        %v343 = vpack.c.bf16 %v342, %v341
        %v344 = vld [vmem:[%s3] sm:$0xf]
        %v345 = vld [vmem:[%s3 + $0x4] sm:$0xf]
        %v346 = vld [vmem:[%s3 + $0x8] sm:$0xf]
        %v347 = vld [vmem:[%s3 + $0xc] sm:$0xf]
        %v348 = vld [vmem:[%s3 + $0x10] sm:$0xf]
        %v349 = vld [vmem:[%s3 + $0x14] sm:$0xf]
        %v350 = vld [vmem:[%s3 + $0x18] sm:$0xf]
        %v351 = vld [vmem:[%s3 + $0x1c] sm:$0xf]
        %v360 = vunpack.c.l.b16 %v344
        %v361 = vunpack.c.l.b16 %v345
        %v362 = vunpack.c.l.b16 %v346
        %v363 = vunpack.c.l.b16 %v347
        %v364 = vunpack.c.l.b16 %v348
        %v365 = vunpack.c.l.b16 %v349
        %v366 = vunpack.c.l.b16 %v350
        %v367 = vunpack.c.l.b16 %v351
        %v368 = vpack.c.b16 %v361, %v360
        %v369 = vpack.c.b16 %v363, %v362
        %v370 = vpack.c.b16 %v365, %v364
        %v371 = vpack.c.b16 %v367, %v366
        %vm376 = vcmask 523264
        %v378 = vsel %vm376, %v343, 0
        %380 = vmatprep.subr.bf16.mxu0 0
        %381 = vmatpush1.bf16.msra.mxu0 %v368
        %382 = vmatprep.subr.bf16.mxu0 0
        %383 = vmatpush1.bf16.msra.mxu0 %v369
        %384 = vmatprep.subr.bf16.mxu0 0
        %385 = vmatpush1.bf16.msra.mxu0 %v370
        %386 = vmatprep.subr.bf16.mxu0 0
        %387 = vmatpush1.bf16.msra.mxu0 %v371
        %388 = vmatprep.subr.bf16.mxu0 0
        %389 = vmatpush1.bf16.msra.mxu0 0
        %390 = vmatprep.subr.bf16.mxu0 0
        %391 = vmatpush1.bf16.msra.mxu0 0
        %392 = vmatprep.subr.bf16.mxu0 0
        %393 = vmatpush1.bf16.msra.mxu0 0
        %394 = vmatprep.subr.bf16.mxu0 0
        %395 = vmatpush1.bf16.msra.mxu0 0
        %396 = vmatprep.subr.bf16.mxu0 0
        %397 = vmatpush1.bf16.msra.mxu0 0
        %398 = vmatprep.subr.bf16.mxu0 0
        %399 = vmatpush1.bf16.msra.mxu0 0
        %400 = vmatprep.subr.bf16.mxu0 0
        %401 = vmatpush1.bf16.msra.mxu0 0
        %402 = vmatprep.subr.bf16.mxu0 0
        %403 = vmatpush1.bf16.msra.mxu0 0
        %404 = vmatprep.subr.bf16.mxu0 0
        %405 = vmatpush1.bf16.msra.mxu0 0
        %406 = vmatprep.subr.bf16.mxu0 0
        %407 = vmatpush1.bf16.msra.mxu0 0
        %408 = vmatprep.subr.bf16.mxu0 0
        %409 = vmatpush1.bf16.msra.mxu0 0
        %410 = vmatprep.subr.bf16.mxu0 0
        %411 = vmatpush1.bf16.msra.mxu0 0
        %412 = vmatprep.mubr.bf16.mxu0 0
        %413 = vmatmul.mubr.bf16.gmra.mrb[0].mxu0 %v378
        %v414 = vpop.f32.mrb[0].mxu0
        %v415 = vadd.f32 0.0, %v414
        %v416 = vpop.f32.mrb[0].mxu0
        %v417 = vpop.f32.mrb[0].mxu0
        %v418 = vadd.f32 0.0, %v417
        %v419 = vpop.f32.mrb[0].mxu0
        %420 = vdwg.mxu0
        %v421 = vmax.f32 %v415, 0.0
        %v422 = vmax.f32 %v418, 0.0
        %v423 = vld [vmem:[%s4] sm:$0x1]
        %v425 = vlaneseq
        %v426 = vshrl.u32 %v425, 7
        %v427 = vsub.s32 0, %v426
        %v428 = vrot.slane %v423, %v427
        %v430 = vmul.f32 %v421, %v428
        %v431 = vmul.f32 %v422, %v428
        %v432 = vld [vmem:[%s5] sm:$0x1]
        %v434 = vlaneseq
        %v435 = vshrl.u32 %v434, 7
        %v436 = vsub.s32 0, %v435
        %v437 = vrot.slane %v432, %v436
        %v439 = vadd.f32 %v430, %v437
        %v440 = vadd.f32 %v431, %v437
        %v441 = vld [vmem:[%s328] sm:$0xff]
        %v442 = vld [vmem:[%s328 + $0x8] sm:$0xff]
        %v443 = vadd.f32 %v439, %v441
        %v444 = vadd.f32 %v440, %v442
        %v445 = vmul.f32 %v443, 0.70710677
        %v446 = vmul.f32 %v444, 0.70710677
        %447 = vst.msk [vmem:[%s306] sm:$0xff] %vm376, %v445
        %448 = vst.msk [vmem:[%s306 + $0x8] sm:$0xff] %vm376, %v446
        %s449 = sand.u32 %s187, 1
        %s450 = scalar_lea.sflag [#allocation3], %s449
        %s451 = sand.u32 %s187, 1
        %s452 = smul.addr %s451, 16
        %s453 = scalar_lea.vmem [#allocation2], %s452
        // Predicated region
        $region45: #{se_res2block_forward.10} parent=43 // pred_check
          %p454 = pneg %p197
        $region46: #{se_res2block_forward.10} parent=43 // pred_check_branch
          %456 = sbr.rel (%p454) target = $region48
        $region47: #{se_res2block_forward.10} parent=43 // pred_region
          %s457 = smul.u32 2, %s25
          %s459 = ssub.s32 256, 256
          %460 = vsyncadd %s450, %s459
          %s461 = smul.addr %s24, 2
          %s462 = sadd.s32 %s457, %s461
          %s463 = smul.addr %s462, 128
          %s464 = scalar_lea.hbm %s6, %s463
          %s465 = sshll.u32 %s453, 4
          %s466 = int_to_ptr.vmem [resolvable:$true] %s465
          %471 = dma.vmem_to_hbm [thread:$0]  %s466, 256, %s464, %s450, 128, 128, 8
        $region48: #{se_res2block_forward.10} parent=43 // pred_fallthru
          _
      $region44: #{se_res2block_forward.10} parent=5 // pred_fallthru
        _
      %p472 = scmp.le.s32.totalorder 2, %s15
      // Predicated region
      $region49: #{se_res2block_forward.10} parent=5 // pred_check
        %p473 = pneg %p472
      $region50: #{se_res2block_forward.10} parent=5 // pred_check_branch
        %475 = sbr.rel (%p473) target = $region52
      $region51: #{se_res2block_forward.10} parent=5 // pred_region
        %s476 = ssub.s32 %s15, 2
        // Predicated region
        $region53: #{se_res2block_forward.10} parent=51 // pred_check
          %p477 = pneg %p203
        $region54: #{se_res2block_forward.10} parent=51 // pred_check_branch
          %479 = sbr.rel (%p477) target = $region56
        $region55: #{se_res2block_forward.10} parent=51 // pred_region
          %s480 = sand.u32 %s188, 1
          %s481 = scalar_lea.sflag [#allocation3], %s480
          %s482 = sand.u32 %s188, 1
          %s483 = smul.addr %s482, 16
          %s484 = scalar_lea.vmem [#allocation2], %s483
          %485 = dma.done %s481, 256
        $region56: #{se_res2block_forward.10} parent=51 // pred_fallthru
          _
      $region52: #{se_res2block_forward.10} parent=5 // pred_fallthru
        _
    $region6: #{se_res2block_forward.10} parent=1 // loop_footer
      %s19 = sadd.s32 1, %s15
    $region7: #{se_res2block_forward.10} parent=1 // loop_footer_branch
      %14 = sbr.rel target = $region3
    $region8: #{se_res2block_forward.10} parent=1 // loop_exit
      _
    %486 = vsyncpa [#allocation3], 1
    %s487 = scalar_lea.sflag [#allocation3], 1
    %488 = vsyncpa %s487, 1

</llo_original>
